<compile_context>
chip_gen: v7x
topology: tpu7x:2x2x1
jax: 0.10.0
libtpu: 0.0.40
codegen_flags: <defaults>
</compile_context>

<pallas_src>
import math
import jax
import jax.numpy as jnp
from jax.experimental import pallas as pl
from jax.experimental.pallas import tpu as pltpu

NUM_HEADS = 4


def _make_kernel(T, H):
    """Kernel factory closing over the (static) sequence length and head count."""

    def kernel(x_ref, wqkv_ref, bqkv_ref, wo_ref, bo_ref, o_ref):
        # x_ref block: (BB*T, D); wqkv: (D, 3D); bqkv: (1, 3D); wo: (D, D); bo: (1, D)
        x = x_ref[...].astype(jnp.float32)              # (rows, D)
        rows, D = x.shape
        BB = rows // T
        Dh = D // H

        # Fused QKV projection: one MXU matmul with N = 3D.
        # The 1/sqrt(Dh) scale is already folded into the Q slice of wqkv/bqkv.
        qkv = jnp.dot(x, wqkv_ref[...],
                      preferred_element_type=jnp.float32) + bqkv_ref[...]
        q = qkv[:, 0 * D:1 * D]
        k = qkv[:, 1 * D:2 * D]
        v = qkv[:, 2 * D:3 * D]

        acc = jnp.zeros((rows, D), jnp.float32)
        for h in range(H):                              # static unroll (H = 4)
            lo = h * Dh
            # (rows, Dh) -> (BB, T, Dh): splits only the leading (row) axis, no relayout.
            qh = q[:, lo:lo + Dh].reshape(BB, T, Dh)
            kh = k[:, lo:lo + Dh].reshape(BB, T, Dh)
            vh = v[:, lo:lo + Dh].reshape(BB, T, Dh)

            # Batched attention over all BB sequences in the block at once.
            s = jnp.einsum("btd,bsd->bts", qh, kh,
                           preferred_element_type=jnp.float32)       # (BB, T, T)
            s = s - jnp.max(s, axis=-1, keepdims=True)
            p = jnp.exp(s)
            inv = pl.reciprocal(jnp.sum(p, axis=-1, keepdims=True), approx=True)
            ctx = jnp.einsum("bts,bsd->btd", p * inv, vh,
                             preferred_element_type=jnp.float32)      # (BB, T, Dh)

            # Fold the output projection into the head loop: no concat / relayout.
            acc = acc + jnp.dot(ctx.reshape(rows, Dh), wo_ref[lo:lo + Dh, :],
                                preferred_element_type=jnp.float32)

        o_ref[...] = (acc + bo_ref[...]).astype(o_ref.dtype)

    return kernel


def _pick_block_seqs(BN, T, target_rows=1024):
    """Largest BB dividing BN with BB*T rows sublane-aligned (%8), bounded by
    target_rows, and leaving >= 2 grid steps when possible (v7x has 2 TCs)."""
    cap = max(min(target_rows // max(T, 1), BN // 2 if BN >= 2 else 1), 1)
    for bb in range(cap, 0, -1):
        if BN % bb == 0 and (bb * T) % 8 == 0:
            return bb
    return BN  # single full-extent block is always a legal BlockSpec


def temporal_attention(x, packed, block_seqs=None):
    """x: (B, T, NM, D) float32. packed: dict from pack_params()."""
    B, T, NM, D = x.shape
    assert D % NUM_HEADS == 0
    BN = B * NM

    # Exactly mirror the PyTorch module: raw memory-order reshape, NOT a permute.
    # (B,T,NM,D) -> (B*NM, T, D) -> flatten rows -> (BN*T, D).
    x2d = x.reshape(BN * T, D)

    BB = block_seqs if block_seqs is not None else _pick_block_seqs(BN, T)
    assert BN % BB == 0
    rows = BB * T
    grid = (BN // BB,)

    kernel = _make_kernel(T, NUM_HEADS)

    out2d = pl.pallas_call(
        kernel,
        out_shape=jax.ShapeDtypeStruct((BN * T, D), x.dtype),
        grid_spec=pltpu.PrefetchScalarGridSpec(
            num_scalar_prefetch=0,
            grid=grid,
            in_specs=[
                pl.BlockSpec((rows, D), lambda i: (i, 0)),        # x slab
                pl.BlockSpec((D, 3 * D), lambda i: (0, 0)),       # fused Wqkv (resident)
                pl.BlockSpec((1, 3 * D), lambda i: (0, 0)),       # fused bqkv
                pl.BlockSpec((D, D), lambda i: (0, 0)),           # Wo
                pl.BlockSpec((1, D), lambda i: (0, 0)),           # bo
            ],
            out_specs=pl.BlockSpec((rows, D), lambda i: (i, 0)),
        ),
        compiler_params=pltpu.CompilerParams(
            dimension_semantics=("parallel",)),
    )(x2d, packed["wqkv"], packed["bqkv"], packed["wo"], packed["bo"])

    return out2d.reshape(B, T, NM, D)


def init_params(key, D):
    """Deterministic synthetic init with nn.MultiheadAttention's native shapes."""
    k1, k2, k3 = jax.random.split(key, 3)
    return {
        "in_proj_weight": jax.random.normal(k1, (3 * D, D), jnp.float32) * 0.05,
        "in_proj_bias": jax.random.normal(k2, (3 * D,), jnp.float32) * 0.05,
        "out_proj_weight": jax.random.normal(k3, (D, D), jnp.float32) * 0.05,
        "out_proj_bias": jnp.zeros((D,), jnp.float32),
    }


def pack_params(raw, D, H=NUM_HEADS):
    """Pre-transpose (PyTorch does x @ W^T + b), fuse QKV, and fold the 1/sqrt(Dh)
    attention scale into Wq / bq."""
    Dh = D // H
    scale = 1.0 / math.sqrt(Dh)
    in_w, in_b = raw["in_proj_weight"], raw["in_proj_bias"]
    wq = in_w[0 * D:1 * D].T * scale
    wk = in_w[1 * D:2 * D].T
    wv = in_w[2 * D:3 * D].T
    bq = in_b[0 * D:1 * D] * scale
    bk = in_b[1 * D:2 * D]
    bv = in_b[2 * D:3 * D]
    return {
        "wqkv": jnp.concatenate([wq, wk, wv], axis=1),              # (D, 3D)
        "bqkv": jnp.concatenate([bq, bk, bv]).reshape(1, 3 * D),    # (1, 3D)
        "wo": raw["out_proj_weight"].T,                             # (D, D)
        "bo": raw["out_proj_bias"].reshape(1, D),                   # (1, D)
    }


def reference(x, raw):
    """Pure-JAX reference of the same MHA forward (unpacked weights)."""
    B, T, NM, D = x.shape
    H = NUM_HEADS
    Dh = D // H
    xf = x.reshape(B * NM, T, D)
    in_w, in_b = raw["in_proj_weight"], raw["in_proj_bias"]
    q = xf @ in_w[0 * D:1 * D].T + in_b[0 * D:1 * D]
    k = xf @ in_w[1 * D:2 * D].T + in_b[1 * D:2 * D]
    v = xf @ in_w[2 * D:3 * D].T + in_b[2 * D:3 * D]

    def split(a):  # (BN, T, D) -> (BN, H, T, Dh)
        return a.reshape(a.shape[0], T, H, Dh).transpose(0, 2, 1, 3)

    qh, kh, vh = split(q), split(k), split(v)
    s = jnp.einsum("bhqd,bhkd->bhqk", qh, kh) / math.sqrt(Dh)
    p = jax.nn.softmax(s, axis=-1)
    ctx = jnp.einsum("bhqk,bhkd->bhqd", p, vh)
    ctx = ctx.transpose(0, 2, 1, 3).reshape(B * NM, T, D)
    out = ctx @ raw["out_proj_weight"].T + raw["out_proj_bias"]
    return out.reshape(B, T, NM, D)


if __name__ == "__main__":
    key = jax.random.PRNGKey(0)
    kx, kp = jax.random.split(key)

    B, T, NM, D = 2, 8, 4, 32          # D divisible by num_heads=4
    x = jax.random.normal(kx, (B, T, NM, D), jnp.float32)
    raw = init_params(kp, D)
    packed = pack_params(raw, D)

    out = temporal_attention(x, packed)
    out = jax.block_until_ready(out)

    ref = reference(x, raw)
    assert out.shape == (B, T, NM, D)
    # Tolerance relaxed slightly (1e-4 -> 1e-3) to accommodate the EUP approximate
    # reciprocal used in the softmax normalization; everything else is f32-exact.
    assert jnp.allclose(out, ref, atol=1e-3, rtol=1e-3), "mismatch vs reference"

    print("KERNEL_OK")
</pallas_src>

<mosaic_0001>
module attributes {stable_mosaic.version = 11 : i64} {
  func.func @kernel(%arg0: i32, %arg1: memref<32x32xf32, #tpu.memory_space<vmem>>, %arg2: memref<32x96xf32, #tpu.memory_space<vmem>>, %arg3: memref<1x96xf32, #tpu.memory_space<vmem>>, %arg4: memref<32x32xf32, #tpu.memory_space<vmem>>, %arg5: memref<1x32xf32, #tpu.memory_space<vmem>>, %arg6: memref<32x32xf32, #tpu.memory_space<vmem>>) attributes {dimension_semantics = [#tpu.dimension_semantics<parallel>], iteration_bounds = array<i64: 2>, scalar_prefetch = 0 : i64, scratch_operands = 0 : i64, tpu.core_type = #tpu.core_type<tc>, window_params = [{transform_indices = @transform_0, window_bounds = array<i64: 32, 32>}, {pipeline_mode = #tpu.pipeline_mode<synchronous>, transform_indices = @transform_1, window_bounds = array<i64: 32, 96>}, {pipeline_mode = #tpu.pipeline_mode<synchronous>, transform_indices = @transform_2, window_bounds = array<i64: 1, 96>}, {pipeline_mode = #tpu.pipeline_mode<synchronous>, transform_indices = @transform_3, window_bounds = array<i64: 32, 32>}, {pipeline_mode = #tpu.pipeline_mode<synchronous>, transform_indices = @transform_4, window_bounds = array<i64: 1, 32>}, {transform_indices = @transform_5, window_bounds = array<i64: 32, 32>}]} {
    %c0 = arith.constant 0 : index
    %c0_0 = arith.constant 0 : index
    %0 = vector.load %arg1[%c0, %c0_0] : memref<32x32xf32, #tpu.memory_space<vmem>>, vector<32x32xf32>
    %c0_1 = arith.constant 0 : index
    %c0_2 = arith.constant 0 : index
    %1 = vector.load %arg2[%c0_1, %c0_2] : memref<32x96xf32, #tpu.memory_space<vmem>>, vector<32x96xf32>
    %cst = arith.constant dense<0.000000e+00> : vector<32x96xf32>
    %2 = tpu.matmul %0, %1, %cst {dimension_numbers = #tpu.dot_dimension_numbers<[1], [0], [0], [1], [0, 0, 1, 1], [], []>} : vector<32x32xf32>, vector<32x96xf32>, vector<32x96xf32> -> vector<32x96xf32>
    %c0_3 = arith.constant 0 : index
    %c0_4 = arith.constant 0 : index
    %3 = vector.load %arg3[%c0_3, %c0_4] : memref<1x96xf32, #tpu.memory_space<vmem>>, vector<1x96xf32>
    %4 = vector.broadcast %3 : vector<1x96xf32> to vector<32x96xf32>
    %5 = arith.addf %2, %4 : vector<32x96xf32>
    %6 = vector.extract_strided_slice %5 {offsets = [0, 0], sizes = [32, 32], strides = [1, 1]} : vector<32x96xf32> to vector<32x32xf32>
    %7 = vector.extract_strided_slice %5 {offsets = [0, 32], sizes = [32, 32], strides = [1, 1]} : vector<32x96xf32> to vector<32x32xf32>
    %8 = vector.extract_strided_slice %5 {offsets = [0, 64], sizes = [32, 32], strides = [1, 1]} : vector<32x96xf32> to vector<32x32xf32>
    %cst_5 = arith.constant 0.000000e+00 : f32
    %9 = vector.broadcast %cst_5 : f32 to vector<32x32xf32>
    %10 = vector.extract_strided_slice %6 {offsets = [0, 0], sizes = [32, 8], strides = [1, 1]} : vector<32x32xf32> to vector<32x8xf32>
    %11 = vector.shape_cast %10 : vector<32x8xf32> to vector<4x8x8xf32>
    %12 = vector.extract_strided_slice %7 {offsets = [0, 0], sizes = [32, 8], strides = [1, 1]} : vector<32x32xf32> to vector<32x8xf32>
    %13 = vector.shape_cast %12 : vector<32x8xf32> to vector<4x8x8xf32>
    %14 = vector.extract_strided_slice %8 {offsets = [0, 0], sizes = [32, 8], strides = [1, 1]} : vector<32x32xf32> to vector<32x8xf32>
    %15 = vector.shape_cast %14 : vector<32x8xf32> to vector<4x8x8xf32>
    "tpu.trace_start"() <{level = 10 : i32, message = "btd,bsd->bts"}> : () -> ()
    %cst_6 = arith.constant dense<0.000000e+00> : vector<4x8x8xf32>
    %16 = tpu.matmul %11, %13, %cst_6 {dimension_numbers = #tpu.dot_dimension_numbers<[2], [2], [1], [1], [0, 0, 0, 1, 1, 1], [0], [0]>} : vector<4x8x8xf32>, vector<4x8x8xf32>, vector<4x8x8xf32> -> vector<4x8x8xf32>
    "tpu.trace_stop"() : () -> ()
    %cst_7 = arith.constant dense<0xFF800000> : vector<4x8xf32>
    %17 = vector.multi_reduction <maximumf>, %16, %cst_7 [2] : vector<4x8x8xf32> to vector<4x8xf32>
    %18 = vector.shape_cast %17 : vector<4x8xf32> to vector<4x8x1xf32>
    %19 = vector.broadcast %18 : vector<4x8x1xf32> to vector<4x8x8xf32>
    %20 = arith.subf %16, %19 : vector<4x8x8xf32>
    %21 = math.exp %20 : vector<4x8x8xf32>
    %cst_8 = arith.constant dense<0.000000e+00> : vector<4x8xf32>
    %22 = vector.multi_reduction <add>, %21, %cst_8 [2] : vector<4x8x8xf32> to vector<4x8xf32>
    %23 = vector.shape_cast %22 : vector<4x8xf32> to vector<4x8x1xf32>
    %24 = tpu.reciprocal %23 {approx = true} : vector<4x8x1xf32> -> vector<4x8x1xf32>
    %25 = vector.broadcast %24 : vector<4x8x1xf32> to vector<4x8x8xf32>
    %26 = arith.mulf %21, %25 : vector<4x8x8xf32>
    "tpu.trace_start"() <{level = 10 : i32, message = "bts,bsd->btd"}> : () -> ()
    %cst_9 = arith.constant dense<0.000000e+00> : vector<4x8x8xf32>
    %27 = tpu.matmul %26, %15, %cst_9 {dimension_numbers = #tpu.dot_dimension_numbers<[2], [1], [1], [2], [0, 0, 0, 1, 1, 2], [0], [0]>} : vector<4x8x8xf32>, vector<4x8x8xf32>, vector<4x8x8xf32> -> vector<4x8x8xf32>
    "tpu.trace_stop"() : () -> ()
    %28 = vector.shape_cast %27 : vector<4x8x8xf32> to vector<32x8xf32>
    %c0_10 = arith.constant 0 : index
    %c0_11 = arith.constant 0 : index
    %29 = vector.load %arg4[%c0_10, %c0_11] : memref<32x32xf32, #tpu.memory_space<vmem>>, vector<8x32xf32>
    %cst_12 = arith.constant dense<0.000000e+00> : vector<32x32xf32>
    %30 = tpu.matmul %28, %29, %cst_12 {dimension_numbers = #tpu.dot_dimension_numbers<[1], [0], [0], [1], [0, 0, 1, 1], [], []>} : vector<32x8xf32>, vector<8x32xf32>, vector<32x32xf32> -> vector<32x32xf32>
    %31 = arith.addf %9, %30 : vector<32x32xf32>
    %32 = vector.extract_strided_slice %6 {offsets = [0, 8], sizes = [32, 8], strides = [1, 1]} : vector<32x32xf32> to vector<32x8xf32>
    %33 = vector.shape_cast %32 : vector<32x8xf32> to vector<4x8x8xf32>
    %34 = vector.extract_strided_slice %7 {offsets = [0, 8], sizes = [32, 8], strides = [1, 1]} : vector<32x32xf32> to vector<32x8xf32>
    %35 = vector.shape_cast %34 : vector<32x8xf32> to vector<4x8x8xf32>
    %36 = vector.extract_strided_slice %8 {offsets = [0, 8], sizes = [32, 8], strides = [1, 1]} : vector<32x32xf32> to vector<32x8xf32>
    %37 = vector.shape_cast %36 : vector<32x8xf32> to vector<4x8x8xf32>
    "tpu.trace_start"() <{level = 10 : i32, message = "btd,bsd->bts"}> : () -> ()
    %cst_13 = arith.constant dense<0.000000e+00> : vector<4x8x8xf32>
    %38 = tpu.matmul %33, %35, %cst_13 {dimension_numbers = #tpu.dot_dimension_numbers<[2], [2], [1], [1], [0, 0, 0, 1, 1, 1], [0], [0]>} : vector<4x8x8xf32>, vector<4x8x8xf32>, vector<4x8x8xf32> -> vector<4x8x8xf32>
    "tpu.trace_stop"() : () -> ()
    %cst_14 = arith.constant dense<0xFF800000> : vector<4x8xf32>
    %39 = vector.multi_reduction <maximumf>, %38, %cst_14 [2] : vector<4x8x8xf32> to vector<4x8xf32>
    %40 = vector.shape_cast %39 : vector<4x8xf32> to vector<4x8x1xf32>
    %41 = vector.broadcast %40 : vector<4x8x1xf32> to vector<4x8x8xf32>
    %42 = arith.subf %38, %41 : vector<4x8x8xf32>
    %43 = math.exp %42 : vector<4x8x8xf32>
    %cst_15 = arith.constant dense<0.000000e+00> : vector<4x8xf32>
    %44 = vector.multi_reduction <add>, %43, %cst_15 [2] : vector<4x8x8xf32> to vector<4x8xf32>
    %45 = vector.shape_cast %44 : vector<4x8xf32> to vector<4x8x1xf32>
    %46 = tpu.reciprocal %45 {approx = true} : vector<4x8x1xf32> -> vector<4x8x1xf32>
    %47 = vector.broadcast %46 : vector<4x8x1xf32> to vector<4x8x8xf32>
    %48 = arith.mulf %43, %47 : vector<4x8x8xf32>
    "tpu.trace_start"() <{level = 10 : i32, message = "bts,bsd->btd"}> : () -> ()
    %cst_16 = arith.constant dense<0.000000e+00> : vector<4x8x8xf32>
    %49 = tpu.matmul %48, %37, %cst_16 {dimension_numbers = #tpu.dot_dimension_numbers<[2], [1], [1], [2], [0, 0, 0, 1, 1, 2], [0], [0]>} : vector<4x8x8xf32>, vector<4x8x8xf32>, vector<4x8x8xf32> -> vector<4x8x8xf32>
    "tpu.trace_stop"() : () -> ()
    %50 = vector.shape_cast %49 : vector<4x8x8xf32> to vector<32x8xf32>
    %c8 = arith.constant 8 : index
    %c0_17 = arith.constant 0 : index
    %51 = vector.load %arg4[%c8, %c0_17] : memref<32x32xf32, #tpu.memory_space<vmem>>, vector<8x32xf32>
    %cst_18 = arith.constant dense<0.000000e+00> : vector<32x32xf32>
    %52 = tpu.matmul %50, %51, %cst_18 {dimension_numbers = #tpu.dot_dimension_numbers<[1], [0], [0], [1], [0, 0, 1, 1], [], []>} : vector<32x8xf32>, vector<8x32xf32>, vector<32x32xf32> -> vector<32x32xf32>
    %53 = arith.addf %31, %52 : vector<32x32xf32>
    %54 = vector.extract_strided_slice %6 {offsets = [0, 16], sizes = [32, 8], strides = [1, 1]} : vector<32x32xf32> to vector<32x8xf32>
    %55 = vector.shape_cast %54 : vector<32x8xf32> to vector<4x8x8xf32>
    %56 = vector.extract_strided_slice %7 {offsets = [0, 16], sizes = [32, 8], strides = [1, 1]} : vector<32x32xf32> to vector<32x8xf32>
    %57 = vector.shape_cast %56 : vector<32x8xf32> to vector<4x8x8xf32>
    %58 = vector.extract_strided_slice %8 {offsets = [0, 16], sizes = [32, 8], strides = [1, 1]} : vector<32x32xf32> to vector<32x8xf32>
    %59 = vector.shape_cast %58 : vector<32x8xf32> to vector<4x8x8xf32>
    "tpu.trace_start"() <{level = 10 : i32, message = "btd,bsd->bts"}> : () -> ()
    %cst_19 = arith.constant dense<0.000000e+00> : vector<4x8x8xf32>
    %60 = tpu.matmul %55, %57, %cst_19 {dimension_numbers = #tpu.dot_dimension_numbers<[2], [2], [1], [1], [0, 0, 0, 1, 1, 1], [0], [0]>} : vector<4x8x8xf32>, vector<4x8x8xf32>, vector<4x8x8xf32> -> vector<4x8x8xf32>
    "tpu.trace_stop"() : () -> ()
    %cst_20 = arith.constant dense<0xFF800000> : vector<4x8xf32>
    %61 = vector.multi_reduction <maximumf>, %60, %cst_20 [2] : vector<4x8x8xf32> to vector<4x8xf32>
    %62 = vector.shape_cast %61 : vector<4x8xf32> to vector<4x8x1xf32>
    %63 = vector.broadcast %62 : vector<4x8x1xf32> to vector<4x8x8xf32>
    %64 = arith.subf %60, %63 : vector<4x8x8xf32>
    %65 = math.exp %64 : vector<4x8x8xf32>
    %cst_21 = arith.constant dense<0.000000e+00> : vector<4x8xf32>
    %66 = vector.multi_reduction <add>, %65, %cst_21 [2] : vector<4x8x8xf32> to vector<4x8xf32>
    %67 = vector.shape_cast %66 : vector<4x8xf32> to vector<4x8x1xf32>
    %68 = tpu.reciprocal %67 {approx = true} : vector<4x8x1xf32> -> vector<4x8x1xf32>
    %69 = vector.broadcast %68 : vector<4x8x1xf32> to vector<4x8x8xf32>
    %70 = arith.mulf %65, %69 : vector<4x8x8xf32>
    "tpu.trace_start"() <{level = 10 : i32, message = "bts,bsd->btd"}> : () -> ()
    %cst_22 = arith.constant dense<0.000000e+00> : vector<4x8x8xf32>
    %71 = tpu.matmul %70, %59, %cst_22 {dimension_numbers = #tpu.dot_dimension_numbers<[2], [1], [1], [2], [0, 0, 0, 1, 1, 2], [0], [0]>} : vector<4x8x8xf32>, vector<4x8x8xf32>, vector<4x8x8xf32> -> vector<4x8x8xf32>
    "tpu.trace_stop"() : () -> ()
    %72 = vector.shape_cast %71 : vector<4x8x8xf32> to vector<32x8xf32>
    %c16 = arith.constant 16 : index
    %c0_23 = arith.constant 0 : index
    %73 = vector.load %arg4[%c16, %c0_23] : memref<32x32xf32, #tpu.memory_space<vmem>>, vector<8x32xf32>
    %cst_24 = arith.constant dense<0.000000e+00> : vector<32x32xf32>
    %74 = tpu.matmul %72, %73, %cst_24 {dimension_numbers = #tpu.dot_dimension_numbers<[1], [0], [0], [1], [0, 0, 1, 1], [], []>} : vector<32x8xf32>, vector<8x32xf32>, vector<32x32xf32> -> vector<32x32xf32>
    %75 = arith.addf %53, %74 : vector<32x32xf32>
    %76 = vector.extract_strided_slice %6 {offsets = [0, 24], sizes = [32, 8], strides = [1, 1]} : vector<32x32xf32> to vector<32x8xf32>
    %77 = vector.shape_cast %76 : vector<32x8xf32> to vector<4x8x8xf32>
    %78 = vector.extract_strided_slice %7 {offsets = [0, 24], sizes = [32, 8], strides = [1, 1]} : vector<32x32xf32> to vector<32x8xf32>
    %79 = vector.shape_cast %78 : vector<32x8xf32> to vector<4x8x8xf32>
    %80 = vector.extract_strided_slice %8 {offsets = [0, 24], sizes = [32, 8], strides = [1, 1]} : vector<32x32xf32> to vector<32x8xf32>
    %81 = vector.shape_cast %80 : vector<32x8xf32> to vector<4x8x8xf32>
    "tpu.trace_start"() <{level = 10 : i32, message = "btd,bsd->bts"}> : () -> ()
    %cst_25 = arith.constant dense<0.000000e+00> : vector<4x8x8xf32>
    %82 = tpu.matmul %77, %79, %cst_25 {dimension_numbers = #tpu.dot_dimension_numbers<[2], [2], [1], [1], [0, 0, 0, 1, 1, 1], [0], [0]>} : vector<4x8x8xf32>, vector<4x8x8xf32>, vector<4x8x8xf32> -> vector<4x8x8xf32>
    "tpu.trace_stop"() : () -> ()
    %cst_26 = arith.constant dense<0xFF800000> : vector<4x8xf32>
    %83 = vector.multi_reduction <maximumf>, %82, %cst_26 [2] : vector<4x8x8xf32> to vector<4x8xf32>
    %84 = vector.shape_cast %83 : vector<4x8xf32> to vector<4x8x1xf32>
    %85 = vector.broadcast %84 : vector<4x8x1xf32> to vector<4x8x8xf32>
    %86 = arith.subf %82, %85 : vector<4x8x8xf32>
    %87 = math.exp %86 : vector<4x8x8xf32>
    %cst_27 = arith.constant dense<0.000000e+00> : vector<4x8xf32>
    %88 = vector.multi_reduction <add>, %87, %cst_27 [2] : vector<4x8x8xf32> to vector<4x8xf32>
    %89 = vector.shape_cast %88 : vector<4x8xf32> to vector<4x8x1xf32>
    %90 = tpu.reciprocal %89 {approx = true} : vector<4x8x1xf32> -> vector<4x8x1xf32>
    %91 = vector.broadcast %90 : vector<4x8x1xf32> to vector<4x8x8xf32>
    %92 = arith.mulf %87, %91 : vector<4x8x8xf32>
    "tpu.trace_start"() <{level = 10 : i32, message = "bts,bsd->btd"}> : () -> ()
    %cst_28 = arith.constant dense<0.000000e+00> : vector<4x8x8xf32>
    %93 = tpu.matmul %92, %81, %cst_28 {dimension_numbers = #tpu.dot_dimension_numbers<[2], [1], [1], [2], [0, 0, 0, 1, 1, 2], [0], [0]>} : vector<4x8x8xf32>, vector<4x8x8xf32>, vector<4x8x8xf32> -> vector<4x8x8xf32>
    "tpu.trace_stop"() : () -> ()
    %94 = vector.shape_cast %93 : vector<4x8x8xf32> to vector<32x8xf32>
    %c24 = arith.constant 24 : index
    %c0_29 = arith.constant 0 : index
    %95 = vector.load %arg4[%c24, %c0_29] : memref<32x32xf32, #tpu.memory_space<vmem>>, vector<8x32xf32>
    %cst_30 = arith.constant dense<0.000000e+00> : vector<32x32xf32>
    %96 = tpu.matmul %94, %95, %cst_30 {dimension_numbers = #tpu.dot_dimension_numbers<[1], [0], [0], [1], [0, 0, 1, 1], [], []>} : vector<32x8xf32>, vector<8x32xf32>, vector<32x32xf32> -> vector<32x32xf32>
    %97 = arith.addf %75, %96 : vector<32x32xf32>
    %c0_31 = arith.constant 0 : index
    %c0_32 = arith.constant 0 : index
    %98 = vector.load %arg5[%c0_31, %c0_32] : memref<1x32xf32, #tpu.memory_space<vmem>>, vector<1x32xf32>
    %99 = vector.broadcast %98 : vector<1x32xf32> to vector<32x32xf32>
    %100 = arith.addf %97, %99 : vector<32x32xf32>
    %c0_33 = arith.constant 0 : index
    %c0_34 = arith.constant 0 : index
    %101 = vector.load %arg6[%c0_33, %c0_34] : memref<32x32xf32, #tpu.memory_space<vmem>>, vector<32x32xf32>
    tpu.vector_store %arg6[%c0_33, %c0_34], %100 {strides = array<i32>} : memref<32x32xf32, #tpu.memory_space<vmem>>, vector<32x32xf32>,
    return
  }
  func.func @transform_0(%arg0: i32) -> (i32, i32) {
    %c0_i32 = arith.constant 0 : i32
    %c0_i32_0 = arith.constant 0 : i32
    return %arg0, %c0_i32 : i32, i32
  }
  func.func @transform_1(%arg0: i32) -> (i32, i32) {
    %c0_i32 = arith.constant 0 : i32
    %c0_i32_0 = arith.constant 0 : i32
    %c0_i32_1 = arith.constant 0 : i32
    return %c0_i32, %c0_i32_0 : i32, i32
  }
  func.func @transform_2(%arg0: i32) -> (i32, i32) {
    %c0_i32 = arith.constant 0 : i32
    %c0_i32_0 = arith.constant 0 : i32
    %c0_i32_1 = arith.constant 0 : i32
    return %c0_i32, %c0_i32_0 : i32, i32
  }
  func.func @transform_3(%arg0: i32) -> (i32, i32) {
    %c0_i32 = arith.constant 0 : i32
    %c0_i32_0 = arith.constant 0 : i32
    %c0_i32_1 = arith.constant 0 : i32
    return %c0_i32, %c0_i32_0 : i32, i32
  }
  func.func @transform_4(%arg0: i32) -> (i32, i32) {
    %c0_i32 = arith.constant 0 : i32
    %c0_i32_0 = arith.constant 0 : i32
    %c0_i32_1 = arith.constant 0 : i32
    return %c0_i32, %c0_i32_0 : i32, i32
  }
  func.func @transform_5(%arg0: i32) -> (i32, i32) {
    %c0_i32 = arith.constant 0 : i32
    %c0_i32_0 = arith.constant 0 : i32
    return %arg0, %c0_i32 : i32, i32
  }
}

</mosaic_0001>

<llo_original>
// kernel: tpu_custom_call.1
$region0: #{tpu_custom_call.1}
  #allocation0 [shape = 'u32[]', space=smem, size = 0x4, offset = 0x4, fixed_abs, tag = 'smem constant byte address 0x4 - core index']
  #allocation1 [shape = 'u32[144,128]{1,0:T(1,128)}', space=vmem, size = 0x12000, scoped, tag = 'internal scratch']
  %s0 = inlined_call_operand.vmem [shape: f32[64,32], index: 0, kind: input, shape index: {}]
  %s1 = inlined_call_operand.vmem [shape: f32[32,96], index: 1, kind: input, shape index: {}]
  %s2 = inlined_call_operand.vmem [shape: f32[1,96], index: 2, kind: input, shape index: {}]
  %s3 = inlined_call_operand.vmem [shape: f32[32,32], index: 3, kind: input, shape index: {}]
  %s4 = inlined_call_operand.vmem [shape: f32[1,32], index: 4, kind: input, shape index: {}]
  %s5 = inlined_call_operand.vmem [shape: f32[64,32], index: 5, kind: output, shape index: {}]
  %s6 = sld [smem:[#allocation0]]
  $region53: #{tpu_custom_call.1} parent=0
    _
  %s8 = ssub.s32 1, %s6
  %s9 = scalar_select 0, %s8, %s6
  loop: start=0, step=1, limit=4
  $region2: #{tpu_custom_call.1} parent=0 // loop_pre_header
    _
  $region3: #{tpu_custom_call.1} parent=0 // loop_header
    %s11 = sphi 0, %s15
    %p12 = scmp.ge.s32.totalorder %s11, 4
    %s21 = sphi 0, %s23
    %s24 = sphi 0, %s21
    %s25 = sphi 0, %s24
    %s41 = sphi 0, %s25
    %s45 = sphi 0, %s45
    %s47 = sphi 0, %s45
    %s48 = sphi 0, %s47
    %s62 = sphi 0, %s48
    %s66 = sphi 0, %s66
    %s68 = sphi 0, %s66
    %s69 = sphi 0, %s68
    %s83 = sphi 0, %s69
    %s87 = sphi 0, %s87
    %s89 = sphi 0, %s87
    %s90 = sphi 0, %s89
    %s104 = sphi 0, %s90
    %s108 = sphi 0, %s108
    %s110 = sphi 0, %s108
    %s111 = sphi 0, %s110
    %s125 = sphi 0, %s111
    %s131 = sphi 0, %s133
    %s134 = sphi 0, %s131
    %s135 = sphi 0, %s134
    %s151 = sphi 0, %s135
  $region4: #{tpu_custom_call.1} parent=0 // loop_header_branch
    %14 = sbr.rel (%p12) target = $region8
  $region5: #{tpu_custom_call.1} parent=0 // loop_body
    %s16 = ssub.s32 %s11, 1
    %s17 = ssub.s32 %s11, 2
    %s18 = sadd.s32 %s11, 1
    %s19 = ssub.s32 %s11, %s18
    %p20 = scmp.eq.s32.totalorder %s19, 0
    %s22 = sadd.s32 %s21, 1
    %s23 = scalar_select %p20, %s21, %s22
    %p26 = pneg %p20
    %p27 = scmp.eq.s32.totalorder %s11, 1
    %p28 = por %p26, %p27
    %p29 = scmp.ne.s32.totalorder %s21, %s24
    %p30 = scmp.eq.s32.totalorder %s11, 0
    %p31 = por %p29, %p30
    %p32 = scmp.ne.s32.totalorder %s21, %s24
    %p33 = scmp.eq.s32.totalorder %s16, 1
    %p34 = por %p32, %p33
    %p35 = scmp.ne.s32.totalorder %s24, %s25
    %p36 = scmp.eq.s32.totalorder %s16, 0
    %p37 = por %p35, %p36
    %p38 = scmp.ne.s32.totalorder %s24, %s25
    %p39 = scmp.eq.s32.totalorder %s17, 1
    %p40 = por %p38, %p39
    %p42 = scmp.ne.s32.totalorder %s25, %s41
    %p43 = scmp.eq.s32.totalorder %s17, 0
    %p44 = por %p42, %p43
    %s46 = sadd.s32 %s45, 1
    %p49 = scmp.eq.s32.totalorder %s11, 1
    %p50 = scmp.ne.s32.totalorder %s45, %s47
    %p51 = scmp.eq.s32.totalorder %s11, 0
    %p52 = por %p50, %p51
    %p53 = scmp.ne.s32.totalorder %s45, %s47
    %p54 = scmp.eq.s32.totalorder %s16, 1
    %p55 = por %p53, %p54
    %p56 = scmp.ne.s32.totalorder %s47, %s48
    %p57 = scmp.eq.s32.totalorder %s16, 0
    %p58 = por %p56, %p57
    %p59 = scmp.ne.s32.totalorder %s47, %s48
    %p60 = scmp.eq.s32.totalorder %s17, 1
    %p61 = por %p59, %p60
    %p63 = scmp.ne.s32.totalorder %s48, %s62
    %p64 = scmp.eq.s32.totalorder %s17, 0
    %p65 = por %p63, %p64
    %s67 = sadd.s32 %s66, 1
    %p70 = scmp.eq.s32.totalorder %s11, 1
    %p71 = scmp.ne.s32.totalorder %s66, %s68
    %p72 = scmp.eq.s32.totalorder %s11, 0
    %p73 = por %p71, %p72
    %p74 = scmp.ne.s32.totalorder %s66, %s68
    %p75 = scmp.eq.s32.totalorder %s16, 1
    %p76 = por %p74, %p75
    %p77 = scmp.ne.s32.totalorder %s68, %s69
    %p78 = scmp.eq.s32.totalorder %s16, 0
    %p79 = por %p77, %p78
    %p80 = scmp.ne.s32.totalorder %s68, %s69
    %p81 = scmp.eq.s32.totalorder %s17, 1
    %p82 = por %p80, %p81
    %p84 = scmp.ne.s32.totalorder %s69, %s83
    %p85 = scmp.eq.s32.totalorder %s17, 0
    %p86 = por %p84, %p85
    %s88 = sadd.s32 %s87, 1
    %p91 = scmp.eq.s32.totalorder %s11, 1
    %p92 = scmp.ne.s32.totalorder %s87, %s89
    %p93 = scmp.eq.s32.totalorder %s11, 0
    %p94 = por %p92, %p93
    %p95 = scmp.ne.s32.totalorder %s87, %s89
    %p96 = scmp.eq.s32.totalorder %s16, 1
    %p97 = por %p95, %p96
    %p98 = scmp.ne.s32.totalorder %s89, %s90
    %p99 = scmp.eq.s32.totalorder %s16, 0
    %p100 = por %p98, %p99
    %p101 = scmp.ne.s32.totalorder %s89, %s90
    %p102 = scmp.eq.s32.totalorder %s17, 1
    %p103 = por %p101, %p102
    %p105 = scmp.ne.s32.totalorder %s90, %s104
    %p106 = scmp.eq.s32.totalorder %s17, 0
    %p107 = por %p105, %p106
    %s109 = sadd.s32 %s108, 1
    %p112 = scmp.eq.s32.totalorder %s11, 1
    %p113 = scmp.ne.s32.totalorder %s108, %s110
    %p114 = scmp.eq.s32.totalorder %s11, 0
    %p115 = por %p113, %p114
    %p116 = scmp.ne.s32.totalorder %s108, %s110
    %p117 = scmp.eq.s32.totalorder %s16, 1
    %p118 = por %p116, %p117
    %p119 = scmp.ne.s32.totalorder %s110, %s111
    %p120 = scmp.eq.s32.totalorder %s16, 0
    %p121 = por %p119, %p120
    %p122 = scmp.ne.s32.totalorder %s110, %s111
    %p123 = scmp.eq.s32.totalorder %s17, 1
    %p124 = por %p122, %p123
    %p126 = scmp.ne.s32.totalorder %s111, %s125
    %p127 = scmp.eq.s32.totalorder %s17, 0
    %p128 = por %p126, %p127
    %s129 = ssub.s32 %s11, %s18
    %p130 = scmp.eq.s32.totalorder %s129, 0
    %s132 = sadd.s32 %s131, 1
    %s133 = scalar_select %p130, %s131, %s132
    %p136 = pneg %p130
    %p137 = scmp.eq.s32.totalorder %s11, 1
    %p138 = por %p136, %p137
    %p139 = scmp.ne.s32.totalorder %s131, %s134
    %p140 = scmp.eq.s32.totalorder %s11, 0
    %p141 = por %p139, %p140
    %p142 = scmp.ne.s32.totalorder %s131, %s134
    %p143 = scmp.eq.s32.totalorder %s16, 1
    %p144 = por %p142, %p143
    %p145 = scmp.ne.s32.totalorder %s134, %s135
    %p146 = scmp.eq.s32.totalorder %s16, 0
    %p147 = por %p145, %p146
    %p148 = scmp.ne.s32.totalorder %s134, %s135
    %p149 = scmp.eq.s32.totalorder %s17, 1
    %p150 = por %p148, %p149
    %p152 = scmp.ne.s32.totalorder %s135, %s151
    %p153 = scmp.eq.s32.totalorder %s17, 0
    %p154 = por %p152, %p153
    %p155 = scmp.le.s32.totalorder 1, %s11
    %p156 = scmp.lt.s32.totalorder %s11, 3
    %p157 = pnand %p155, %p156
    %p158 = pneg %p157
    // Predicated region
    $region9: #{tpu_custom_call.1} parent=5 // pred_check
      _
    $region10: #{tpu_custom_call.1} parent=5 // pred_check_branch
      %160 = sbr.rel (%p157) target = $region12
    $region11: #{tpu_custom_call.1} parent=5 // pred_region
      %s161 = ssub.s32 %s11, 1
      // Predicated region
      $region13: #{tpu_custom_call.1} parent=11 // pred_check
        %p162 = pneg %p58
      $region14: #{tpu_custom_call.1} parent=11 // pred_check_branch
        %164 = sbr.rel (%p162) target = $region16
      $region15: #{tpu_custom_call.1} parent=11 // pred_region
        _
      $region16: #{tpu_custom_call.1} parent=11 // pred_fallthru
        _
      // Predicated region
      $region17: #{tpu_custom_call.1} parent=11 // pred_check
        %p165 = pneg %p79
      $region18: #{tpu_custom_call.1} parent=11 // pred_check_branch
        %167 = sbr.rel (%p165) target = $region20
      $region19: #{tpu_custom_call.1} parent=11 // pred_region
        _
      $region20: #{tpu_custom_call.1} parent=11 // pred_fallthru
        _
      // Predicated region
      $region21: #{tpu_custom_call.1} parent=11 // pred_check
        %p168 = pneg %p100
      $region22: #{tpu_custom_call.1} parent=11 // pred_check_branch
        %170 = sbr.rel (%p168) target = $region24
      $region23: #{tpu_custom_call.1} parent=11 // pred_region
        _
      $region24: #{tpu_custom_call.1} parent=11 // pred_fallthru
        _
      // Predicated region
      $region25: #{tpu_custom_call.1} parent=11 // pred_check
        %p171 = pneg %p121
      $region26: #{tpu_custom_call.1} parent=11 // pred_check_branch
        %173 = sbr.rel (%p171) target = $region28
      $region27: #{tpu_custom_call.1} parent=11 // pred_region
        _
      $region28: #{tpu_custom_call.1} parent=11 // pred_fallthru
        _
    $region12: #{tpu_custom_call.1} parent=5 // pred_fallthru
      _
    %p174 = scmp.lt.s32.totalorder %s11, 2
    // Predicated region
    $region29: #{tpu_custom_call.1} parent=5 // pred_check
      %p175 = pneg %p174
    $region30: #{tpu_custom_call.1} parent=5 // pred_check_branch
      %177 = sbr.rel (%p175) target = $region32
    $region31: #{tpu_custom_call.1} parent=5 // pred_region
      // Predicated region
      $region33: #{tpu_custom_call.1} parent=31 // pred_check
        %p178 = pneg %p31
      $region34: #{tpu_custom_call.1} parent=31 // pred_check_branch
        %180 = sbr.rel (%p178) target = $region36
      $region35: #{tpu_custom_call.1} parent=31 // pred_region
        %s181 = smul.u32 4, %s11
        %p182 = scmp.lt.s32.totalorder %s181, 7
        %s183 = scalar_select %p182, %s181, 7
        %s184 = smul.addr %s183, 8
        %s185 = scalar_lea.vmem %s0, %s184
        %s186 = smul.u32 4, %s11
      $region36: #{tpu_custom_call.1} parent=31 // pred_fallthru
        _
    $region32: #{tpu_custom_call.1} parent=5 // pred_fallthru
      _
    %p187 = scmp.le.s32.totalorder 1, %s11
    %p188 = scmp.lt.s32.totalorder %s11, 3
    %p189 = pnand %p187, %p188
    %p190 = pneg %p189
    // Predicated region
    $region37: #{tpu_custom_call.1} parent=5 // pred_check
      _
    $region38: #{tpu_custom_call.1} parent=5 // pred_check_branch
      %192 = sbr.rel (%p189) target = $region40
    $region39: #{tpu_custom_call.1} parent=5 // pred_region
      %s193 = ssub.s32 %s11, 1
      %s194 = smul.u32 4, %s16
      %p195 = scmp.lt.s32.totalorder %s194, 7
      %s196 = scalar_select %p195, %s194, 7
      %s197 = smul.addr %s196, 8
      %s198 = scalar_lea.vmem %s0, %s197
      %p199 = pneg %p37
      %p200 = pneg %p34
      %p201 = pneg %p58
      %p202 = pneg %p55
      %p203 = pneg %p79
      %p204 = pneg %p76
      %p205 = pneg %p100
      %p206 = pneg %p97
      %p207 = pneg %p121
      %p208 = pneg %p118
      %p209 = pneg %p147
      %p210 = pneg %p144
      %s211 = smul.u32 4, %s16
      %p212 = scmp.lt.s32.totalorder %s211, 7
      %s213 = scalar_select %p212, %s211, 7
      %s214 = smul.addr %s213, 8
      %s215 = scalar_lea.vmem %s5, %s214
      %s216 = smul.u32 4, %s16
      %p217 = scmp.lt.s32.totalorder %s216, 7
      %s218 = scalar_select %p217, %s216, 7
      %s219 = smul.addr %s218, 8
      %s220 = scalar_lea.vmem %s0, %s219
      %s221 = smul.u32 4, %s16
      %s222 = smul.u32 4, %s16
      %p223 = scmp.lt.s32.totalorder %s222, 7
      %s224 = scalar_select %p223, %s222, 7
      %s225 = smul.addr %s224, 8
      %s226 = scalar_lea.vmem %s5, %s225
      %s227 = smul.u32 4, %s16
      %v228 = vld [vmem:[%s220] sm:$0xff]
      %v229 = vld [vmem:[%s220 + $0x8] sm:$0xff]
      %v230 = vld [vmem:[%s220 + $0x10] sm:$0xff]
      %v231 = vld [vmem:[%s220 + $0x18] sm:$0xff]
      %v232 = vld [vmem:[%s1] sm:$0xff]
      %v233 = vld [vmem:[%s1 + $0x8] sm:$0xff]
      %v234 = vld [vmem:[%s1 + $0x10] sm:$0xff]
      %v235 = vld [vmem:[%s1 + $0x18] sm:$0xff]
      %v236 = vld [vmem:[%s2] sm:$0x1]
      %v238 = vlaneseq
      %v239 = vshrl.u32 %v238, 7
      %v240 = vsub.s32 0, %v239
      %v241 = vrot.slane %v236, %v240
      %vm243 = vcmask 261120
      %v245 = vsel %vm243, %v228, 0
      %v248 = vsel %vm243, %v229, 0
      %v251 = vsel %vm243, %v230, 0
      %v254 = vsel %vm243, %v231, 0
      %256 = vmatprep.subr.mxu0 0.0
      %257 = vmatpush1.msra.mxu0 %v232
      %258 = vmatprep.subr.mxu0 0.0
      %259 = vmatpush1.msra.mxu0 %v233
      %260 = vmatprep.subr.mxu0 0.0
      %261 = vmatpush1.msra.mxu0 %v234
      %262 = vmatprep.subr.mxu0 0.0
      %263 = vmatpush1.msra.mxu0 %v235
      %264 = vmatprep.subr.mxu0 0.0
      %265 = vmatpush1.msra.mxu0 0.0
      %266 = vmatprep.subr.mxu0 0.0
      %267 = vmatpush1.msra.mxu0 0.0
      %268 = vmatprep.subr.mxu0 0.0
      %269 = vmatpush1.msra.mxu0 0.0
      %270 = vmatprep.subr.mxu0 0.0
      %271 = vmatpush1.msra.mxu0 0.0
      %272 = vmatprep.subr.mxu0 0.0
      %273 = vmatpush1.msra.mxu0 0.0
      %274 = vmatprep.subr.mxu0 0.0
      %275 = vmatpush1.msra.mxu0 0.0
      %276 = vmatprep.subr.mxu0 0.0
      %277 = vmatpush1.msra.mxu0 0.0
      %278 = vmatprep.subr.mxu0 0.0
      %279 = vmatpush1.msra.mxu0 0.0
      %280 = vmatprep.subr.mxu0 0.0
      %281 = vmatpush1.msra.mxu0 0.0
      %282 = vmatprep.subr.mxu0 0.0
      %283 = vmatpush1.msra.mxu0 0.0
      %284 = vmatprep.subr.mxu0 0.0
      %285 = vmatpush1.msra.mxu0 0.0
      %286 = vmatprep.subr.mxu0 0.0
      %287 = vmatpush1.msra.mxu0 0.0
      %288 = vmatprep.subr.mxu0 0.0
      %289 = vmatpush1.msra.mxu0 0.0
      %290 = vmatprep.subr.mxu0 0.0
      %291 = vmatpush1.msra.mxu0 0.0
      %292 = vmatprep.subr.mxu0 0.0
      %293 = vmatpush1.msra.mxu0 0.0
      %294 = vmatprep.subr.mxu0 0.0
      %295 = vmatpush1.msra.mxu0 0.0
      %296 = vmatprep.subr.mxu0 0.0
      %297 = vmatpush1.msra.mxu0 0.0
      %298 = vmatprep.subr.mxu0 0.0
      %299 = vmatpush1.msra.mxu0 0.0
      %300 = vmatprep.subr.mxu0 0.0
      %301 = vmatpush1.msra.mxu0 0.0
      %302 = vmatprep.subr.mxu0 0.0
      %303 = vmatpush1.msra.mxu0 0.0
      %304 = vmatprep.subr.mxu0 0.0
      %305 = vmatpush1.msra.mxu0 0.0
      %306 = vmatprep.subr.mxu0 0.0
      %307 = vmatpush1.msra.mxu0 0.0
      %308 = vmatprep.subr.mxu0 0.0
      %309 = vmatpush1.msra.mxu0 0.0
      %310 = vmatprep.subr.mxu0 0.0
      %311 = vmatpush1.msra.mxu0 0.0
      %312 = vmatprep.subr.mxu0 0.0
      %313 = vmatpush1.msra.mxu0 0.0
      %314 = vmatprep.subr.mxu0 0.0
      %315 = vmatpush1.msra.mxu0 0.0
      %316 = vmatprep.subr.mxu0 0.0
      %317 = vmatpush1.msra.mxu0 0.0
      %318 = vmatprep.subr.mxu0 0.0
      %319 = vmatpush1.msra.mxu0 0.0
      %320 = vmatprep.mubr.f32.mxu0 0.0
      %321 = vmatmul.mubr.f32.gmra.mrb[0].mxu0 %v245
      %v322 = vpop.f32.mrb[0].mxu0
      %v323 = vadd.f32 %v241, %v322
      %v324 = vpop.f32.mrb[0].mxu0
      %325 = vmatprep.mubr.f32.mxu0 0.0
      %326 = vmatmul.mubr.f32.gmra.mrb[0].mxu0 %v248
      %v327 = vpop.f32.mrb[0].mxu0
      %v328 = vadd.f32 %v241, %v327
      %v329 = vpop.f32.mrb[0].mxu0
      %330 = vmatprep.mubr.f32.mxu0 0.0
      %331 = vmatmul.mubr.f32.gmra.mrb[0].mxu0 %v251
      %v332 = vpop.f32.mrb[0].mxu0
      %v333 = vadd.f32 %v241, %v332
      %v334 = vpop.f32.mrb[0].mxu0
      %335 = vmatprep.mubr.f32.mxu0 0.0
      %336 = vmatmul.mubr.f32.gmra.mrb[0].mxu0 %v254
      %v337 = vpop.f32.mrb[0].mxu0
      %v338 = vadd.f32 %v241, %v337
      %v339 = vpop.f32.mrb[0].mxu0
      %340 = vdwg.mxu0
      %342 = vrot.lane.b32.xlu0 %v323, 96
      %v343 = vpop.permute.xlu0 %342
      %vm344 = vcmask 64512
      %v345 = vsel %vm344, %v323, 0
      %v347 = vsel %vm344, %v343, 0
      %349 = vmatprep.subr.mxu0 0.0
      %350 = vmatpush1.xpose.msra.mxu0 %v347
      %351 = vmatprep.subr.mxu0 0.0
      %352 = vmatpush1.xpose.msra.mxu0 0.0
      %353 = vmatprep.subr.mxu0 0.0
      %354 = vmatpush1.xpose.msra.mxu0 0.0
      %355 = vmatprep.subr.mxu0 0.0
      %356 = vmatpush1.xpose.msra.mxu0 0.0
      %357 = vmatprep.subr.mxu0 0.0
      %358 = vmatpush1.xpose.msra.mxu0 0.0
      %359 = vmatprep.subr.mxu0 0.0
      %360 = vmatpush1.xpose.msra.mxu0 0.0
      %361 = vmatprep.subr.mxu0 0.0
      %362 = vmatpush1.xpose.msra.mxu0 0.0
      %363 = vmatprep.subr.mxu0 0.0
      %364 = vmatpush1.xpose.msra.mxu0 0.0
      %365 = vmatprep.subr.mxu0 0.0
      %366 = vmatpush1.xpose.msra.mxu0 0.0
      %367 = vmatprep.subr.mxu0 0.0
      %368 = vmatpush1.xpose.msra.mxu0 0.0
      %369 = vmatprep.subr.mxu0 0.0
      %370 = vmatpush1.xpose.msra.mxu0 0.0
      %371 = vmatprep.subr.mxu0 0.0
      %372 = vmatpush1.xpose.msra.mxu0 0.0
      %373 = vmatprep.subr.mxu0 0.0
      %374 = vmatpush1.xpose.msra.mxu0 0.0
      %375 = vmatprep.subr.mxu0 0.0
      %376 = vmatpush1.xpose.msra.mxu0 0.0
      %377 = vmatprep.subr.mxu0 0.0
      %378 = vmatpush1.xpose.msra.mxu0 0.0
      %379 = vmatprep.subr.mxu0 0.0
      %380 = vmatpush1.xpose.msra.mxu0 0.0
      %381 = vmatprep.subr.mxu0 0.0
      %382 = vmatpush1.xpose.msra.mxu0 0.0
      %383 = vmatprep.subr.mxu0 0.0
      %384 = vmatpush1.xpose.msra.mxu0 0.0
      %385 = vmatprep.subr.mxu0 0.0
      %386 = vmatpush1.xpose.msra.mxu0 0.0
      %387 = vmatprep.subr.mxu0 0.0
      %388 = vmatpush1.xpose.msra.mxu0 0.0
      %389 = vmatprep.subr.mxu0 0.0
      %390 = vmatpush1.xpose.msra.mxu0 0.0
      %391 = vmatprep.subr.mxu0 0.0
      %392 = vmatpush1.xpose.msra.mxu0 0.0
      %393 = vmatprep.subr.mxu0 0.0
      %394 = vmatpush1.xpose.msra.mxu0 0.0
      %395 = vmatprep.subr.mxu0 0.0
      %396 = vmatpush1.xpose.msra.mxu0 0.0
      %397 = vmatprep.subr.mxu0 0.0
      %398 = vmatpush1.xpose.msra.mxu0 0.0
      %399 = vmatprep.subr.mxu0 0.0
      %400 = vmatpush1.xpose.msra.mxu0 0.0
      %401 = vmatprep.subr.mxu0 0.0
      %402 = vmatpush1.xpose.msra.mxu0 0.0
      %403 = vmatprep.subr.mxu0 0.0
      %404 = vmatpush1.xpose.msra.mxu0 0.0
      %405 = vmatprep.subr.mxu0 0.0
      %406 = vmatpush1.xpose.msra.mxu0 0.0
      %407 = vmatprep.subr.mxu0 0.0
      %408 = vmatpush1.xpose.msra.mxu0 0.0
      %409 = vmatprep.subr.mxu0 0.0
      %410 = vmatpush1.xpose.msra.mxu0 0.0
      %411 = vmatprep.subr.mxu0 0.0
      %412 = vmatpush1.xpose.msra.mxu0 0.0
      %413 = vmatprep.mubr.f32.mxu0 0.0
      %414 = vmatmul.mubr.f32.gmra.mrb[0].mxu0 %v345
      %v415 = vpop.f32.mrb[0].mxu0
      %v416 = vadd.f32 0.0, %v415
      %v417 = vpop.f32.mrb[0].mxu0
      %418 = vdwg.mxu0
      %420 = vrot.lane.b32.xlu0 %v328, 96
      %v421 = vpop.permute.xlu0 %420
      %v422 = vsel %vm344, %v328, 0
      %v424 = vsel %vm344, %v421, 0
      %426 = vmatprep.subr.mxu0 0.0
      %427 = vmatpush1.xpose.msra.mxu0 %v424
      %428 = vmatprep.subr.mxu0 0.0
      %429 = vmatpush1.xpose.msra.mxu0 0.0
      %430 = vmatprep.subr.mxu0 0.0
      %431 = vmatpush1.xpose.msra.mxu0 0.0
      %432 = vmatprep.subr.mxu0 0.0
      %433 = vmatpush1.xpose.msra.mxu0 0.0
      %434 = vmatprep.subr.mxu0 0.0
      %435 = vmatpush1.xpose.msra.mxu0 0.0
      %436 = vmatprep.subr.mxu0 0.0
      %437 = vmatpush1.xpose.msra.mxu0 0.0
      %438 = vmatprep.subr.mxu0 0.0
      %439 = vmatpush1.xpose.msra.mxu0 0.0
      %440 = vmatprep.subr.mxu0 0.0
      %441 = vmatpush1.xpose.msra.mxu0 0.0
      %442 = vmatprep.subr.mxu0 0.0
      %443 = vmatpush1.xpose.msra.mxu0 0.0
      %444 = vmatprep.subr.mxu0 0.0
      %445 = vmatpush1.xpose.msra.mxu0 0.0
      %446 = vmatprep.subr.mxu0 0.0
      %447 = vmatpush1.xpose.msra.mxu0 0.0
      %448 = vmatprep.subr.mxu0 0.0
      %449 = vmatpush1.xpose.msra.mxu0 0.0
      %450 = vmatprep.subr.mxu0 0.0
      %451 = vmatpush1.xpose.msra.mxu0 0.0
      %452 = vmatprep.subr.mxu0 0.0
      %453 = vmatpush1.xpose.msra.mxu0 0.0
      %454 = vmatprep.subr.mxu0 0.0
      %455 = vmatpush1.xpose.msra.mxu0 0.0
      %456 = vmatprep.subr.mxu0 0.0
      %457 = vmatpush1.xpose.msra.mxu0 0.0
      %458 = vmatprep.subr.mxu0 0.0
      %459 = vmatpush1.xpose.msra.mxu0 0.0
      %460 = vmatprep.subr.mxu0 0.0
      %461 = vmatpush1.xpose.msra.mxu0 0.0
      %462 = vmatprep.subr.mxu0 0.0
      %463 = vmatpush1.xpose.msra.mxu0 0.0
      %464 = vmatprep.subr.mxu0 0.0
      %465 = vmatpush1.xpose.msra.mxu0 0.0
      %466 = vmatprep.subr.mxu0 0.0
      %467 = vmatpush1.xpose.msra.mxu0 0.0
      %468 = vmatprep.subr.mxu0 0.0
      %469 = vmatpush1.xpose.msra.mxu0 0.0
      %470 = vmatprep.subr.mxu0 0.0
      %471 = vmatpush1.xpose.msra.mxu0 0.0
      %472 = vmatprep.subr.mxu0 0.0
      %473 = vmatpush1.xpose.msra.mxu0 0.0
      %474 = vmatprep.subr.mxu0 0.0
      %475 = vmatpush1.xpose.msra.mxu0 0.0
      %476 = vmatprep.subr.mxu0 0.0
      %477 = vmatpush1.xpose.msra.mxu0 0.0
      %478 = vmatprep.subr.mxu0 0.0
      %479 = vmatpush1.xpose.msra.mxu0 0.0
      %480 = vmatprep.subr.mxu0 0.0
      %481 = vmatpush1.xpose.msra.mxu0 0.0
      %482 = vmatprep.subr.mxu0 0.0
      %483 = vmatpush1.xpose.msra.mxu0 0.0
      %484 = vmatprep.subr.mxu0 0.0
      %485 = vmatpush1.xpose.msra.mxu0 0.0
      %486 = vmatprep.subr.mxu0 0.0
      %487 = vmatpush1.xpose.msra.mxu0 0.0
      %488 = vmatprep.subr.mxu0 0.0
      %489 = vmatpush1.xpose.msra.mxu0 0.0
      %490 = vmatprep.mubr.f32.mxu0 0.0
      %491 = vmatmul.mubr.f32.gmra.mrb[0].mxu0 %v422
      %v492 = vpop.f32.mrb[0].mxu0
      %v493 = vadd.f32 0.0, %v492
      %v494 = vpop.f32.mrb[0].mxu0
      %495 = vdwg.mxu0
      %497 = vrot.lane.b32.xlu0 %v333, 96
      %v498 = vpop.permute.xlu0 %497
      %v499 = vsel %vm344, %v333, 0
      %v501 = vsel %vm344, %v498, 0
      %503 = vmatprep.subr.mxu0 0.0
      %504 = vmatpush1.xpose.msra.mxu0 %v501
      %505 = vmatprep.subr.mxu0 0.0
      %506 = vmatpush1.xpose.msra.mxu0 0.0
      %507 = vmatprep.subr.mxu0 0.0
      %508 = vmatpush1.xpose.msra.mxu0 0.0
      %509 = vmatprep.subr.mxu0 0.0
      %510 = vmatpush1.xpose.msra.mxu0 0.0
      %511 = vmatprep.subr.mxu0 0.0
      %512 = vmatpush1.xpose.msra.mxu0 0.0
      %513 = vmatprep.subr.mxu0 0.0
      %514 = vmatpush1.xpose.msra.mxu0 0.0
      %515 = vmatprep.subr.mxu0 0.0
      %516 = vmatpush1.xpose.msra.mxu0 0.0
      %517 = vmatprep.subr.mxu0 0.0
      %518 = vmatpush1.xpose.msra.mxu0 0.0
      %519 = vmatprep.subr.mxu0 0.0
      %520 = vmatpush1.xpose.msra.mxu0 0.0
      %521 = vmatprep.subr.mxu0 0.0
      %522 = vmatpush1.xpose.msra.mxu0 0.0
      %523 = vmatprep.subr.mxu0 0.0
      %524 = vmatpush1.xpose.msra.mxu0 0.0
      %525 = vmatprep.subr.mxu0 0.0
      %526 = vmatpush1.xpose.msra.mxu0 0.0
      %527 = vmatprep.subr.mxu0 0.0
      %528 = vmatpush1.xpose.msra.mxu0 0.0
      %529 = vmatprep.subr.mxu0 0.0
      %530 = vmatpush1.xpose.msra.mxu0 0.0
      %531 = vmatprep.subr.mxu0 0.0
      %532 = vmatpush1.xpose.msra.mxu0 0.0
      %533 = vmatprep.subr.mxu0 0.0
      %534 = vmatpush1.xpose.msra.mxu0 0.0
      %535 = vmatprep.subr.mxu0 0.0
      %536 = vmatpush1.xpose.msra.mxu0 0.0
      %537 = vmatprep.subr.mxu0 0.0
      %538 = vmatpush1.xpose.msra.mxu0 0.0
      %539 = vmatprep.subr.mxu0 0.0
      %540 = vmatpush1.xpose.msra.mxu0 0.0
      %541 = vmatprep.subr.mxu0 0.0
      %542 = vmatpush1.xpose.msra.mxu0 0.0
      %543 = vmatprep.subr.mxu0 0.0
      %544 = vmatpush1.xpose.msra.mxu0 0.0
      %545 = vmatprep.subr.mxu0 0.0
      %546 = vmatpush1.xpose.msra.mxu0 0.0
      %547 = vmatprep.subr.mxu0 0.0
      %548 = vmatpush1.xpose.msra.mxu0 0.0
      %549 = vmatprep.subr.mxu0 0.0
      %550 = vmatpush1.xpose.msra.mxu0 0.0
      %551 = vmatprep.subr.mxu0 0.0
      %552 = vmatpush1.xpose.msra.mxu0 0.0
      %553 = vmatprep.subr.mxu0 0.0
      %554 = vmatpush1.xpose.msra.mxu0 0.0
      %555 = vmatprep.subr.mxu0 0.0
      %556 = vmatpush1.xpose.msra.mxu0 0.0
      %557 = vmatprep.subr.mxu0 0.0
      %558 = vmatpush1.xpose.msra.mxu0 0.0
      %559 = vmatprep.subr.mxu0 0.0
      %560 = vmatpush1.xpose.msra.mxu0 0.0
      %561 = vmatprep.subr.mxu0 0.0
      %562 = vmatpush1.xpose.msra.mxu0 0.0
      %563 = vmatprep.subr.mxu0 0.0
      %564 = vmatpush1.xpose.msra.mxu0 0.0
      %565 = vmatprep.subr.mxu0 0.0
      %566 = vmatpush1.xpose.msra.mxu0 0.0
      %567 = vmatprep.mubr.f32.mxu0 0.0
      %568 = vmatmul.mubr.f32.gmra.mrb[0].mxu0 %v499
      %v569 = vpop.f32.mrb[0].mxu0
      %v570 = vadd.f32 0.0, %v569
      %v571 = vpop.f32.mrb[0].mxu0
      %572 = vdwg.mxu0
      %574 = vrot.lane.b32.xlu0 %v338, 96
      %v575 = vpop.permute.xlu0 %574
      %v576 = vsel %vm344, %v338, 0
      %v578 = vsel %vm344, %v575, 0
      %580 = vmatprep.subr.mxu0 0.0
      %581 = vmatpush1.xpose.msra.mxu0 %v578
      %582 = vmatprep.subr.mxu0 0.0
      %583 = vmatpush1.xpose.msra.mxu0 0.0
      %584 = vmatprep.subr.mxu0 0.0
      %585 = vmatpush1.xpose.msra.mxu0 0.0
      %586 = vmatprep.subr.mxu0 0.0
      %587 = vmatpush1.xpose.msra.mxu0 0.0
      %588 = vmatprep.subr.mxu0 0.0
      %589 = vmatpush1.xpose.msra.mxu0 0.0
      %590 = vmatprep.subr.mxu0 0.0
      %591 = vmatpush1.xpose.msra.mxu0 0.0
      %592 = vmatprep.subr.mxu0 0.0
      %593 = vmatpush1.xpose.msra.mxu0 0.0
      %594 = vmatprep.subr.mxu0 0.0
      %595 = vmatpush1.xpose.msra.mxu0 0.0
      %596 = vmatprep.subr.mxu0 0.0
      %597 = vmatpush1.xpose.msra.mxu0 0.0
      %598 = vmatprep.subr.mxu0 0.0
      %599 = vmatpush1.xpose.msra.mxu0 0.0
      %600 = vmatprep.subr.mxu0 0.0
      %601 = vmatpush1.xpose.msra.mxu0 0.0
      %602 = vmatprep.subr.mxu0 0.0
      %603 = vmatpush1.xpose.msra.mxu0 0.0
      %604 = vmatprep.subr.mxu0 0.0
      %605 = vmatpush1.xpose.msra.mxu0 0.0
      %606 = vmatprep.subr.mxu0 0.0
      %607 = vmatpush1.xpose.msra.mxu0 0.0
      %608 = vmatprep.subr.mxu0 0.0
      %609 = vmatpush1.xpose.msra.mxu0 0.0
      %610 = vmatprep.subr.mxu0 0.0
      %611 = vmatpush1.xpose.msra.mxu0 0.0
      %612 = vmatprep.subr.mxu0 0.0
      %613 = vmatpush1.xpose.msra.mxu0 0.0
      %614 = vmatprep.subr.mxu0 0.0
      %615 = vmatpush1.xpose.msra.mxu0 0.0
      %616 = vmatprep.subr.mxu0 0.0
      %617 = vmatpush1.xpose.msra.mxu0 0.0
      %618 = vmatprep.subr.mxu0 0.0
      %619 = vmatpush1.xpose.msra.mxu0 0.0
      %620 = vmatprep.subr.mxu0 0.0
      %621 = vmatpush1.xpose.msra.mxu0 0.0
      %622 = vmatprep.subr.mxu0 0.0
      %623 = vmatpush1.xpose.msra.mxu0 0.0
      %624 = vmatprep.subr.mxu0 0.0
      %625 = vmatpush1.xpose.msra.mxu0 0.0
      %626 = vmatprep.subr.mxu0 0.0
      %627 = vmatpush1.xpose.msra.mxu0 0.0
      %628 = vmatprep.subr.mxu0 0.0
      %629 = vmatpush1.xpose.msra.mxu0 0.0
      %630 = vmatprep.subr.mxu0 0.0
      %631 = vmatpush1.xpose.msra.mxu0 0.0
      %632 = vmatprep.subr.mxu0 0.0
      %633 = vmatpush1.xpose.msra.mxu0 0.0
      %634 = vmatprep.subr.mxu0 0.0
      %635 = vmatpush1.xpose.msra.mxu0 0.0
      %636 = vmatprep.subr.mxu0 0.0
      %637 = vmatpush1.xpose.msra.mxu0 0.0
      %638 = vmatprep.subr.mxu0 0.0
      %639 = vmatpush1.xpose.msra.mxu0 0.0
      %640 = vmatprep.subr.mxu0 0.0
      %641 = vmatpush1.xpose.msra.mxu0 0.0
      %642 = vmatprep.subr.mxu0 0.0
      %643 = vmatpush1.xpose.msra.mxu0 0.0
      %644 = vmatprep.mubr.f32.mxu0 0.0
      %645 = vmatmul.mubr.f32.gmra.mrb[0].mxu0 %v576
      %v646 = vpop.f32.mrb[0].mxu0
      %v647 = vadd.f32 0.0, %v646
      %v648 = vpop.f32.mrb[0].mxu0
      %649 = vdwg.mxu0
      %v650 = vsel %vm344, %v416, -inf
      %651 = vmax.xlane.f32.xlu0 %v650
      %v652 = vpop.xlane.xlu0 %651
      %v653 = vsel %vm344, %v493, -inf
      %654 = vmax.xlane.f32.xlu0 %v653
      %v655 = vpop.xlane.xlu0 %654
      %v656 = vsel %vm344, %v570, -inf
      %657 = vmax.xlane.f32.xlu0 %v656
      %v658 = vpop.xlane.xlu0 %657
      %v659 = vsel %vm344, %v647, -inf
      %660 = vmax.xlane.f32.xlu0 %v659
      %v661 = vpop.xlane.xlu0 %660
      %v662 = vsub.f32 %v416, %v652
      %v663 = vsub.f32 %v493, %v655
      %v664 = vsub.f32 %v570, %v658
      %v665 = vsub.f32 %v647, %v661
      %v666 = vmul.f32 %v662, 1.442695
      %v667 = vpow.pop %v666
      %v668 = vmul.f32 %v663, 1.442695
      %v669 = vpow.pop %v668
      %v670 = vmul.f32 %v664, 1.442695
      %v671 = vpow.pop %v670
      %v672 = vmul.f32 %v665, 1.442695
      %v673 = vpow.pop %v672
      %v674 = vsel %vm344, %v667, 0.0
      %675 = vadd.xlane.f32.xlu0 %v674
      %v676 = vpop.xlane.xlu0 %675
      %v677 = vsel %vm344, %v669, 0.0
      %678 = vadd.xlane.f32.xlu0 %v677
      %v679 = vpop.xlane.xlu0 %678
      %v680 = vsel %vm344, %v671, 0.0
      %681 = vadd.xlane.f32.xlu0 %v680
      %v682 = vpop.xlane.xlu0 %681
      %v683 = vsel %vm344, %v673, 0.0
      %684 = vadd.xlane.f32.xlu0 %v683
      %v685 = vpop.xlane.xlu0 %684
      %v686 = vrcp.pop %v676
      %v687 = vrcp.pop %v679
      %v688 = vrcp.pop %v682
      %v689 = vrcp.pop %v685
      %v690 = vmul.f32 %v667, %v686
      %v691 = vmul.f32 %v669, %v687
      %v692 = vmul.f32 %v671, %v688
      %v693 = vmul.f32 %v673, %v689
      %694 = vrot.lane.b32.xlu0 %v323, 64
      %v695 = vpop.permute.xlu0 %694
      %v698 = vsel %vm344, %v690, 0
      %700 = vmatprep.subr.mxu0 0.0
      %701 = vmatpush1.msra.mxu0 %v695
      %702 = vmatprep.subr.mxu0 0.0
      %703 = vmatpush1.msra.mxu0 0.0
      %704 = vmatprep.subr.mxu0 0.0
      %705 = vmatpush1.msra.mxu0 0.0
      %706 = vmatprep.subr.mxu0 0.0
      %707 = vmatpush1.msra.mxu0 0.0
      %708 = vmatprep.subr.mxu0 0.0
      %709 = vmatpush1.msra.mxu0 0.0
      %710 = vmatprep.subr.mxu0 0.0
      %711 = vmatpush1.msra.mxu0 0.0
      %712 = vmatprep.subr.mxu0 0.0
      %713 = vmatpush1.msra.mxu0 0.0
      %714 = vmatprep.subr.mxu0 0.0
      %715 = vmatpush1.msra.mxu0 0.0
      %716 = vmatprep.subr.mxu0 0.0
      %717 = vmatpush1.msra.mxu0 0.0
      %718 = vmatprep.subr.mxu0 0.0
      %719 = vmatpush1.msra.mxu0 0.0
      %720 = vmatprep.subr.mxu0 0.0
      %721 = vmatpush1.msra.mxu0 0.0
      %722 = vmatprep.subr.mxu0 0.0
      %723 = vmatpush1.msra.mxu0 0.0
      %724 = vmatprep.subr.mxu0 0.0
      %725 = vmatpush1.msra.mxu0 0.0
      %726 = vmatprep.subr.mxu0 0.0
      %727 = vmatpush1.msra.mxu0 0.0
      %728 = vmatprep.subr.mxu0 0.0
      %729 = vmatpush1.msra.mxu0 0.0
      %730 = vmatprep.subr.mxu0 0.0
      %731 = vmatpush1.msra.mxu0 0.0
      %732 = vmatprep.subr.mxu0 0.0
      %733 = vmatpush1.msra.mxu0 0.0
      %734 = vmatprep.subr.mxu0 0.0
      %735 = vmatpush1.msra.mxu0 0.0
      %736 = vmatprep.subr.mxu0 0.0
      %737 = vmatpush1.msra.mxu0 0.0
      %738 = vmatprep.subr.mxu0 0.0
      %739 = vmatpush1.msra.mxu0 0.0
      %740 = vmatprep.subr.mxu0 0.0
      %741 = vmatpush1.msra.mxu0 0.0
      %742 = vmatprep.subr.mxu0 0.0
      %743 = vmatpush1.msra.mxu0 0.0
      %744 = vmatprep.subr.mxu0 0.0
      %745 = vmatpush1.msra.mxu0 0.0
      %746 = vmatprep.subr.mxu0 0.0
      %747 = vmatpush1.msra.mxu0 0.0
      %748 = vmatprep.subr.mxu0 0.0
      %749 = vmatpush1.msra.mxu0 0.0
      %750 = vmatprep.subr.mxu0 0.0
      %751 = vmatpush1.msra.mxu0 0.0
      %752 = vmatprep.subr.mxu0 0.0
      %753 = vmatpush1.msra.mxu0 0.0
      %754 = vmatprep.subr.mxu0 0.0
      %755 = vmatpush1.msra.mxu0 0.0
      %756 = vmatprep.subr.mxu0 0.0
      %757 = vmatpush1.msra.mxu0 0.0
      %758 = vmatprep.subr.mxu0 0.0
      %759 = vmatpush1.msra.mxu0 0.0
      %760 = vmatprep.subr.mxu0 0.0
      %761 = vmatpush1.msra.mxu0 0.0
      %762 = vmatprep.subr.mxu0 0.0
      %763 = vmatpush1.msra.mxu0 0.0
      %764 = vmatprep.mubr.f32.mxu0 0.0
      %765 = vmatmul.mubr.f32.gmra.mrb[0].mxu0 %v698
      %v766 = vpop.f32.mrb[0].mxu0
      %v767 = vadd.f32 0.0, %v766
      %v768 = vpop.f32.mrb[0].mxu0
      %769 = vdwg.mxu0
      %770 = vrot.lane.b32.xlu0 %v328, 64
      %v771 = vpop.permute.xlu0 %770
      %v774 = vsel %vm344, %v691, 0
      %776 = vmatprep.subr.mxu0 0.0
      %777 = vmatpush1.msra.mxu0 %v771
      %778 = vmatprep.subr.mxu0 0.0
      %779 = vmatpush1.msra.mxu0 0.0
      %780 = vmatprep.subr.mxu0 0.0
      %781 = vmatpush1.msra.mxu0 0.0
      %782 = vmatprep.subr.mxu0 0.0
      %783 = vmatpush1.msra.mxu0 0.0
      %784 = vmatprep.subr.mxu0 0.0
      %785 = vmatpush1.msra.mxu0 0.0
      %786 = vmatprep.subr.mxu0 0.0
      %787 = vmatpush1.msra.mxu0 0.0
      %788 = vmatprep.subr.mxu0 0.0
      %789 = vmatpush1.msra.mxu0 0.0
      %790 = vmatprep.subr.mxu0 0.0
      %791 = vmatpush1.msra.mxu0 0.0
      %792 = vmatprep.subr.mxu0 0.0
      %793 = vmatpush1.msra.mxu0 0.0
      %794 = vmatprep.subr.mxu0 0.0
      %795 = vmatpush1.msra.mxu0 0.0
      %796 = vmatprep.subr.mxu0 0.0
      %797 = vmatpush1.msra.mxu0 0.0
      %798 = vmatprep.subr.mxu0 0.0
      %799 = vmatpush1.msra.mxu0 0.0
      %800 = vmatprep.subr.mxu0 0.0
      %801 = vmatpush1.msra.mxu0 0.0
      %802 = vmatprep.subr.mxu0 0.0
      %803 = vmatpush1.msra.mxu0 0.0
      %804 = vmatprep.subr.mxu0 0.0
      %805 = vmatpush1.msra.mxu0 0.0
      %806 = vmatprep.subr.mxu0 0.0
      %807 = vmatpush1.msra.mxu0 0.0
      %808 = vmatprep.subr.mxu0 0.0
      %809 = vmatpush1.msra.mxu0 0.0
      %810 = vmatprep.subr.mxu0 0.0
      %811 = vmatpush1.msra.mxu0 0.0
      %812 = vmatprep.subr.mxu0 0.0
      %813 = vmatpush1.msra.mxu0 0.0
      %814 = vmatprep.subr.mxu0 0.0
      %815 = vmatpush1.msra.mxu0 0.0
      %816 = vmatprep.subr.mxu0 0.0
      %817 = vmatpush1.msra.mxu0 0.0
      %818 = vmatprep.subr.mxu0 0.0
      %819 = vmatpush1.msra.mxu0 0.0
      %820 = vmatprep.subr.mxu0 0.0
      %821 = vmatpush1.msra.mxu0 0.0
      %822 = vmatprep.subr.mxu0 0.0
      %823 = vmatpush1.msra.mxu0 0.0
      %824 = vmatprep.subr.mxu0 0.0
      %825 = vmatpush1.msra.mxu0 0.0
      %826 = vmatprep.subr.mxu0 0.0
      %827 = vmatpush1.msra.mxu0 0.0
      %828 = vmatprep.subr.mxu0 0.0
      %829 = vmatpush1.msra.mxu0 0.0
      %830 = vmatprep.subr.mxu0 0.0
      %831 = vmatpush1.msra.mxu0 0.0
      %832 = vmatprep.subr.mxu0 0.0
      %833 = vmatpush1.msra.mxu0 0.0
      %834 = vmatprep.subr.mxu0 0.0
      %835 = vmatpush1.msra.mxu0 0.0
      %836 = vmatprep.subr.mxu0 0.0
      %837 = vmatpush1.msra.mxu0 0.0
      %838 = vmatprep.subr.mxu0 0.0
      %839 = vmatpush1.msra.mxu0 0.0
      %840 = vmatprep.mubr.f32.mxu0 0.0
      %841 = vmatmul.mubr.f32.gmra.mrb[0].mxu0 %v774
      %v842 = vpop.f32.mrb[0].mxu0
      %v843 = vadd.f32 0.0, %v842
      %v844 = vpop.f32.mrb[0].mxu0
      %845 = vdwg.mxu0
      %846 = vrot.lane.b32.xlu0 %v333, 64
      %v847 = vpop.permute.xlu0 %846
      %v850 = vsel %vm344, %v692, 0
      %852 = vmatprep.subr.mxu0 0.0
      %853 = vmatpush1.msra.mxu0 %v847
      %854 = vmatprep.subr.mxu0 0.0
      %855 = vmatpush1.msra.mxu0 0.0
      %856 = vmatprep.subr.mxu0 0.0
      %857 = vmatpush1.msra.mxu0 0.0
      %858 = vmatprep.subr.mxu0 0.0
      %859 = vmatpush1.msra.mxu0 0.0
      %860 = vmatprep.subr.mxu0 0.0
      %861 = vmatpush1.msra.mxu0 0.0
      %862 = vmatprep.subr.mxu0 0.0
      %863 = vmatpush1.msra.mxu0 0.0
      %864 = vmatprep.subr.mxu0 0.0
      %865 = vmatpush1.msra.mxu0 0.0
      %866 = vmatprep.subr.mxu0 0.0
      %867 = vmatpush1.msra.mxu0 0.0
      %868 = vmatprep.subr.mxu0 0.0
      %869 = vmatpush1.msra.mxu0 0.0
      %870 = vmatprep.subr.mxu0 0.0
      %871 = vmatpush1.msra.mxu0 0.0
      %872 = vmatprep.subr.mxu0 0.0
      %873 = vmatpush1.msra.mxu0 0.0
      %874 = vmatprep.subr.mxu0 0.0
      %875 = vmatpush1.msra.mxu0 0.0
      %876 = vmatprep.subr.mxu0 0.0
      %877 = vmatpush1.msra.mxu0 0.0
      %878 = vmatprep.subr.mxu0 0.0
      %879 = vmatpush1.msra.mxu0 0.0
      %880 = vmatprep.subr.mxu0 0.0
      %881 = vmatpush1.msra.mxu0 0.0
      %882 = vmatprep.subr.mxu0 0.0
      %883 = vmatpush1.msra.mxu0 0.0
      %884 = vmatprep.subr.mxu0 0.0
      %885 = vmatpush1.msra.mxu0 0.0
      %886 = vmatprep.subr.mxu0 0.0
      %887 = vmatpush1.msra.mxu0 0.0
      %888 = vmatprep.subr.mxu0 0.0
      %889 = vmatpush1.msra.mxu0 0.0
      %890 = vmatprep.subr.mxu0 0.0
      %891 = vmatpush1.msra.mxu0 0.0
      %892 = vmatprep.subr.mxu0 0.0
      %893 = vmatpush1.msra.mxu0 0.0
      %894 = vmatprep.subr.mxu0 0.0
      %895 = vmatpush1.msra.mxu0 0.0
      %896 = vmatprep.subr.mxu0 0.0
      %897 = vmatpush1.msra.mxu0 0.0
      %898 = vmatprep.subr.mxu0 0.0
      %899 = vmatpush1.msra.mxu0 0.0
      %900 = vmatprep.subr.mxu0 0.0
      %901 = vmatpush1.msra.mxu0 0.0
      %902 = vmatprep.subr.mxu0 0.0
      %903 = vmatpush1.msra.mxu0 0.0
      %904 = vmatprep.subr.mxu0 0.0
      %905 = vmatpush1.msra.mxu0 0.0
      %906 = vmatprep.subr.mxu0 0.0
      %907 = vmatpush1.msra.mxu0 0.0
      %908 = vmatprep.subr.mxu0 0.0
      %909 = vmatpush1.msra.mxu0 0.0
      %910 = vmatprep.subr.mxu0 0.0
      %911 = vmatpush1.msra.mxu0 0.0
      %912 = vmatprep.subr.mxu0 0.0
      %913 = vmatpush1.msra.mxu0 0.0
      %914 = vmatprep.subr.mxu0 0.0
      %915 = vmatpush1.msra.mxu0 0.0
      %916 = vmatprep.mubr.f32.mxu0 0.0
      %917 = vmatmul.mubr.f32.gmra.mrb[0].mxu0 %v850
      %v918 = vpop.f32.mrb[0].mxu0
      %v919 = vadd.f32 0.0, %v918
      %v920 = vpop.f32.mrb[0].mxu0
      %921 = vdwg.mxu0
      %922 = vrot.lane.b32.xlu0 %v338, 64
      %v923 = vpop.permute.xlu0 %922
      %v926 = vsel %vm344, %v693, 0
      %928 = vmatprep.subr.mxu0 0.0
      %929 = vmatpush1.msra.mxu0 %v923
      %930 = vmatprep.subr.mxu0 0.0
      %931 = vmatpush1.msra.mxu0 0.0
      %932 = vmatprep.subr.mxu0 0.0
      %933 = vmatpush1.msra.mxu0 0.0
      %934 = vmatprep.subr.mxu0 0.0
      %935 = vmatpush1.msra.mxu0 0.0
      %936 = vmatprep.subr.mxu0 0.0
      %937 = vmatpush1.msra.mxu0 0.0
      %938 = vmatprep.subr.mxu0 0.0
      %939 = vmatpush1.msra.mxu0 0.0
      %940 = vmatprep.subr.mxu0 0.0
      %941 = vmatpush1.msra.mxu0 0.0
      %942 = vmatprep.subr.mxu0 0.0
      %943 = vmatpush1.msra.mxu0 0.0
      %944 = vmatprep.subr.mxu0 0.0
      %945 = vmatpush1.msra.mxu0 0.0
      %946 = vmatprep.subr.mxu0 0.0
      %947 = vmatpush1.msra.mxu0 0.0
      %948 = vmatprep.subr.mxu0 0.0
      %949 = vmatpush1.msra.mxu0 0.0
      %950 = vmatprep.subr.mxu0 0.0
      %951 = vmatpush1.msra.mxu0 0.0
      %952 = vmatprep.subr.mxu0 0.0
      %953 = vmatpush1.msra.mxu0 0.0
      %954 = vmatprep.subr.mxu0 0.0
      %955 = vmatpush1.msra.mxu0 0.0
      %956 = vmatprep.subr.mxu0 0.0
      %957 = vmatpush1.msra.mxu0 0.0
      %958 = vmatprep.subr.mxu0 0.0
      %959 = vmatpush1.msra.mxu0 0.0
      %960 = vmatprep.subr.mxu0 0.0
      %961 = vmatpush1.msra.mxu0 0.0
      %962 = vmatprep.subr.mxu0 0.0
      %963 = vmatpush1.msra.mxu0 0.0
      %964 = vmatprep.subr.mxu0 0.0
      %965 = vmatpush1.msra.mxu0 0.0
      %966 = vmatprep.subr.mxu0 0.0
      %967 = vmatpush1.msra.mxu0 0.0
      %968 = vmatprep.subr.mxu0 0.0
      %969 = vmatpush1.msra.mxu0 0.0
      %970 = vmatprep.subr.mxu0 0.0
      %971 = vmatpush1.msra.mxu0 0.0
      %972 = vmatprep.subr.mxu0 0.0
      %973 = vmatpush1.msra.mxu0 0.0
      %974 = vmatprep.subr.mxu0 0.0
      %975 = vmatpush1.msra.mxu0 0.0
      %976 = vmatprep.subr.mxu0 0.0
      %977 = vmatpush1.msra.mxu0 0.0
      %978 = vmatprep.subr.mxu0 0.0
      %979 = vmatpush1.msra.mxu0 0.0
      %980 = vmatprep.subr.mxu0 0.0
      %981 = vmatpush1.msra.mxu0 0.0
      %982 = vmatprep.subr.mxu0 0.0
      %983 = vmatpush1.msra.mxu0 0.0
      %984 = vmatprep.subr.mxu0 0.0
      %985 = vmatpush1.msra.mxu0 0.0
      %986 = vmatprep.subr.mxu0 0.0
      %987 = vmatpush1.msra.mxu0 0.0
      %988 = vmatprep.subr.mxu0 0.0
      %989 = vmatpush1.msra.mxu0 0.0
      %990 = vmatprep.subr.mxu0 0.0
      %991 = vmatpush1.msra.mxu0 0.0
      %992 = vmatprep.mubr.f32.mxu0 0.0
      %993 = vmatmul.mubr.f32.gmra.mrb[0].mxu0 %v926
      %v994 = vpop.f32.mrb[0].mxu0
      %v995 = vadd.f32 0.0, %v994
      %v996 = vpop.f32.mrb[0].mxu0
      %997 = vdwg.mxu0
      %v998 = vld [vmem:[%s3] sm:$0xff]
      %999 = vrot.lane.b32.xlu0 %v323, 120
      %v1000 = vpop.permute.xlu0 %999
      %1001 = vrot.lane.b32.xlu0 %v323, 88
      %v1002 = vpop.permute.xlu0 %1001
      %v1003 = vsel %vm344, %v1000, 0
      %v1005 = vsel %vm344, %v1002, 0
      %1007 = vmatprep.subr.mxu0 0.0
      %1008 = vmatpush1.xpose.msra.mxu0 %v1005
      %1009 = vmatprep.subr.mxu0 0.0
      %1010 = vmatpush1.xpose.msra.mxu0 0.0
      %1011 = vmatprep.subr.mxu0 0.0
      %1012 = vmatpush1.xpose.msra.mxu0 0.0
      %1013 = vmatprep.subr.mxu0 0.0
      %1014 = vmatpush1.xpose.msra.mxu0 0.0
      %1015 = vmatprep.subr.mxu0 0.0
      %1016 = vmatpush1.xpose.msra.mxu0 0.0
      %1017 = vmatprep.subr.mxu0 0.0
      %1018 = vmatpush1.xpose.msra.mxu0 0.0
      %1019 = vmatprep.subr.mxu0 0.0
      %1020 = vmatpush1.xpose.msra.mxu0 0.0
      %1021 = vmatprep.subr.mxu0 0.0
      %1022 = vmatpush1.xpose.msra.mxu0 0.0
      %1023 = vmatprep.subr.mxu0 0.0
      %1024 = vmatpush1.xpose.msra.mxu0 0.0
      %1025 = vmatprep.subr.mxu0 0.0
      %1026 = vmatpush1.xpose.msra.mxu0 0.0
      %1027 = vmatprep.subr.mxu0 0.0
      %1028 = vmatpush1.xpose.msra.mxu0 0.0
      %1029 = vmatprep.subr.mxu0 0.0
      %1030 = vmatpush1.xpose.msra.mxu0 0.0
      %1031 = vmatprep.subr.mxu0 0.0
      %1032 = vmatpush1.xpose.msra.mxu0 0.0
      %1033 = vmatprep.subr.mxu0 0.0
      %1034 = vmatpush1.xpose.msra.mxu0 0.0
      %1035 = vmatprep.subr.mxu0 0.0
      %1036 = vmatpush1.xpose.msra.mxu0 0.0
      %1037 = vmatprep.subr.mxu0 0.0
      %1038 = vmatpush1.xpose.msra.mxu0 0.0
      %1039 = vmatprep.subr.mxu0 0.0
      %1040 = vmatpush1.xpose.msra.mxu0 0.0
      %1041 = vmatprep.subr.mxu0 0.0
      %1042 = vmatpush1.xpose.msra.mxu0 0.0
      %1043 = vmatprep.subr.mxu0 0.0
      %1044 = vmatpush1.xpose.msra.mxu0 0.0
      %1045 = vmatprep.subr.mxu0 0.0
      %1046 = vmatpush1.xpose.msra.mxu0 0.0
      %1047 = vmatprep.subr.mxu0 0.0
      %1048 = vmatpush1.xpose.msra.mxu0 0.0
      %1049 = vmatprep.subr.mxu0 0.0
      %1050 = vmatpush1.xpose.msra.mxu0 0.0
      %1051 = vmatprep.subr.mxu0 0.0
      %1052 = vmatpush1.xpose.msra.mxu0 0.0
      %1053 = vmatprep.subr.mxu0 0.0
      %1054 = vmatpush1.xpose.msra.mxu0 0.0
      %1055 = vmatprep.subr.mxu0 0.0
      %1056 = vmatpush1.xpose.msra.mxu0 0.0
      %1057 = vmatprep.subr.mxu0 0.0
      %1058 = vmatpush1.xpose.msra.mxu0 0.0
      %1059 = vmatprep.subr.mxu0 0.0
      %1060 = vmatpush1.xpose.msra.mxu0 0.0
      %1061 = vmatprep.subr.mxu0 0.0
      %1062 = vmatpush1.xpose.msra.mxu0 0.0
      %1063 = vmatprep.subr.mxu0 0.0
      %1064 = vmatpush1.xpose.msra.mxu0 0.0
      %1065 = vmatprep.subr.mxu0 0.0
      %1066 = vmatpush1.xpose.msra.mxu0 0.0
      %1067 = vmatprep.subr.mxu0 0.0
      %1068 = vmatpush1.xpose.msra.mxu0 0.0
      %1069 = vmatprep.subr.mxu0 0.0
      %1070 = vmatpush1.xpose.msra.mxu0 0.0
      %1071 = vmatprep.mubr.f32.mxu0 0.0
      %1072 = vmatmul.mubr.f32.gmra.mrb[0].mxu0 %v1003
      %v1073 = vpop.f32.mrb[0].mxu0
      %v1074 = vadd.f32 0.0, %v1073
      %v1075 = vpop.f32.mrb[0].mxu0
      %1076 = vdwg.mxu0
      %1077 = vrot.lane.b32.xlu0 %v328, 120
      %v1078 = vpop.permute.xlu0 %1077
      %1079 = vrot.lane.b32.xlu0 %v328, 88
      %v1080 = vpop.permute.xlu0 %1079
      %v1081 = vsel %vm344, %v1078, 0
      %v1083 = vsel %vm344, %v1080, 0
      %1085 = vmatprep.subr.mxu0 0.0
      %1086 = vmatpush1.xpose.msra.mxu0 %v1083
      %1087 = vmatprep.subr.mxu0 0.0
      %1088 = vmatpush1.xpose.msra.mxu0 0.0
      %1089 = vmatprep.subr.mxu0 0.0
      %1090 = vmatpush1.xpose.msra.mxu0 0.0
      %1091 = vmatprep.subr.mxu0 0.0
      %1092 = vmatpush1.xpose.msra.mxu0 0.0
      %1093 = vmatprep.subr.mxu0 0.0
      %1094 = vmatpush1.xpose.msra.mxu0 0.0
      %1095 = vmatprep.subr.mxu0 0.0
      %1096 = vmatpush1.xpose.msra.mxu0 0.0
      %1097 = vmatprep.subr.mxu0 0.0
      %1098 = vmatpush1.xpose.msra.mxu0 0.0
      %1099 = vmatprep.subr.mxu0 0.0
      %1100 = vmatpush1.xpose.msra.mxu0 0.0
      %1101 = vmatprep.subr.mxu0 0.0
      %1102 = vmatpush1.xpose.msra.mxu0 0.0
      %1103 = vmatprep.subr.mxu0 0.0
      %1104 = vmatpush1.xpose.msra.mxu0 0.0
      %1105 = vmatprep.subr.mxu0 0.0
      %1106 = vmatpush1.xpose.msra.mxu0 0.0
      %1107 = vmatprep.subr.mxu0 0.0
      %1108 = vmatpush1.xpose.msra.mxu0 0.0
      %1109 = vmatprep.subr.mxu0 0.0
      %1110 = vmatpush1.xpose.msra.mxu0 0.0
      %1111 = vmatprep.subr.mxu0 0.0
      %1112 = vmatpush1.xpose.msra.mxu0 0.0
      %1113 = vmatprep.subr.mxu0 0.0
      %1114 = vmatpush1.xpose.msra.mxu0 0.0
      %1115 = vmatprep.subr.mxu0 0.0
      %1116 = vmatpush1.xpose.msra.mxu0 0.0
      %1117 = vmatprep.subr.mxu0 0.0
      %1118 = vmatpush1.xpose.msra.mxu0 0.0
      %1119 = vmatprep.subr.mxu0 0.0
      %1120 = vmatpush1.xpose.msra.mxu0 0.0
      %1121 = vmatprep.subr.mxu0 0.0
      %1122 = vmatpush1.xpose.msra.mxu0 0.0
      %1123 = vmatprep.subr.mxu0 0.0
      %1124 = vmatpush1.xpose.msra.mxu0 0.0
      %1125 = vmatprep.subr.mxu0 0.0
      %1126 = vmatpush1.xpose.msra.mxu0 0.0
      %1127 = vmatprep.subr.mxu0 0.0
      %1128 = vmatpush1.xpose.msra.mxu0 0.0
      %1129 = vmatprep.subr.mxu0 0.0
      %1130 = vmatpush1.xpose.msra.mxu0 0.0
      %1131 = vmatprep.subr.mxu0 0.0
      %1132 = vmatpush1.xpose.msra.mxu0 0.0
      %1133 = vmatprep.subr.mxu0 0.0
      %1134 = vmatpush1.xpose.msra.mxu0 0.0
      %1135 = vmatprep.subr.mxu0 0.0
      %1136 = vmatpush1.xpose.msra.mxu0 0.0
      %1137 = vmatprep.subr.mxu0 0.0
      %1138 = vmatpush1.xpose.msra.mxu0 0.0
      %1139 = vmatprep.subr.mxu0 0.0
      %1140 = vmatpush1.xpose.msra.mxu0 0.0
      %1141 = vmatprep.subr.mxu0 0.0
      %1142 = vmatpush1.xpose.msra.mxu0 0.0
      %1143 = vmatprep.subr.mxu0 0.0
      %1144 = vmatpush1.xpose.msra.mxu0 0.0
      %1145 = vmatprep.subr.mxu0 0.0
      %1146 = vmatpush1.xpose.msra.mxu0 0.0
      %1147 = vmatprep.subr.mxu0 0.0
      %1148 = vmatpush1.xpose.msra.mxu0 0.0
      %1149 = vmatprep.mubr.f32.mxu0 0.0
      %1150 = vmatmul.mubr.f32.gmra.mrb[0].mxu0 %v1081
      %v1151 = vpop.f32.mrb[0].mxu0
      %v1152 = vadd.f32 0.0, %v1151
      %v1153 = vpop.f32.mrb[0].mxu0
      %1154 = vdwg.mxu0
      %1155 = vrot.lane.b32.xlu0 %v333, 120
      %v1156 = vpop.permute.xlu0 %1155
      %1157 = vrot.lane.b32.xlu0 %v333, 88
      %v1158 = vpop.permute.xlu0 %1157
      %v1159 = vsel %vm344, %v1156, 0
      %v1161 = vsel %vm344, %v1158, 0
      %1163 = vmatprep.subr.mxu0 0.0
      %1164 = vmatpush1.xpose.msra.mxu0 %v1161
      %1165 = vmatprep.subr.mxu0 0.0
      %1166 = vmatpush1.xpose.msra.mxu0 0.0
      %1167 = vmatprep.subr.mxu0 0.0
      %1168 = vmatpush1.xpose.msra.mxu0 0.0
      %1169 = vmatprep.subr.mxu0 0.0
      %1170 = vmatpush1.xpose.msra.mxu0 0.0
      %1171 = vmatprep.subr.mxu0 0.0
      %1172 = vmatpush1.xpose.msra.mxu0 0.0
      %1173 = vmatprep.subr.mxu0 0.0
      %1174 = vmatpush1.xpose.msra.mxu0 0.0
      %1175 = vmatprep.subr.mxu0 0.0
      %1176 = vmatpush1.xpose.msra.mxu0 0.0
      %1177 = vmatprep.subr.mxu0 0.0
      %1178 = vmatpush1.xpose.msra.mxu0 0.0
      %1179 = vmatprep.subr.mxu0 0.0
      %1180 = vmatpush1.xpose.msra.mxu0 0.0
      %1181 = vmatprep.subr.mxu0 0.0
      %1182 = vmatpush1.xpose.msra.mxu0 0.0
      %1183 = vmatprep.subr.mxu0 0.0
      %1184 = vmatpush1.xpose.msra.mxu0 0.0
      %1185 = vmatprep.subr.mxu0 0.0
      %1186 = vmatpush1.xpose.msra.mxu0 0.0
      %1187 = vmatprep.subr.mxu0 0.0
      %1188 = vmatpush1.xpose.msra.mxu0 0.0
      %1189 = vmatprep.subr.mxu0 0.0
      %1190 = vmatpush1.xpose.msra.mxu0 0.0
      %1191 = vmatprep.subr.mxu0 0.0
      %1192 = vmatpush1.xpose.msra.mxu0 0.0
      %1193 = vmatprep.subr.mxu0 0.0
      %1194 = vmatpush1.xpose.msra.mxu0 0.0
      %1195 = vmatprep.subr.mxu0 0.0
      %1196 = vmatpush1.xpose.msra.mxu0 0.0
      %1197 = vmatprep.subr.mxu0 0.0
      %1198 = vmatpush1.xpose.msra.mxu0 0.0
      %1199 = vmatprep.subr.mxu0 0.0
      %1200 = vmatpush1.xpose.msra.mxu0 0.0
      %1201 = vmatprep.subr.mxu0 0.0
      %1202 = vmatpush1.xpose.msra.mxu0 0.0
      %1203 = vmatprep.subr.mxu0 0.0
      %1204 = vmatpush1.xpose.msra.mxu0 0.0
      %1205 = vmatprep.subr.mxu0 0.0
      %1206 = vmatpush1.xpose.msra.mxu0 0.0
      %1207 = vmatprep.subr.mxu0 0.0
      %1208 = vmatpush1.xpose.msra.mxu0 0.0
      %1209 = vmatprep.subr.mxu0 0.0
      %1210 = vmatpush1.xpose.msra.mxu0 0.0
      %1211 = vmatprep.subr.mxu0 0.0
      %1212 = vmatpush1.xpose.msra.mxu0 0.0
      %1213 = vmatprep.subr.mxu0 0.0
      %1214 = vmatpush1.xpose.msra.mxu0 0.0
      %1215 = vmatprep.subr.mxu0 0.0
      %1216 = vmatpush1.xpose.msra.mxu0 0.0
      %1217 = vmatprep.subr.mxu0 0.0
      %1218 = vmatpush1.xpose.msra.mxu0 0.0
      %1219 = vmatprep.subr.mxu0 0.0
      %1220 = vmatpush1.xpose.msra.mxu0 0.0
      %1221 = vmatprep.subr.mxu0 0.0
      %1222 = vmatpush1.xpose.msra.mxu0 0.0
      %1223 = vmatprep.subr.mxu0 0.0
      %1224 = vmatpush1.xpose.msra.mxu0 0.0
      %1225 = vmatprep.subr.mxu0 0.0
      %1226 = vmatpush1.xpose.msra.mxu0 0.0
      %1227 = vmatprep.mubr.f32.mxu0 0.0
      %1228 = vmatmul.mubr.f32.gmra.mrb[0].mxu0 %v1159
      %v1229 = vpop.f32.mrb[0].mxu0
      %v1230 = vadd.f32 0.0, %v1229
      %v1231 = vpop.f32.mrb[0].mxu0
      %1232 = vdwg.mxu0
      %1233 = vrot.lane.b32.xlu0 %v338, 120
      %v1234 = vpop.permute.xlu0 %1233
      %1235 = vrot.lane.b32.xlu0 %v338, 88
      %v1236 = vpop.permute.xlu0 %1235
      %v1237 = vsel %vm344, %v1234, 0
      %v1239 = vsel %vm344, %v1236, 0
      %1241 = vmatprep.subr.mxu0 0.0
      %1242 = vmatpush1.xpose.msra.mxu0 %v1239
      %1243 = vmatprep.subr.mxu0 0.0
      %1244 = vmatpush1.xpose.msra.mxu0 0.0
      %1245 = vmatprep.subr.mxu0 0.0
      %1246 = vmatpush1.xpose.msra.mxu0 0.0
      %1247 = vmatprep.subr.mxu0 0.0
      %1248 = vmatpush1.xpose.msra.mxu0 0.0
      %1249 = vmatprep.subr.mxu0 0.0
      %1250 = vmatpush1.xpose.msra.mxu0 0.0
      %1251 = vmatprep.subr.mxu0 0.0
      %1252 = vmatpush1.xpose.msra.mxu0 0.0
      %1253 = vmatprep.subr.mxu0 0.0
      %1254 = vmatpush1.xpose.msra.mxu0 0.0
      %1255 = vmatprep.subr.mxu0 0.0
      %1256 = vmatpush1.xpose.msra.mxu0 0.0
      %1257 = vmatprep.subr.mxu0 0.0
      %1258 = vmatpush1.xpose.msra.mxu0 0.0
      %1259 = vmatprep.subr.mxu0 0.0
      %1260 = vmatpush1.xpose.msra.mxu0 0.0
      %1261 = vmatprep.subr.mxu0 0.0
      %1262 = vmatpush1.xpose.msra.mxu0 0.0
      %1263 = vmatprep.subr.mxu0 0.0
      %1264 = vmatpush1.xpose.msra.mxu0 0.0
      %1265 = vmatprep.subr.mxu0 0.0
      %1266 = vmatpush1.xpose.msra.mxu0 0.0
      %1267 = vmatprep.subr.mxu0 0.0
      %1268 = vmatpush1.xpose.msra.mxu0 0.0
      %1269 = vmatprep.subr.mxu0 0.0
      %1270 = vmatpush1.xpose.msra.mxu0 0.0
      %1271 = vmatprep.subr.mxu0 0.0
      %1272 = vmatpush1.xpose.msra.mxu0 0.0
      %1273 = vmatprep.subr.mxu0 0.0
      %1274 = vmatpush1.xpose.msra.mxu0 0.0
      %1275 = vmatprep.subr.mxu0 0.0
      %1276 = vmatpush1.xpose.msra.mxu0 0.0
      %1277 = vmatprep.subr.mxu0 0.0
      %1278 = vmatpush1.xpose.msra.mxu0 0.0
      %1279 = vmatprep.subr.mxu0 0.0
      %1280 = vmatpush1.xpose.msra.mxu0 0.0
      %1281 = vmatprep.subr.mxu0 0.0
      %1282 = vmatpush1.xpose.msra.mxu0 0.0
      %1283 = vmatprep.subr.mxu0 0.0
      %1284 = vmatpush1.xpose.msra.mxu0 0.0
      %1285 = vmatprep.subr.mxu0 0.0
      %1286 = vmatpush1.xpose.msra.mxu0 0.0
      %1287 = vmatprep.subr.mxu0 0.0
      %1288 = vmatpush1.xpose.msra.mxu0 0.0
      %1289 = vmatprep.subr.mxu0 0.0
      %1290 = vmatpush1.xpose.msra.mxu0 0.0
      %1291 = vmatprep.subr.mxu0 0.0
      %1292 = vmatpush1.xpose.msra.mxu0 0.0
      %1293 = vmatprep.subr.mxu0 0.0
      %1294 = vmatpush1.xpose.msra.mxu0 0.0
      %1295 = vmatprep.subr.mxu0 0.0
      %1296 = vmatpush1.xpose.msra.mxu0 0.0
      %1297 = vmatprep.subr.mxu0 0.0
      %1298 = vmatpush1.xpose.msra.mxu0 0.0
      %1299 = vmatprep.subr.mxu0 0.0
      %1300 = vmatpush1.xpose.msra.mxu0 0.0
      %1301 = vmatprep.subr.mxu0 0.0
      %1302 = vmatpush1.xpose.msra.mxu0 0.0
      %1303 = vmatprep.subr.mxu0 0.0
      %1304 = vmatpush1.xpose.msra.mxu0 0.0
      %1305 = vmatprep.mubr.f32.mxu0 0.0
      %1306 = vmatmul.mubr.f32.gmra.mrb[0].mxu0 %v1237
      %v1307 = vpop.f32.mrb[0].mxu0
      %v1308 = vadd.f32 0.0, %v1307
      %v1309 = vpop.f32.mrb[0].mxu0
      %1310 = vdwg.mxu0
      %v1311 = vsel %vm344, %v1074, -inf
      %1312 = vmax.xlane.f32.xlu0 %v1311
      %v1313 = vpop.xlane.xlu0 %1312
      %v1314 = vsel %vm344, %v1152, -inf
      %1315 = vmax.xlane.f32.xlu0 %v1314
      %v1316 = vpop.xlane.xlu0 %1315
      %v1317 = vsel %vm344, %v1230, -inf
      %1318 = vmax.xlane.f32.xlu0 %v1317
      %v1319 = vpop.xlane.xlu0 %1318
      %v1320 = vsel %vm344, %v1308, -inf
      %1321 = vmax.xlane.f32.xlu0 %v1320
      %v1322 = vpop.xlane.xlu0 %1321
      %v1323 = vsub.f32 %v1074, %v1313
      %v1324 = vsub.f32 %v1152, %v1316
      %v1325 = vsub.f32 %v1230, %v1319
      %v1326 = vsub.f32 %v1308, %v1322
      %v1327 = vmul.f32 %v1323, 1.442695
      %v1328 = vpow.pop %v1327
      %v1329 = vmul.f32 %v1324, 1.442695
      %v1330 = vpow.pop %v1329
      %v1331 = vmul.f32 %v1325, 1.442695
      %v1332 = vpow.pop %v1331
      %v1333 = vmul.f32 %v1326, 1.442695
      %v1334 = vpow.pop %v1333
      %v1335 = vsel %vm344, %v1328, 0.0
      %1336 = vadd.xlane.f32.xlu0 %v1335
      %v1337 = vpop.xlane.xlu0 %1336
      %v1338 = vsel %vm344, %v1330, 0.0
      %1339 = vadd.xlane.f32.xlu0 %v1338
      %v1340 = vpop.xlane.xlu0 %1339
      %v1341 = vsel %vm344, %v1332, 0.0
      %1342 = vadd.xlane.f32.xlu0 %v1341
      %v1343 = vpop.xlane.xlu0 %1342
      %v1344 = vsel %vm344, %v1334, 0.0
      %1345 = vadd.xlane.f32.xlu0 %v1344
      %v1346 = vpop.xlane.xlu0 %1345
      %v1347 = vrcp.pop %v1337
      %v1348 = vrcp.pop %v1340
      %v1349 = vrcp.pop %v1343
      %v1350 = vrcp.pop %v1346
      %v1351 = vmul.f32 %v1328, %v1347
      %v1352 = vmul.f32 %v1330, %v1348
      %v1353 = vmul.f32 %v1332, %v1349
      %v1354 = vmul.f32 %v1334, %v1350
      %1355 = vrot.lane.b32.xlu0 %v323, 56
      %v1356 = vpop.permute.xlu0 %1355
      %v1359 = vsel %vm344, %v1351, 0
      %1361 = vmatprep.subr.mxu0 0.0
      %1362 = vmatpush1.msra.mxu0 %v1356
      %1363 = vmatprep.subr.mxu0 0.0
      %1364 = vmatpush1.msra.mxu0 0.0
      %1365 = vmatprep.subr.mxu0 0.0
      %1366 = vmatpush1.msra.mxu0 0.0
      %1367 = vmatprep.subr.mxu0 0.0
      %1368 = vmatpush1.msra.mxu0 0.0
      %1369 = vmatprep.subr.mxu0 0.0
      %1370 = vmatpush1.msra.mxu0 0.0
      %1371 = vmatprep.subr.mxu0 0.0
      %1372 = vmatpush1.msra.mxu0 0.0
      %1373 = vmatprep.subr.mxu0 0.0
      %1374 = vmatpush1.msra.mxu0 0.0
      %1375 = vmatprep.subr.mxu0 0.0
      %1376 = vmatpush1.msra.mxu0 0.0
      %1377 = vmatprep.subr.mxu0 0.0
      %1378 = vmatpush1.msra.mxu0 0.0
      %1379 = vmatprep.subr.mxu0 0.0
      %1380 = vmatpush1.msra.mxu0 0.0
      %1381 = vmatprep.subr.mxu0 0.0
      %1382 = vmatpush1.msra.mxu0 0.0
      %1383 = vmatprep.subr.mxu0 0.0
      %1384 = vmatpush1.msra.mxu0 0.0
      %1385 = vmatprep.subr.mxu0 0.0
      %1386 = vmatpush1.msra.mxu0 0.0
      %1387 = vmatprep.subr.mxu0 0.0
      %1388 = vmatpush1.msra.mxu0 0.0
      %1389 = vmatprep.subr.mxu0 0.0
      %1390 = vmatpush1.msra.mxu0 0.0
      %1391 = vmatprep.subr.mxu0 0.0
      %1392 = vmatpush1.msra.mxu0 0.0
      %1393 = vmatprep.subr.mxu0 0.0
      %1394 = vmatpush1.msra.mxu0 0.0
      %1395 = vmatprep.subr.mxu0 0.0
      %1396 = vmatpush1.msra.mxu0 0.0
      %1397 = vmatprep.subr.mxu0 0.0
      %1398 = vmatpush1.msra.mxu0 0.0
      %1399 = vmatprep.subr.mxu0 0.0
      %1400 = vmatpush1.msra.mxu0 0.0
      %1401 = vmatprep.subr.mxu0 0.0
      %1402 = vmatpush1.msra.mxu0 0.0
      %1403 = vmatprep.subr.mxu0 0.0
      %1404 = vmatpush1.msra.mxu0 0.0
      %1405 = vmatprep.subr.mxu0 0.0
      %1406 = vmatpush1.msra.mxu0 0.0
      %1407 = vmatprep.subr.mxu0 0.0
      %1408 = vmatpush1.msra.mxu0 0.0
      %1409 = vmatprep.subr.mxu0 0.0
      %1410 = vmatpush1.msra.mxu0 0.0
      %1411 = vmatprep.subr.mxu0 0.0
      %1412 = vmatpush1.msra.mxu0 0.0
      %1413 = vmatprep.subr.mxu0 0.0
      %1414 = vmatpush1.msra.mxu0 0.0
      %1415 = vmatprep.subr.mxu0 0.0
      %1416 = vmatpush1.msra.mxu0 0.0
      %1417 = vmatprep.subr.mxu0 0.0
      %1418 = vmatpush1.msra.mxu0 0.0
      %1419 = vmatprep.subr.mxu0 0.0
      %1420 = vmatpush1.msra.mxu0 0.0
      %1421 = vmatprep.subr.mxu0 0.0
      %1422 = vmatpush1.msra.mxu0 0.0
      %1423 = vmatprep.subr.mxu0 0.0
      %1424 = vmatpush1.msra.mxu0 0.0
      %1425 = vmatprep.mubr.f32.mxu0 0.0
      %1426 = vmatmul.mubr.f32.gmra.mrb[0].mxu0 %v1359
      %v1427 = vpop.f32.mrb[0].mxu0
      %v1428 = vadd.f32 0.0, %v1427
      %v1429 = vpop.f32.mrb[0].mxu0
      %1430 = vdwg.mxu0
      %1431 = vrot.lane.b32.xlu0 %v328, 56
      %v1432 = vpop.permute.xlu0 %1431
      %v1435 = vsel %vm344, %v1352, 0
      %1437 = vmatprep.subr.mxu0 0.0
      %1438 = vmatpush1.msra.mxu0 %v1432
      %1439 = vmatprep.subr.mxu0 0.0
      %1440 = vmatpush1.msra.mxu0 0.0
      %1441 = vmatprep.subr.mxu0 0.0
      %1442 = vmatpush1.msra.mxu0 0.0
      %1443 = vmatprep.subr.mxu0 0.0
      %1444 = vmatpush1.msra.mxu0 0.0
      %1445 = vmatprep.subr.mxu0 0.0
      %1446 = vmatpush1.msra.mxu0 0.0
      %1447 = vmatprep.subr.mxu0 0.0
      %1448 = vmatpush1.msra.mxu0 0.0
      %1449 = vmatprep.subr.mxu0 0.0
      %1450 = vmatpush1.msra.mxu0 0.0
      %1451 = vmatprep.subr.mxu0 0.0
      %1452 = vmatpush1.msra.mxu0 0.0
      %1453 = vmatprep.subr.mxu0 0.0
      %1454 = vmatpush1.msra.mxu0 0.0
      %1455 = vmatprep.subr.mxu0 0.0
      %1456 = vmatpush1.msra.mxu0 0.0
      %1457 = vmatprep.subr.mxu0 0.0
      %1458 = vmatpush1.msra.mxu0 0.0
      %1459 = vmatprep.subr.mxu0 0.0
      %1460 = vmatpush1.msra.mxu0 0.0
      %1461 = vmatprep.subr.mxu0 0.0
      %1462 = vmatpush1.msra.mxu0 0.0
      %1463 = vmatprep.subr.mxu0 0.0
      %1464 = vmatpush1.msra.mxu0 0.0
      %1465 = vmatprep.subr.mxu0 0.0
      %1466 = vmatpush1.msra.mxu0 0.0
      %1467 = vmatprep.subr.mxu0 0.0
      %1468 = vmatpush1.msra.mxu0 0.0
      %1469 = vmatprep.subr.mxu0 0.0
      %1470 = vmatpush1.msra.mxu0 0.0
      %1471 = vmatprep.subr.mxu0 0.0
      %1472 = vmatpush1.msra.mxu0 0.0
      %1473 = vmatprep.subr.mxu0 0.0
      %1474 = vmatpush1.msra.mxu0 0.0
      %1475 = vmatprep.subr.mxu0 0.0
      %1476 = vmatpush1.msra.mxu0 0.0
      %1477 = vmatprep.subr.mxu0 0.0
      %1478 = vmatpush1.msra.mxu0 0.0
      %1479 = vmatprep.subr.mxu0 0.0
      %1480 = vmatpush1.msra.mxu0 0.0
      %1481 = vmatprep.subr.mxu0 0.0
      %1482 = vmatpush1.msra.mxu0 0.0
      %1483 = vmatprep.subr.mxu0 0.0
      %1484 = vmatpush1.msra.mxu0 0.0
      %1485 = vmatprep.subr.mxu0 0.0
      %1486 = vmatpush1.msra.mxu0 0.0
      %1487 = vmatprep.subr.mxu0 0.0
      %1488 = vmatpush1.msra.mxu0 0.0
      %1489 = vmatprep.subr.mxu0 0.0
      %1490 = vmatpush1.msra.mxu0 0.0
      %1491 = vmatprep.subr.mxu0 0.0
      %1492 = vmatpush1.msra.mxu0 0.0
      %1493 = vmatprep.subr.mxu0 0.0
      %1494 = vmatpush1.msra.mxu0 0.0
      %1495 = vmatprep.subr.mxu0 0.0
      %1496 = vmatpush1.msra.mxu0 0.0
      %1497 = vmatprep.subr.mxu0 0.0
      %1498 = vmatpush1.msra.mxu0 0.0
      %1499 = vmatprep.subr.mxu0 0.0
      %1500 = vmatpush1.msra.mxu0 0.0
      %1501 = vmatprep.mubr.f32.mxu0 0.0
      %1502 = vmatmul.mubr.f32.gmra.mrb[0].mxu0 %v1435
      %v1503 = vpop.f32.mrb[0].mxu0
      %v1504 = vadd.f32 0.0, %v1503
      %v1505 = vpop.f32.mrb[0].mxu0
      %1506 = vdwg.mxu0
      %1507 = vrot.lane.b32.xlu0 %v333, 56
      %v1508 = vpop.permute.xlu0 %1507
      %v1511 = vsel %vm344, %v1353, 0
      %1513 = vmatprep.subr.mxu0 0.0
      %1514 = vmatpush1.msra.mxu0 %v1508
      %1515 = vmatprep.subr.mxu0 0.0
      %1516 = vmatpush1.msra.mxu0 0.0
      %1517 = vmatprep.subr.mxu0 0.0
      %1518 = vmatpush1.msra.mxu0 0.0
      %1519 = vmatprep.subr.mxu0 0.0
      %1520 = vmatpush1.msra.mxu0 0.0
      %1521 = vmatprep.subr.mxu0 0.0
      %1522 = vmatpush1.msra.mxu0 0.0
      %1523 = vmatprep.subr.mxu0 0.0
      %1524 = vmatpush1.msra.mxu0 0.0
      %1525 = vmatprep.subr.mxu0 0.0
      %1526 = vmatpush1.msra.mxu0 0.0
      %1527 = vmatprep.subr.mxu0 0.0
      %1528 = vmatpush1.msra.mxu0 0.0
      %1529 = vmatprep.subr.mxu0 0.0
      %1530 = vmatpush1.msra.mxu0 0.0
      %1531 = vmatprep.subr.mxu0 0.0
      %1532 = vmatpush1.msra.mxu0 0.0
      %1533 = vmatprep.subr.mxu0 0.0
      %1534 = vmatpush1.msra.mxu0 0.0
      %1535 = vmatprep.subr.mxu0 0.0
      %1536 = vmatpush1.msra.mxu0 0.0
      %1537 = vmatprep.subr.mxu0 0.0
      %1538 = vmatpush1.msra.mxu0 0.0
      %1539 = vmatprep.subr.mxu0 0.0
      %1540 = vmatpush1.msra.mxu0 0.0
      %1541 = vmatprep.subr.mxu0 0.0
      %1542 = vmatpush1.msra.mxu0 0.0
      %1543 = vmatprep.subr.mxu0 0.0
      %1544 = vmatpush1.msra.mxu0 0.0
      %1545 = vmatprep.subr.mxu0 0.0
      %1546 = vmatpush1.msra.mxu0 0.0
      %1547 = vmatprep.subr.mxu0 0.0
      %1548 = vmatpush1.msra.mxu0 0.0
      %1549 = vmatprep.subr.mxu0 0.0
      %1550 = vmatpush1.msra.mxu0 0.0
      %1551 = vmatprep.subr.mxu0 0.0
      %1552 = vmatpush1.msra.mxu0 0.0
      %1553 = vmatprep.subr.mxu0 0.0
      %1554 = vmatpush1.msra.mxu0 0.0
      %1555 = vmatprep.subr.mxu0 0.0
      %1556 = vmatpush1.msra.mxu0 0.0
      %1557 = vmatprep.subr.mxu0 0.0
      %1558 = vmatpush1.msra.mxu0 0.0
      %1559 = vmatprep.subr.mxu0 0.0
      %1560 = vmatpush1.msra.mxu0 0.0
      %1561 = vmatprep.subr.mxu0 0.0
      %1562 = vmatpush1.msra.mxu0 0.0
      %1563 = vmatprep.subr.mxu0 0.0
      %1564 = vmatpush1.msra.mxu0 0.0
      %1565 = vmatprep.subr.mxu0 0.0
      %1566 = vmatpush1.msra.mxu0 0.0
      %1567 = vmatprep.subr.mxu0 0.0
      %1568 = vmatpush1.msra.mxu0 0.0
      %1569 = vmatprep.subr.mxu0 0.0
      %1570 = vmatpush1.msra.mxu0 0.0
      %1571 = vmatprep.subr.mxu0 0.0
      %1572 = vmatpush1.msra.mxu0 0.0
      %1573 = vmatprep.subr.mxu0 0.0
      %1574 = vmatpush1.msra.mxu0 0.0
      %1575 = vmatprep.subr.mxu0 0.0
      %1576 = vmatpush1.msra.mxu0 0.0
      %1577 = vmatprep.mubr.f32.mxu0 0.0
      %1578 = vmatmul.mubr.f32.gmra.mrb[0].mxu0 %v1511
      %v1579 = vpop.f32.mrb[0].mxu0
      %v1580 = vadd.f32 0.0, %v1579
      %v1581 = vpop.f32.mrb[0].mxu0
      %1582 = vdwg.mxu0
      %1583 = vrot.lane.b32.xlu0 %v338, 56
      %v1584 = vpop.permute.xlu0 %1583
      %v1587 = vsel %vm344, %v1354, 0
      %1589 = vmatprep.subr.mxu0 0.0
      %1590 = vmatpush1.msra.mxu0 %v1584
      %1591 = vmatprep.subr.mxu0 0.0
      %1592 = vmatpush1.msra.mxu0 0.0
      %1593 = vmatprep.subr.mxu0 0.0
      %1594 = vmatpush1.msra.mxu0 0.0
      %1595 = vmatprep.subr.mxu0 0.0
      %1596 = vmatpush1.msra.mxu0 0.0
      %1597 = vmatprep.subr.mxu0 0.0
      %1598 = vmatpush1.msra.mxu0 0.0
      %1599 = vmatprep.subr.mxu0 0.0
      %1600 = vmatpush1.msra.mxu0 0.0
      %1601 = vmatprep.subr.mxu0 0.0
      %1602 = vmatpush1.msra.mxu0 0.0
      %1603 = vmatprep.subr.mxu0 0.0
      %1604 = vmatpush1.msra.mxu0 0.0
      %1605 = vmatprep.subr.mxu0 0.0
      %1606 = vmatpush1.msra.mxu0 0.0
      %1607 = vmatprep.subr.mxu0 0.0
      %1608 = vmatpush1.msra.mxu0 0.0
      %1609 = vmatprep.subr.mxu0 0.0
      %1610 = vmatpush1.msra.mxu0 0.0
      %1611 = vmatprep.subr.mxu0 0.0
      %1612 = vmatpush1.msra.mxu0 0.0
      %1613 = vmatprep.subr.mxu0 0.0
      %1614 = vmatpush1.msra.mxu0 0.0
      %1615 = vmatprep.subr.mxu0 0.0
      %1616 = vmatpush1.msra.mxu0 0.0
      %1617 = vmatprep.subr.mxu0 0.0
      %1618 = vmatpush1.msra.mxu0 0.0
      %1619 = vmatprep.subr.mxu0 0.0
      %1620 = vmatpush1.msra.mxu0 0.0
      %1621 = vmatprep.subr.mxu0 0.0
      %1622 = vmatpush1.msra.mxu0 0.0
      %1623 = vmatprep.subr.mxu0 0.0
      %1624 = vmatpush1.msra.mxu0 0.0
      %1625 = vmatprep.subr.mxu0 0.0
      %1626 = vmatpush1.msra.mxu0 0.0
      %1627 = vmatprep.subr.mxu0 0.0
      %1628 = vmatpush1.msra.mxu0 0.0
      %1629 = vmatprep.subr.mxu0 0.0
      %1630 = vmatpush1.msra.mxu0 0.0
      %1631 = vmatprep.subr.mxu0 0.0
      %1632 = vmatpush1.msra.mxu0 0.0
      %1633 = vmatprep.subr.mxu0 0.0
      %1634 = vmatpush1.msra.mxu0 0.0
      %1635 = vmatprep.subr.mxu0 0.0
      %1636 = vmatpush1.msra.mxu0 0.0
      %1637 = vmatprep.subr.mxu0 0.0
      %1638 = vmatpush1.msra.mxu0 0.0
      %1639 = vmatprep.subr.mxu0 0.0
      %1640 = vmatpush1.msra.mxu0 0.0
      %1641 = vmatprep.subr.mxu0 0.0
      %1642 = vmatpush1.msra.mxu0 0.0
      %1643 = vmatprep.subr.mxu0 0.0
      %1644 = vmatpush1.msra.mxu0 0.0
      %1645 = vmatprep.subr.mxu0 0.0
      %1646 = vmatpush1.msra.mxu0 0.0
      %1647 = vmatprep.subr.mxu0 0.0
      %1648 = vmatpush1.msra.mxu0 0.0
      %1649 = vmatprep.subr.mxu0 0.0
      %1650 = vmatpush1.msra.mxu0 0.0
      %1651 = vmatprep.subr.mxu0 0.0
      %1652 = vmatpush1.msra.mxu0 0.0
      %1653 = vmatprep.mubr.f32.mxu0 0.0
      %1654 = vmatmul.mubr.f32.gmra.mrb[0].mxu0 %v1587
      %v1655 = vpop.f32.mrb[0].mxu0
      %v1656 = vadd.f32 0.0, %v1655
      %v1657 = vpop.f32.mrb[0].mxu0
      %1658 = vdwg.mxu0
      %v1659 = vld [vmem:[%s3 + $0x8] sm:$0xff]
      %v1661 = vsel %vm344, %v1428, 0
      %v1664 = vsel %vm344, %v1504, 0
      %v1667 = vsel %vm344, %v1580, 0
      %v1670 = vsel %vm344, %v1656, 0
      %1672 = vmatprep.subr.mxu0 0.0
      %1673 = vmatpush1.msra.mxu0 %v1659
      %1674 = vmatprep.subr.mxu0 0.0
      %1675 = vmatpush1.msra.mxu0 0.0
      %1676 = vmatprep.subr.mxu0 0.0
      %1677 = vmatpush1.msra.mxu0 0.0
      %1678 = vmatprep.subr.mxu0 0.0
      %1679 = vmatpush1.msra.mxu0 0.0
      %1680 = vmatprep.subr.mxu0 0.0
      %1681 = vmatpush1.msra.mxu0 0.0
      %1682 = vmatprep.subr.mxu0 0.0
      %1683 = vmatpush1.msra.mxu0 0.0
      %1684 = vmatprep.subr.mxu0 0.0
      %1685 = vmatpush1.msra.mxu0 0.0
      %1686 = vmatprep.subr.mxu0 0.0
      %1687 = vmatpush1.msra.mxu0 0.0
      %1688 = vmatprep.subr.mxu0 0.0
      %1689 = vmatpush1.msra.mxu0 0.0
      %1690 = vmatprep.subr.mxu0 0.0
      %1691 = vmatpush1.msra.mxu0 0.0
      %1692 = vmatprep.subr.mxu0 0.0
      %1693 = vmatpush1.msra.mxu0 0.0
      %1694 = vmatprep.subr.mxu0 0.0
      %1695 = vmatpush1.msra.mxu0 0.0
      %1696 = vmatprep.subr.mxu0 0.0
      %1697 = vmatpush1.msra.mxu0 0.0
      %1698 = vmatprep.subr.mxu0 0.0
      %1699 = vmatpush1.msra.mxu0 0.0
      %1700 = vmatprep.subr.mxu0 0.0
      %1701 = vmatpush1.msra.mxu0 0.0
      %1702 = vmatprep.subr.mxu0 0.0
      %1703 = vmatpush1.msra.mxu0 0.0
      %1704 = vmatprep.subr.mxu0 0.0
      %1705 = vmatpush1.msra.mxu0 0.0
      %1706 = vmatprep.subr.mxu0 0.0
      %1707 = vmatpush1.msra.mxu0 0.0
      %1708 = vmatprep.subr.mxu0 0.0
      %1709 = vmatpush1.msra.mxu0 0.0
      %1710 = vmatprep.subr.mxu0 0.0
      %1711 = vmatpush1.msra.mxu0 0.0
      %1712 = vmatprep.subr.mxu0 0.0
      %1713 = vmatpush1.msra.mxu0 0.0
      %1714 = vmatprep.subr.mxu0 0.0
      %1715 = vmatpush1.msra.mxu0 0.0
      %1716 = vmatprep.subr.mxu0 0.0
      %1717 = vmatpush1.msra.mxu0 0.0
      %1718 = vmatprep.subr.mxu0 0.0
      %1719 = vmatpush1.msra.mxu0 0.0
      %1720 = vmatprep.subr.mxu0 0.0
      %1721 = vmatpush1.msra.mxu0 0.0
      %1722 = vmatprep.subr.mxu0 0.0
      %1723 = vmatpush1.msra.mxu0 0.0
      %1724 = vmatprep.subr.mxu0 0.0
      %1725 = vmatpush1.msra.mxu0 0.0
      %1726 = vmatprep.subr.mxu0 0.0
      %1727 = vmatpush1.msra.mxu0 0.0
      %1728 = vmatprep.subr.mxu0 0.0
      %1729 = vmatpush1.msra.mxu0 0.0
      %1730 = vmatprep.subr.mxu0 0.0
      %1731 = vmatpush1.msra.mxu0 0.0
      %1732 = vmatprep.subr.mxu0 0.0
      %1733 = vmatpush1.msra.mxu0 0.0
      %1734 = vmatprep.subr.mxu0 0.0
      %1735 = vmatpush1.msra.mxu0 0.0
      %1736 = vmatprep.mubr.f32.mxu0 0.0
      %1737 = vmatmul.mubr.f32.gmra.mrb[0].mxu0 %v1661
      %v1738 = vpop.f32.mrb[0].mxu0
      %v1739 = vadd.f32 0.0, %v1738
      %v1740 = vpop.f32.mrb[0].mxu0
      %1741 = vmatprep.mubr.f32.mxu0 0.0
      %1742 = vmatmul.mubr.f32.gmra.mrb[0].mxu0 %v1664
      %v1743 = vpop.f32.mrb[0].mxu0
      %v1744 = vadd.f32 0.0, %v1743
      %v1745 = vpop.f32.mrb[0].mxu0
      %1746 = vmatprep.mubr.f32.mxu0 0.0
      %1747 = vmatmul.mubr.f32.gmra.mrb[0].mxu0 %v1667
      %v1748 = vpop.f32.mrb[0].mxu0
      %v1749 = vadd.f32 0.0, %v1748
      %v1750 = vpop.f32.mrb[0].mxu0
      %1751 = vmatprep.mubr.f32.mxu0 0.0
      %1752 = vmatmul.mubr.f32.gmra.mrb[0].mxu0 %v1670
      %v1753 = vpop.f32.mrb[0].mxu0
      %v1754 = vadd.f32 0.0, %v1753
      %v1755 = vpop.f32.mrb[0].mxu0
      %1756 = vdwg.mxu0
      %v1758 = vsel %vm344, %v767, 0
      %v1761 = vsel %vm344, %v843, 0
      %v1764 = vsel %vm344, %v919, 0
      %v1767 = vsel %vm344, %v995, 0
      %1769 = vmatprep.subr.mxu0 0.0
      %1770 = vmatpush1.msra.mxu0 %v998
      %1771 = vmatprep.subr.mxu0 0.0
      %1772 = vmatpush1.msra.mxu0 0.0
      %1773 = vmatprep.subr.mxu0 0.0
      %1774 = vmatpush1.msra.mxu0 0.0
      %1775 = vmatprep.subr.mxu0 0.0
      %1776 = vmatpush1.msra.mxu0 0.0
      %1777 = vmatprep.subr.mxu0 0.0
      %1778 = vmatpush1.msra.mxu0 0.0
      %1779 = vmatprep.subr.mxu0 0.0
      %1780 = vmatpush1.msra.mxu0 0.0
      %1781 = vmatprep.subr.mxu0 0.0
      %1782 = vmatpush1.msra.mxu0 0.0
      %1783 = vmatprep.subr.mxu0 0.0
      %1784 = vmatpush1.msra.mxu0 0.0
      %1785 = vmatprep.subr.mxu0 0.0
      %1786 = vmatpush1.msra.mxu0 0.0
      %1787 = vmatprep.subr.mxu0 0.0
      %1788 = vmatpush1.msra.mxu0 0.0
      %1789 = vmatprep.subr.mxu0 0.0
      %1790 = vmatpush1.msra.mxu0 0.0
      %1791 = vmatprep.subr.mxu0 0.0
      %1792 = vmatpush1.msra.mxu0 0.0
      %1793 = vmatprep.subr.mxu0 0.0
      %1794 = vmatpush1.msra.mxu0 0.0
      %1795 = vmatprep.subr.mxu0 0.0
      %1796 = vmatpush1.msra.mxu0 0.0
      %1797 = vmatprep.subr.mxu0 0.0
      %1798 = vmatpush1.msra.mxu0 0.0
      %1799 = vmatprep.subr.mxu0 0.0
      %1800 = vmatpush1.msra.mxu0 0.0
      %1801 = vmatprep.subr.mxu0 0.0
      %1802 = vmatpush1.msra.mxu0 0.0
      %1803 = vmatprep.subr.mxu0 0.0
      %1804 = vmatpush1.msra.mxu0 0.0
      %1805 = vmatprep.subr.mxu0 0.0
      %1806 = vmatpush1.msra.mxu0 0.0
      %1807 = vmatprep.subr.mxu0 0.0
      %1808 = vmatpush1.msra.mxu0 0.0
      %1809 = vmatprep.subr.mxu0 0.0
      %1810 = vmatpush1.msra.mxu0 0.0
      %1811 = vmatprep.subr.mxu0 0.0
      %1812 = vmatpush1.msra.mxu0 0.0
      %1813 = vmatprep.subr.mxu0 0.0
      %1814 = vmatpush1.msra.mxu0 0.0
      %1815 = vmatprep.subr.mxu0 0.0
      %1816 = vmatpush1.msra.mxu0 0.0
      %1817 = vmatprep.subr.mxu0 0.0
      %1818 = vmatpush1.msra.mxu0 0.0
      %1819 = vmatprep.subr.mxu0 0.0
      %1820 = vmatpush1.msra.mxu0 0.0
      %1821 = vmatprep.subr.mxu0 0.0
      %1822 = vmatpush1.msra.mxu0 0.0
      %1823 = vmatprep.subr.mxu0 0.0
      %1824 = vmatpush1.msra.mxu0 0.0
      %1825 = vmatprep.subr.mxu0 0.0
      %1826 = vmatpush1.msra.mxu0 0.0
      %1827 = vmatprep.subr.mxu0 0.0
      %1828 = vmatpush1.msra.mxu0 0.0
      %1829 = vmatprep.subr.mxu0 0.0
      %1830 = vmatpush1.msra.mxu0 0.0
      %1831 = vmatprep.subr.mxu0 0.0
      %1832 = vmatpush1.msra.mxu0 0.0
      %1833 = vmatprep.mubr.f32.mxu0 0.0
      %1834 = vmatmul.mubr.f32.gmra.mrb[0].mxu0 %v1758
      %v1835 = vpop.f32.mrb[0].mxu0
      %v1836 = vadd.f32 %v1739, %v1835
      %v1837 = vpop.f32.mrb[0].mxu0
      %1838 = vmatprep.mubr.f32.mxu0 0.0
      %1839 = vmatmul.mubr.f32.gmra.mrb[0].mxu0 %v1761
      %v1840 = vpop.f32.mrb[0].mxu0
      %v1841 = vadd.f32 %v1744, %v1840
      %v1842 = vpop.f32.mrb[0].mxu0
      %1843 = vmatprep.mubr.f32.mxu0 0.0
      %1844 = vmatmul.mubr.f32.gmra.mrb[0].mxu0 %v1764
      %v1845 = vpop.f32.mrb[0].mxu0
      %v1846 = vadd.f32 %v1749, %v1845
      %v1847 = vpop.f32.mrb[0].mxu0
      %1848 = vmatprep.mubr.f32.mxu0 0.0
      %1849 = vmatmul.mubr.f32.gmra.mrb[0].mxu0 %v1767
      %v1850 = vpop.f32.mrb[0].mxu0
      %v1851 = vadd.f32 %v1754, %v1850
      %v1852 = vpop.f32.mrb[0].mxu0
      %1853 = vdwg.mxu0
      %1854 = vrot.lane.b32.xlu0 %v323, 112
      %v1855 = vpop.permute.xlu0 %1854
      %1856 = vrot.lane.b32.xlu0 %v323, 80
      %v1857 = vpop.permute.xlu0 %1856
      %v1858 = vsel %vm344, %v1855, 0
      %v1860 = vsel %vm344, %v1857, 0
      %1862 = vmatprep.subr.mxu0 0.0
      %1863 = vmatpush1.xpose.msra.mxu0 %v1860
      %1864 = vmatprep.subr.mxu0 0.0
      %1865 = vmatpush1.xpose.msra.mxu0 0.0
      %1866 = vmatprep.subr.mxu0 0.0
      %1867 = vmatpush1.xpose.msra.mxu0 0.0
      %1868 = vmatprep.subr.mxu0 0.0
      %1869 = vmatpush1.xpose.msra.mxu0 0.0
      %1870 = vmatprep.subr.mxu0 0.0
      %1871 = vmatpush1.xpose.msra.mxu0 0.0
      %1872 = vmatprep.subr.mxu0 0.0
      %1873 = vmatpush1.xpose.msra.mxu0 0.0
      %1874 = vmatprep.subr.mxu0 0.0
      %1875 = vmatpush1.xpose.msra.mxu0 0.0
      %1876 = vmatprep.subr.mxu0 0.0
      %1877 = vmatpush1.xpose.msra.mxu0 0.0
      %1878 = vmatprep.subr.mxu0 0.0
      %1879 = vmatpush1.xpose.msra.mxu0 0.0
      %1880 = vmatprep.subr.mxu0 0.0
      %1881 = vmatpush1.xpose.msra.mxu0 0.0
      %1882 = vmatprep.subr.mxu0 0.0
      %1883 = vmatpush1.xpose.msra.mxu0 0.0
      %1884 = vmatprep.subr.mxu0 0.0
      %1885 = vmatpush1.xpose.msra.mxu0 0.0
      %1886 = vmatprep.subr.mxu0 0.0
      %1887 = vmatpush1.xpose.msra.mxu0 0.0
      %1888 = vmatprep.subr.mxu0 0.0
      %1889 = vmatpush1.xpose.msra.mxu0 0.0
      %1890 = vmatprep.subr.mxu0 0.0
      %1891 = vmatpush1.xpose.msra.mxu0 0.0
      %1892 = vmatprep.subr.mxu0 0.0
      %1893 = vmatpush1.xpose.msra.mxu0 0.0
      %1894 = vmatprep.subr.mxu0 0.0
      %1895 = vmatpush1.xpose.msra.mxu0 0.0
      %1896 = vmatprep.subr.mxu0 0.0
      %1897 = vmatpush1.xpose.msra.mxu0 0.0
      %1898 = vmatprep.subr.mxu0 0.0
      %1899 = vmatpush1.xpose.msra.mxu0 0.0
      %1900 = vmatprep.subr.mxu0 0.0
      %1901 = vmatpush1.xpose.msra.mxu0 0.0
      %1902 = vmatprep.subr.mxu0 0.0
      %1903 = vmatpush1.xpose.msra.mxu0 0.0
      %1904 = vmatprep.subr.mxu0 0.0
      %1905 = vmatpush1.xpose.msra.mxu0 0.0
      %1906 = vmatprep.subr.mxu0 0.0
      %1907 = vmatpush1.xpose.msra.mxu0 0.0
      %1908 = vmatprep.subr.mxu0 0.0
      %1909 = vmatpush1.xpose.msra.mxu0 0.0
      %1910 = vmatprep.subr.mxu0 0.0
      %1911 = vmatpush1.xpose.msra.mxu0 0.0
      %1912 = vmatprep.subr.mxu0 0.0
      %1913 = vmatpush1.xpose.msra.mxu0 0.0
      %1914 = vmatprep.subr.mxu0 0.0
      %1915 = vmatpush1.xpose.msra.mxu0 0.0
      %1916 = vmatprep.subr.mxu0 0.0
      %1917 = vmatpush1.xpose.msra.mxu0 0.0
      %1918 = vmatprep.subr.mxu0 0.0
      %1919 = vmatpush1.xpose.msra.mxu0 0.0
      %1920 = vmatprep.subr.mxu0 0.0
      %1921 = vmatpush1.xpose.msra.mxu0 0.0
      %1922 = vmatprep.subr.mxu0 0.0
      %1923 = vmatpush1.xpose.msra.mxu0 0.0
      %1924 = vmatprep.subr.mxu0 0.0
      %1925 = vmatpush1.xpose.msra.mxu0 0.0
      %1926 = vmatprep.mubr.f32.mxu0 0.0
      %1927 = vmatmul.mubr.f32.gmra.mrb[0].mxu0 %v1858
      %v1928 = vpop.f32.mrb[0].mxu0
      %v1929 = vadd.f32 0.0, %v1928
      %v1930 = vpop.f32.mrb[0].mxu0
      %1931 = vdwg.mxu0
      %1932 = vrot.lane.b32.xlu0 %v328, 112
      %v1933 = vpop.permute.xlu0 %1932
      %1934 = vrot.lane.b32.xlu0 %v328, 80
      %v1935 = vpop.permute.xlu0 %1934
      %v1936 = vsel %vm344, %v1933, 0
      %v1938 = vsel %vm344, %v1935, 0
      %1940 = vmatprep.subr.mxu0 0.0
      %1941 = vmatpush1.xpose.msra.mxu0 %v1938
      %1942 = vmatprep.subr.mxu0 0.0
      %1943 = vmatpush1.xpose.msra.mxu0 0.0
      %1944 = vmatprep.subr.mxu0 0.0
      %1945 = vmatpush1.xpose.msra.mxu0 0.0
      %1946 = vmatprep.subr.mxu0 0.0
      %1947 = vmatpush1.xpose.msra.mxu0 0.0
      %1948 = vmatprep.subr.mxu0 0.0
      %1949 = vmatpush1.xpose.msra.mxu0 0.0
      %1950 = vmatprep.subr.mxu0 0.0
      %1951 = vmatpush1.xpose.msra.mxu0 0.0
      %1952 = vmatprep.subr.mxu0 0.0
      %1953 = vmatpush1.xpose.msra.mxu0 0.0
      %1954 = vmatprep.subr.mxu0 0.0
      %1955 = vmatpush1.xpose.msra.mxu0 0.0
      %1956 = vmatprep.subr.mxu0 0.0
      %1957 = vmatpush1.xpose.msra.mxu0 0.0
      %1958 = vmatprep.subr.mxu0 0.0
      %1959 = vmatpush1.xpose.msra.mxu0 0.0
      %1960 = vmatprep.subr.mxu0 0.0
      %1961 = vmatpush1.xpose.msra.mxu0 0.0
      %1962 = vmatprep.subr.mxu0 0.0
      %1963 = vmatpush1.xpose.msra.mxu0 0.0
      %1964 = vmatprep.subr.mxu0 0.0
      %1965 = vmatpush1.xpose.msra.mxu0 0.0
      %1966 = vmatprep.subr.mxu0 0.0
      %1967 = vmatpush1.xpose.msra.mxu0 0.0
      %1968 = vmatprep.subr.mxu0 0.0
      %1969 = vmatpush1.xpose.msra.mxu0 0.0
      %1970 = vmatprep.subr.mxu0 0.0
      %1971 = vmatpush1.xpose.msra.mxu0 0.0
      %1972 = vmatprep.subr.mxu0 0.0
      %1973 = vmatpush1.xpose.msra.mxu0 0.0
      %1974 = vmatprep.subr.mxu0 0.0
      %1975 = vmatpush1.xpose.msra.mxu0 0.0
      %1976 = vmatprep.subr.mxu0 0.0
      %1977 = vmatpush1.xpose.msra.mxu0 0.0
      %1978 = vmatprep.subr.mxu0 0.0
      %1979 = vmatpush1.xpose.msra.mxu0 0.0
      %1980 = vmatprep.subr.mxu0 0.0
      %1981 = vmatpush1.xpose.msra.mxu0 0.0
      %1982 = vmatprep.subr.mxu0 0.0
      %1983 = vmatpush1.xpose.msra.mxu0 0.0
      %1984 = vmatprep.subr.mxu0 0.0
      %1985 = vmatpush1.xpose.msra.mxu0 0.0
      %1986 = vmatprep.subr.mxu0 0.0
      %1987 = vmatpush1.xpose.msra.mxu0 0.0
      %1988 = vmatprep.subr.mxu0 0.0
      %1989 = vmatpush1.xpose.msra.mxu0 0.0
      %1990 = vmatprep.subr.mxu0 0.0
      %1991 = vmatpush1.xpose.msra.mxu0 0.0
      %1992 = vmatprep.subr.mxu0 0.0
      %1993 = vmatpush1.xpose.msra.mxu0 0.0
      %1994 = vmatprep.subr.mxu0 0.0
      %1995 = vmatpush1.xpose.msra.mxu0 0.0
      %1996 = vmatprep.subr.mxu0 0.0
      %1997 = vmatpush1.xpose.msra.mxu0 0.0
      %1998 = vmatprep.subr.mxu0 0.0
      %1999 = vmatpush1.xpose.msra.mxu0 0.0
      %2000 = vmatprep.subr.mxu0 0.0
      %2001 = vmatpush1.xpose.msra.mxu0 0.0
      %2002 = vmatprep.subr.mxu0 0.0
      %2003 = vmatpush1.xpose.msra.mxu0 0.0
      %2004 = vmatprep.mubr.f32.mxu0 0.0
      %2005 = vmatmul.mubr.f32.gmra.mrb[0].mxu0 %v1936
      %v2006 = vpop.f32.mrb[0].mxu0
      %v2007 = vadd.f32 0.0, %v2006
      %v2008 = vpop.f32.mrb[0].mxu0
      %2009 = vdwg.mxu0
      %2010 = vrot.lane.b32.xlu0 %v333, 112
      %v2011 = vpop.permute.xlu0 %2010
      %2012 = vrot.lane.b32.xlu0 %v333, 80
      %v2013 = vpop.permute.xlu0 %2012
      %v2014 = vsel %vm344, %v2011, 0
      %v2016 = vsel %vm344, %v2013, 0
      %2018 = vmatprep.subr.mxu0 0.0
      %2019 = vmatpush1.xpose.msra.mxu0 %v2016
      %2020 = vmatprep.subr.mxu0 0.0
      %2021 = vmatpush1.xpose.msra.mxu0 0.0
      %2022 = vmatprep.subr.mxu0 0.0
      %2023 = vmatpush1.xpose.msra.mxu0 0.0
      %2024 = vmatprep.subr.mxu0 0.0
      %2025 = vmatpush1.xpose.msra.mxu0 0.0
      %2026 = vmatprep.subr.mxu0 0.0
      %2027 = vmatpush1.xpose.msra.mxu0 0.0
      %2028 = vmatprep.subr.mxu0 0.0
      %2029 = vmatpush1.xpose.msra.mxu0 0.0
      %2030 = vmatprep.subr.mxu0 0.0
      %2031 = vmatpush1.xpose.msra.mxu0 0.0
      %2032 = vmatprep.subr.mxu0 0.0
      %2033 = vmatpush1.xpose.msra.mxu0 0.0
      %2034 = vmatprep.subr.mxu0 0.0
      %2035 = vmatpush1.xpose.msra.mxu0 0.0
      %2036 = vmatprep.subr.mxu0 0.0
      %2037 = vmatpush1.xpose.msra.mxu0 0.0
      %2038 = vmatprep.subr.mxu0 0.0
      %2039 = vmatpush1.xpose.msra.mxu0 0.0
      %2040 = vmatprep.subr.mxu0 0.0
      %2041 = vmatpush1.xpose.msra.mxu0 0.0
      %2042 = vmatprep.subr.mxu0 0.0
      %2043 = vmatpush1.xpose.msra.mxu0 0.0
      %2044 = vmatprep.subr.mxu0 0.0
      %2045 = vmatpush1.xpose.msra.mxu0 0.0
      %2046 = vmatprep.subr.mxu0 0.0
      %2047 = vmatpush1.xpose.msra.mxu0 0.0
      %2048 = vmatprep.subr.mxu0 0.0
      %2049 = vmatpush1.xpose.msra.mxu0 0.0
      %2050 = vmatprep.subr.mxu0 0.0
      %2051 = vmatpush1.xpose.msra.mxu0 0.0
      %2052 = vmatprep.subr.mxu0 0.0
      %2053 = vmatpush1.xpose.msra.mxu0 0.0
      %2054 = vmatprep.subr.mxu0 0.0
      %2055 = vmatpush1.xpose.msra.mxu0 0.0
      %2056 = vmatprep.subr.mxu0 0.0
      %2057 = vmatpush1.xpose.msra.mxu0 0.0
      %2058 = vmatprep.subr.mxu0 0.0
      %2059 = vmatpush1.xpose.msra.mxu0 0.0
      %2060 = vmatprep.subr.mxu0 0.0
      %2061 = vmatpush1.xpose.msra.mxu0 0.0
      %2062 = vmatprep.subr.mxu0 0.0
      %2063 = vmatpush1.xpose.msra.mxu0 0.0
      %2064 = vmatprep.subr.mxu0 0.0
      %2065 = vmatpush1.xpose.msra.mxu0 0.0
      %2066 = vmatprep.subr.mxu0 0.0
      %2067 = vmatpush1.xpose.msra.mxu0 0.0
      %2068 = vmatprep.subr.mxu0 0.0
      %2069 = vmatpush1.xpose.msra.mxu0 0.0
      %2070 = vmatprep.subr.mxu0 0.0
      %2071 = vmatpush1.xpose.msra.mxu0 0.0
      %2072 = vmatprep.subr.mxu0 0.0
      %2073 = vmatpush1.xpose.msra.mxu0 0.0
      %2074 = vmatprep.subr.mxu0 0.0
      %2075 = vmatpush1.xpose.msra.mxu0 0.0
      %2076 = vmatprep.subr.mxu0 0.0
      %2077 = vmatpush1.xpose.msra.mxu0 0.0
      %2078 = vmatprep.subr.mxu0 0.0
      %2079 = vmatpush1.xpose.msra.mxu0 0.0
      %2080 = vmatprep.subr.mxu0 0.0
      %2081 = vmatpush1.xpose.msra.mxu0 0.0
      %2082 = vmatprep.mubr.f32.mxu0 0.0
      %2083 = vmatmul.mubr.f32.gmra.mrb[0].mxu0 %v2014
      %v2084 = vpop.f32.mrb[0].mxu0
      %v2085 = vadd.f32 0.0, %v2084
      %v2086 = vpop.f32.mrb[0].mxu0
      %2087 = vdwg.mxu0
      %2088 = vrot.lane.b32.xlu0 %v338, 112
      %v2089 = vpop.permute.xlu0 %2088
      %2090 = vrot.lane.b32.xlu0 %v338, 80
      %v2091 = vpop.permute.xlu0 %2090
      %v2092 = vsel %vm344, %v2089, 0
      %v2094 = vsel %vm344, %v2091, 0
      %2096 = vmatprep.subr.mxu0 0.0
      %2097 = vmatpush1.xpose.msra.mxu0 %v2094
      %2098 = vmatprep.subr.mxu0 0.0
      %2099 = vmatpush1.xpose.msra.mxu0 0.0
      %2100 = vmatprep.subr.mxu0 0.0
      %2101 = vmatpush1.xpose.msra.mxu0 0.0
      %2102 = vmatprep.subr.mxu0 0.0
      %2103 = vmatpush1.xpose.msra.mxu0 0.0
      %2104 = vmatprep.subr.mxu0 0.0
      %2105 = vmatpush1.xpose.msra.mxu0 0.0
      %2106 = vmatprep.subr.mxu0 0.0
      %2107 = vmatpush1.xpose.msra.mxu0 0.0
      %2108 = vmatprep.subr.mxu0 0.0
      %2109 = vmatpush1.xpose.msra.mxu0 0.0
      %2110 = vmatprep.subr.mxu0 0.0
      %2111 = vmatpush1.xpose.msra.mxu0 0.0
      %2112 = vmatprep.subr.mxu0 0.0
      %2113 = vmatpush1.xpose.msra.mxu0 0.0
      %2114 = vmatprep.subr.mxu0 0.0
      %2115 = vmatpush1.xpose.msra.mxu0 0.0
      %2116 = vmatprep.subr.mxu0 0.0
      %2117 = vmatpush1.xpose.msra.mxu0 0.0
      %2118 = vmatprep.subr.mxu0 0.0
      %2119 = vmatpush1.xpose.msra.mxu0 0.0
      %2120 = vmatprep.subr.mxu0 0.0
      %2121 = vmatpush1.xpose.msra.mxu0 0.0
      %2122 = vmatprep.subr.mxu0 0.0
      %2123 = vmatpush1.xpose.msra.mxu0 0.0
      %2124 = vmatprep.subr.mxu0 0.0
      %2125 = vmatpush1.xpose.msra.mxu0 0.0
      %2126 = vmatprep.subr.mxu0 0.0
      %2127 = vmatpush1.xpose.msra.mxu0 0.0
      %2128 = vmatprep.subr.mxu0 0.0
      %2129 = vmatpush1.xpose.msra.mxu0 0.0
      %2130 = vmatprep.subr.mxu0 0.0
      %2131 = vmatpush1.xpose.msra.mxu0 0.0
      %2132 = vmatprep.subr.mxu0 0.0
      %2133 = vmatpush1.xpose.msra.mxu0 0.0
      %2134 = vmatprep.subr.mxu0 0.0
      %2135 = vmatpush1.xpose.msra.mxu0 0.0
      %2136 = vmatprep.subr.mxu0 0.0
      %2137 = vmatpush1.xpose.msra.mxu0 0.0
      %2138 = vmatprep.subr.mxu0 0.0
      %2139 = vmatpush1.xpose.msra.mxu0 0.0
      %2140 = vmatprep.subr.mxu0 0.0
      %2141 = vmatpush1.xpose.msra.mxu0 0.0
      %2142 = vmatprep.subr.mxu0 0.0
      %2143 = vmatpush1.xpose.msra.mxu0 0.0
      %2144 = vmatprep.subr.mxu0 0.0
      %2145 = vmatpush1.xpose.msra.mxu0 0.0
      %2146 = vmatprep.subr.mxu0 0.0
      %2147 = vmatpush1.xpose.msra.mxu0 0.0
      %2148 = vmatprep.subr.mxu0 0.0
      %2149 = vmatpush1.xpose.msra.mxu0 0.0
      %2150 = vmatprep.subr.mxu0 0.0
      %2151 = vmatpush1.xpose.msra.mxu0 0.0
      %2152 = vmatprep.subr.mxu0 0.0
      %2153 = vmatpush1.xpose.msra.mxu0 0.0
      %2154 = vmatprep.subr.mxu0 0.0
      %2155 = vmatpush1.xpose.msra.mxu0 0.0
      %2156 = vmatprep.subr.mxu0 0.0
      %2157 = vmatpush1.xpose.msra.mxu0 0.0
      %2158 = vmatprep.subr.mxu0 0.0
      %2159 = vmatpush1.xpose.msra.mxu0 0.0
      %2160 = vmatprep.mubr.f32.mxu0 0.0
      %2161 = vmatmul.mubr.f32.gmra.mrb[0].mxu0 %v2092
      %v2162 = vpop.f32.mrb[0].mxu0
      %v2163 = vadd.f32 0.0, %v2162
      %v2164 = vpop.f32.mrb[0].mxu0
      %2165 = vdwg.mxu0
      %v2166 = vsel %vm344, %v1929, -inf
      %2167 = vmax.xlane.f32.xlu0 %v2166
      %v2168 = vpop.xlane.xlu0 %2167
      %v2169 = vsel %vm344, %v2007, -inf
      %2170 = vmax.xlane.f32.xlu0 %v2169
      %v2171 = vpop.xlane.xlu0 %2170
      %v2172 = vsel %vm344, %v2085, -inf
      %2173 = vmax.xlane.f32.xlu0 %v2172
      %v2174 = vpop.xlane.xlu0 %2173
      %v2175 = vsel %vm344, %v2163, -inf
      %2176 = vmax.xlane.f32.xlu0 %v2175
      %v2177 = vpop.xlane.xlu0 %2176
      %v2178 = vsub.f32 %v1929, %v2168
      %v2179 = vsub.f32 %v2007, %v2171
      %v2180 = vsub.f32 %v2085, %v2174
      %v2181 = vsub.f32 %v2163, %v2177
      %v2182 = vmul.f32 %v2178, 1.442695
      %v2183 = vpow.pop %v2182
      %v2184 = vmul.f32 %v2179, 1.442695
      %v2185 = vpow.pop %v2184
      %v2186 = vmul.f32 %v2180, 1.442695
      %v2187 = vpow.pop %v2186
      %v2188 = vmul.f32 %v2181, 1.442695
      %v2189 = vpow.pop %v2188
      %v2190 = vsel %vm344, %v2183, 0.0
      %2191 = vadd.xlane.f32.xlu0 %v2190
      %v2192 = vpop.xlane.xlu0 %2191
      %v2193 = vsel %vm344, %v2185, 0.0
      %2194 = vadd.xlane.f32.xlu0 %v2193
      %v2195 = vpop.xlane.xlu0 %2194
      %v2196 = vsel %vm344, %v2187, 0.0
      %2197 = vadd.xlane.f32.xlu0 %v2196
      %v2198 = vpop.xlane.xlu0 %2197
      %v2199 = vsel %vm344, %v2189, 0.0
      %2200 = vadd.xlane.f32.xlu0 %v2199
      %v2201 = vpop.xlane.xlu0 %2200
      %v2202 = vrcp.pop %v2192
      %v2203 = vrcp.pop %v2195
      %v2204 = vrcp.pop %v2198
      %v2205 = vrcp.pop %v2201
      %v2206 = vmul.f32 %v2183, %v2202
      %v2207 = vmul.f32 %v2185, %v2203
      %v2208 = vmul.f32 %v2187, %v2204
      %v2209 = vmul.f32 %v2189, %v2205
      %2210 = vrot.lane.b32.xlu0 %v323, 48
      %v2211 = vpop.permute.xlu0 %2210
      %v2214 = vsel %vm344, %v2206, 0
      %2216 = vmatprep.subr.mxu0 0.0
      %2217 = vmatpush1.msra.mxu0 %v2211
      %2218 = vmatprep.subr.mxu0 0.0
      %2219 = vmatpush1.msra.mxu0 0.0
      %2220 = vmatprep.subr.mxu0 0.0
      %2221 = vmatpush1.msra.mxu0 0.0
      %2222 = vmatprep.subr.mxu0 0.0
      %2223 = vmatpush1.msra.mxu0 0.0
      %2224 = vmatprep.subr.mxu0 0.0
      %2225 = vmatpush1.msra.mxu0 0.0
      %2226 = vmatprep.subr.mxu0 0.0
      %2227 = vmatpush1.msra.mxu0 0.0
      %2228 = vmatprep.subr.mxu0 0.0
      %2229 = vmatpush1.msra.mxu0 0.0
      %2230 = vmatprep.subr.mxu0 0.0
      %2231 = vmatpush1.msra.mxu0 0.0
      %2232 = vmatprep.subr.mxu0 0.0
      %2233 = vmatpush1.msra.mxu0 0.0
      %2234 = vmatprep.subr.mxu0 0.0
      %2235 = vmatpush1.msra.mxu0 0.0
      %2236 = vmatprep.subr.mxu0 0.0
      %2237 = vmatpush1.msra.mxu0 0.0
      %2238 = vmatprep.subr.mxu0 0.0
      %2239 = vmatpush1.msra.mxu0 0.0
      %2240 = vmatprep.subr.mxu0 0.0
      %2241 = vmatpush1.msra.mxu0 0.0
      %2242 = vmatprep.subr.mxu0 0.0
      %2243 = vmatpush1.msra.mxu0 0.0
      %2244 = vmatprep.subr.mxu0 0.0
      %2245 = vmatpush1.msra.mxu0 0.0
      %2246 = vmatprep.subr.mxu0 0.0
      %2247 = vmatpush1.msra.mxu0 0.0
      %2248 = vmatprep.subr.mxu0 0.0
      %2249 = vmatpush1.msra.mxu0 0.0
      %2250 = vmatprep.subr.mxu0 0.0
      %2251 = vmatpush1.msra.mxu0 0.0
      %2252 = vmatprep.subr.mxu0 0.0
      %2253 = vmatpush1.msra.mxu0 0.0
      %2254 = vmatprep.subr.mxu0 0.0
      %2255 = vmatpush1.msra.mxu0 0.0
      %2256 = vmatprep.subr.mxu0 0.0
      %2257 = vmatpush1.msra.mxu0 0.0
      %2258 = vmatprep.subr.mxu0 0.0
      %2259 = vmatpush1.msra.mxu0 0.0
      %2260 = vmatprep.subr.mxu0 0.0
      %2261 = vmatpush1.msra.mxu0 0.0
      %2262 = vmatprep.subr.mxu0 0.0
      %2263 = vmatpush1.msra.mxu0 0.0
      %2264 = vmatprep.subr.mxu0 0.0
      %2265 = vmatpush1.msra.mxu0 0.0
      %2266 = vmatprep.subr.mxu0 0.0
      %2267 = vmatpush1.msra.mxu0 0.0
      %2268 = vmatprep.subr.mxu0 0.0
      %2269 = vmatpush1.msra.mxu0 0.0
      %2270 = vmatprep.subr.mxu0 0.0
      %2271 = vmatpush1.msra.mxu0 0.0
      %2272 = vmatprep.subr.mxu0 0.0
      %2273 = vmatpush1.msra.mxu0 0.0
      %2274 = vmatprep.subr.mxu0 0.0
      %2275 = vmatpush1.msra.mxu0 0.0
      %2276 = vmatprep.subr.mxu0 0.0
      %2277 = vmatpush1.msra.mxu0 0.0
      %2278 = vmatprep.subr.mxu0 0.0
      %2279 = vmatpush1.msra.mxu0 0.0
      %2280 = vmatprep.mubr.f32.mxu0 0.0
      %2281 = vmatmul.mubr.f32.gmra.mrb[0].mxu0 %v2214
      %v2282 = vpop.f32.mrb[0].mxu0
      %v2283 = vadd.f32 0.0, %v2282
      %v2284 = vpop.f32.mrb[0].mxu0
      %2285 = vdwg.mxu0
      %2286 = vrot.lane.b32.xlu0 %v328, 48
      %v2287 = vpop.permute.xlu0 %2286
      %v2290 = vsel %vm344, %v2207, 0
      %2292 = vmatprep.subr.mxu0 0.0
      %2293 = vmatpush1.msra.mxu0 %v2287
      %2294 = vmatprep.subr.mxu0 0.0
      %2295 = vmatpush1.msra.mxu0 0.0
      %2296 = vmatprep.subr.mxu0 0.0
      %2297 = vmatpush1.msra.mxu0 0.0
      %2298 = vmatprep.subr.mxu0 0.0
      %2299 = vmatpush1.msra.mxu0 0.0
      %2300 = vmatprep.subr.mxu0 0.0
      %2301 = vmatpush1.msra.mxu0 0.0
      %2302 = vmatprep.subr.mxu0 0.0
      %2303 = vmatpush1.msra.mxu0 0.0
      %2304 = vmatprep.subr.mxu0 0.0
      %2305 = vmatpush1.msra.mxu0 0.0
      %2306 = vmatprep.subr.mxu0 0.0
      %2307 = vmatpush1.msra.mxu0 0.0
      %2308 = vmatprep.subr.mxu0 0.0
      %2309 = vmatpush1.msra.mxu0 0.0
      %2310 = vmatprep.subr.mxu0 0.0
      %2311 = vmatpush1.msra.mxu0 0.0
      %2312 = vmatprep.subr.mxu0 0.0
      %2313 = vmatpush1.msra.mxu0 0.0
      %2314 = vmatprep.subr.mxu0 0.0
      %2315 = vmatpush1.msra.mxu0 0.0
      %2316 = vmatprep.subr.mxu0 0.0
      %2317 = vmatpush1.msra.mxu0 0.0
      %2318 = vmatprep.subr.mxu0 0.0
      %2319 = vmatpush1.msra.mxu0 0.0
      %2320 = vmatprep.subr.mxu0 0.0
      %2321 = vmatpush1.msra.mxu0 0.0
      %2322 = vmatprep.subr.mxu0 0.0
      %2323 = vmatpush1.msra.mxu0 0.0
      %2324 = vmatprep.subr.mxu0 0.0
      %2325 = vmatpush1.msra.mxu0 0.0
      %2326 = vmatprep.subr.mxu0 0.0
      %2327 = vmatpush1.msra.mxu0 0.0
      %2328 = vmatprep.subr.mxu0 0.0
      %2329 = vmatpush1.msra.mxu0 0.0
      %2330 = vmatprep.subr.mxu0 0.0
      %2331 = vmatpush1.msra.mxu0 0.0
      %2332 = vmatprep.subr.mxu0 0.0
      %2333 = vmatpush1.msra.mxu0 0.0
      %2334 = vmatprep.subr.mxu0 0.0
      %2335 = vmatpush1.msra.mxu0 0.0
      %2336 = vmatprep.subr.mxu0 0.0
      %2337 = vmatpush1.msra.mxu0 0.0
      %2338 = vmatprep.subr.mxu0 0.0
      %2339 = vmatpush1.msra.mxu0 0.0
      %2340 = vmatprep.subr.mxu0 0.0
      %2341 = vmatpush1.msra.mxu0 0.0
      %2342 = vmatprep.subr.mxu0 0.0
      %2343 = vmatpush1.msra.mxu0 0.0
      %2344 = vmatprep.subr.mxu0 0.0
      %2345 = vmatpush1.msra.mxu0 0.0
      %2346 = vmatprep.subr.mxu0 0.0
      %2347 = vmatpush1.msra.mxu0 0.0
      %2348 = vmatprep.subr.mxu0 0.0
      %2349 = vmatpush1.msra.mxu0 0.0
      %2350 = vmatprep.subr.mxu0 0.0
      %2351 = vmatpush1.msra.mxu0 0.0
      %2352 = vmatprep.subr.mxu0 0.0
      %2353 = vmatpush1.msra.mxu0 0.0
      %2354 = vmatprep.subr.mxu0 0.0
      %2355 = vmatpush1.msra.mxu0 0.0
      %2356 = vmatprep.mubr.f32.mxu0 0.0
      %2357 = vmatmul.mubr.f32.gmra.mrb[0].mxu0 %v2290
      %v2358 = vpop.f32.mrb[0].mxu0
      %v2359 = vadd.f32 0.0, %v2358
      %v2360 = vpop.f32.mrb[0].mxu0
      %2361 = vdwg.mxu0
      %2362 = vrot.lane.b32.xlu0 %v333, 48
      %v2363 = vpop.permute.xlu0 %2362
      %v2366 = vsel %vm344, %v2208, 0
      %2368 = vmatprep.subr.mxu0 0.0
      %2369 = vmatpush1.msra.mxu0 %v2363
      %2370 = vmatprep.subr.mxu0 0.0
      %2371 = vmatpush1.msra.mxu0 0.0
      %2372 = vmatprep.subr.mxu0 0.0
      %2373 = vmatpush1.msra.mxu0 0.0
      %2374 = vmatprep.subr.mxu0 0.0
      %2375 = vmatpush1.msra.mxu0 0.0
      %2376 = vmatprep.subr.mxu0 0.0
      %2377 = vmatpush1.msra.mxu0 0.0
      %2378 = vmatprep.subr.mxu0 0.0
      %2379 = vmatpush1.msra.mxu0 0.0
      %2380 = vmatprep.subr.mxu0 0.0
      %2381 = vmatpush1.msra.mxu0 0.0
      %2382 = vmatprep.subr.mxu0 0.0
      %2383 = vmatpush1.msra.mxu0 0.0
      %2384 = vmatprep.subr.mxu0 0.0
      %2385 = vmatpush1.msra.mxu0 0.0
      %2386 = vmatprep.subr.mxu0 0.0
      %2387 = vmatpush1.msra.mxu0 0.0
      %2388 = vmatprep.subr.mxu0 0.0
      %2389 = vmatpush1.msra.mxu0 0.0
      %2390 = vmatprep.subr.mxu0 0.0
      %2391 = vmatpush1.msra.mxu0 0.0
      %2392 = vmatprep.subr.mxu0 0.0
      %2393 = vmatpush1.msra.mxu0 0.0
      %2394 = vmatprep.subr.mxu0 0.0
      %2395 = vmatpush1.msra.mxu0 0.0
      %2396 = vmatprep.subr.mxu0 0.0
      %2397 = vmatpush1.msra.mxu0 0.0
      %2398 = vmatprep.subr.mxu0 0.0
      %2399 = vmatpush1.msra.mxu0 0.0
      %2400 = vmatprep.subr.mxu0 0.0
      %2401 = vmatpush1.msra.mxu0 0.0
      %2402 = vmatprep.subr.mxu0 0.0
      %2403 = vmatpush1.msra.mxu0 0.0
      %2404 = vmatprep.subr.mxu0 0.0
      %2405 = vmatpush1.msra.mxu0 0.0
      %2406 = vmatprep.subr.mxu0 0.0
      %2407 = vmatpush1.msra.mxu0 0.0
      %2408 = vmatprep.subr.mxu0 0.0
      %2409 = vmatpush1.msra.mxu0 0.0
      %2410 = vmatprep.subr.mxu0 0.0
      %2411 = vmatpush1.msra.mxu0 0.0
      %2412 = vmatprep.subr.mxu0 0.0
      %2413 = vmatpush1.msra.mxu0 0.0
      %2414 = vmatprep.subr.mxu0 0.0
      %2415 = vmatpush1.msra.mxu0 0.0
      %2416 = vmatprep.subr.mxu0 0.0
      %2417 = vmatpush1.msra.mxu0 0.0
      %2418 = vmatprep.subr.mxu0 0.0
      %2419 = vmatpush1.msra.mxu0 0.0
      %2420 = vmatprep.subr.mxu0 0.0
      %2421 = vmatpush1.msra.mxu0 0.0
      %2422 = vmatprep.subr.mxu0 0.0
      %2423 = vmatpush1.msra.mxu0 0.0
      %2424 = vmatprep.subr.mxu0 0.0
      %2425 = vmatpush1.msra.mxu0 0.0
      %2426 = vmatprep.subr.mxu0 0.0
      %2427 = vmatpush1.msra.mxu0 0.0
      %2428 = vmatprep.subr.mxu0 0.0
      %2429 = vmatpush1.msra.mxu0 0.0
      %2430 = vmatprep.subr.mxu0 0.0
      %2431 = vmatpush1.msra.mxu0 0.0
      %2432 = vmatprep.mubr.f32.mxu0 0.0
      %2433 = vmatmul.mubr.f32.gmra.mrb[0].mxu0 %v2366
      %v2434 = vpop.f32.mrb[0].mxu0
      %v2435 = vadd.f32 0.0, %v2434
      %v2436 = vpop.f32.mrb[0].mxu0
      %2437 = vdwg.mxu0
      %2438 = vrot.lane.b32.xlu0 %v338, 48
      %v2439 = vpop.permute.xlu0 %2438
      %v2442 = vsel %vm344, %v2209, 0
      %2444 = vmatprep.subr.mxu0 0.0
      %2445 = vmatpush1.msra.mxu0 %v2439
      %2446 = vmatprep.subr.mxu0 0.0
      %2447 = vmatpush1.msra.mxu0 0.0
      %2448 = vmatprep.subr.mxu0 0.0
      %2449 = vmatpush1.msra.mxu0 0.0
      %2450 = vmatprep.subr.mxu0 0.0
      %2451 = vmatpush1.msra.mxu0 0.0
      %2452 = vmatprep.subr.mxu0 0.0
      %2453 = vmatpush1.msra.mxu0 0.0
      %2454 = vmatprep.subr.mxu0 0.0
      %2455 = vmatpush1.msra.mxu0 0.0
      %2456 = vmatprep.subr.mxu0 0.0
      %2457 = vmatpush1.msra.mxu0 0.0
      %2458 = vmatprep.subr.mxu0 0.0
      %2459 = vmatpush1.msra.mxu0 0.0
      %2460 = vmatprep.subr.mxu0 0.0
      %2461 = vmatpush1.msra.mxu0 0.0
      %2462 = vmatprep.subr.mxu0 0.0
      %2463 = vmatpush1.msra.mxu0 0.0
      %2464 = vmatprep.subr.mxu0 0.0
      %2465 = vmatpush1.msra.mxu0 0.0
      %2466 = vmatprep.subr.mxu0 0.0
      %2467 = vmatpush1.msra.mxu0 0.0
      %2468 = vmatprep.subr.mxu0 0.0
      %2469 = vmatpush1.msra.mxu0 0.0
      %2470 = vmatprep.subr.mxu0 0.0
      %2471 = vmatpush1.msra.mxu0 0.0
      %2472 = vmatprep.subr.mxu0 0.0
      %2473 = vmatpush1.msra.mxu0 0.0
      %2474 = vmatprep.subr.mxu0 0.0
      %2475 = vmatpush1.msra.mxu0 0.0
      %2476 = vmatprep.subr.mxu0 0.0
      %2477 = vmatpush1.msra.mxu0 0.0
      %2478 = vmatprep.subr.mxu0 0.0
      %2479 = vmatpush1.msra.mxu0 0.0
      %2480 = vmatprep.subr.mxu0 0.0
      %2481 = vmatpush1.msra.mxu0 0.0
      %2482 = vmatprep.subr.mxu0 0.0
      %2483 = vmatpush1.msra.mxu0 0.0
      %2484 = vmatprep.subr.mxu0 0.0
      %2485 = vmatpush1.msra.mxu0 0.0
      %2486 = vmatprep.subr.mxu0 0.0
      %2487 = vmatpush1.msra.mxu0 0.0
      %2488 = vmatprep.subr.mxu0 0.0
      %2489 = vmatpush1.msra.mxu0 0.0
      %2490 = vmatprep.subr.mxu0 0.0
      %2491 = vmatpush1.msra.mxu0 0.0
      %2492 = vmatprep.subr.mxu0 0.0
      %2493 = vmatpush1.msra.mxu0 0.0
      %2494 = vmatprep.subr.mxu0 0.0
      %2495 = vmatpush1.msra.mxu0 0.0
      %2496 = vmatprep.subr.mxu0 0.0
      %2497 = vmatpush1.msra.mxu0 0.0
      %2498 = vmatprep.subr.mxu0 0.0
      %2499 = vmatpush1.msra.mxu0 0.0
      %2500 = vmatprep.subr.mxu0 0.0
      %2501 = vmatpush1.msra.mxu0 0.0
      %2502 = vmatprep.subr.mxu0 0.0
      %2503 = vmatpush1.msra.mxu0 0.0
      %2504 = vmatprep.subr.mxu0 0.0
      %2505 = vmatpush1.msra.mxu0 0.0
      %2506 = vmatprep.subr.mxu0 0.0
      %2507 = vmatpush1.msra.mxu0 0.0
      %2508 = vmatprep.mubr.f32.mxu0 0.0
      %2509 = vmatmul.mubr.f32.gmra.mrb[0].mxu0 %v2442
      %v2510 = vpop.f32.mrb[0].mxu0
      %v2511 = vadd.f32 0.0, %v2510
      %v2512 = vpop.f32.mrb[0].mxu0
      %2513 = vdwg.mxu0
      %v2514 = vld [vmem:[%s3 + $0x10] sm:$0xff]
      %v2516 = vsel %vm344, %v2283, 0
      %v2519 = vsel %vm344, %v2359, 0
      %v2522 = vsel %vm344, %v2435, 0
      %v2525 = vsel %vm344, %v2511, 0
      %2527 = vmatprep.subr.mxu0 0.0
      %2528 = vmatpush1.msra.mxu0 %v2514
      %2529 = vmatprep.subr.mxu0 0.0
      %2530 = vmatpush1.msra.mxu0 0.0
      %2531 = vmatprep.subr.mxu0 0.0
      %2532 = vmatpush1.msra.mxu0 0.0
      %2533 = vmatprep.subr.mxu0 0.0
      %2534 = vmatpush1.msra.mxu0 0.0
      %2535 = vmatprep.subr.mxu0 0.0
      %2536 = vmatpush1.msra.mxu0 0.0
      %2537 = vmatprep.subr.mxu0 0.0
      %2538 = vmatpush1.msra.mxu0 0.0
      %2539 = vmatprep.subr.mxu0 0.0
      %2540 = vmatpush1.msra.mxu0 0.0
      %2541 = vmatprep.subr.mxu0 0.0
      %2542 = vmatpush1.msra.mxu0 0.0
      %2543 = vmatprep.subr.mxu0 0.0
      %2544 = vmatpush1.msra.mxu0 0.0
      %2545 = vmatprep.subr.mxu0 0.0
      %2546 = vmatpush1.msra.mxu0 0.0
      %2547 = vmatprep.subr.mxu0 0.0
      %2548 = vmatpush1.msra.mxu0 0.0
      %2549 = vmatprep.subr.mxu0 0.0
      %2550 = vmatpush1.msra.mxu0 0.0
      %2551 = vmatprep.subr.mxu0 0.0
      %2552 = vmatpush1.msra.mxu0 0.0
      %2553 = vmatprep.subr.mxu0 0.0
      %2554 = vmatpush1.msra.mxu0 0.0
      %2555 = vmatprep.subr.mxu0 0.0
      %2556 = vmatpush1.msra.mxu0 0.0
      %2557 = vmatprep.subr.mxu0 0.0
      %2558 = vmatpush1.msra.mxu0 0.0
      %2559 = vmatprep.subr.mxu0 0.0
      %2560 = vmatpush1.msra.mxu0 0.0
      %2561 = vmatprep.subr.mxu0 0.0
      %2562 = vmatpush1.msra.mxu0 0.0
      %2563 = vmatprep.subr.mxu0 0.0
      %2564 = vmatpush1.msra.mxu0 0.0
      %2565 = vmatprep.subr.mxu0 0.0
      %2566 = vmatpush1.msra.mxu0 0.0
      %2567 = vmatprep.subr.mxu0 0.0
      %2568 = vmatpush1.msra.mxu0 0.0
      %2569 = vmatprep.subr.mxu0 0.0
      %2570 = vmatpush1.msra.mxu0 0.0
      %2571 = vmatprep.subr.mxu0 0.0
      %2572 = vmatpush1.msra.mxu0 0.0
      %2573 = vmatprep.subr.mxu0 0.0
      %2574 = vmatpush1.msra.mxu0 0.0
      %2575 = vmatprep.subr.mxu0 0.0
      %2576 = vmatpush1.msra.mxu0 0.0
      %2577 = vmatprep.subr.mxu0 0.0
      %2578 = vmatpush1.msra.mxu0 0.0
      %2579 = vmatprep.subr.mxu0 0.0
      %2580 = vmatpush1.msra.mxu0 0.0
      %2581 = vmatprep.subr.mxu0 0.0
      %2582 = vmatpush1.msra.mxu0 0.0
      %2583 = vmatprep.subr.mxu0 0.0
      %2584 = vmatpush1.msra.mxu0 0.0
      %2585 = vmatprep.subr.mxu0 0.0
      %2586 = vmatpush1.msra.mxu0 0.0
      %2587 = vmatprep.subr.mxu0 0.0
      %2588 = vmatpush1.msra.mxu0 0.0
      %2589 = vmatprep.subr.mxu0 0.0
      %2590 = vmatpush1.msra.mxu0 0.0
      %2591 = vmatprep.mubr.f32.mxu0 0.0
      %2592 = vmatmul.mubr.f32.gmra.mrb[0].mxu0 %v2516
      %v2593 = vpop.f32.mrb[0].mxu0
      %v2594 = vadd.f32 0.0, %v2593
      %v2595 = vpop.f32.mrb[0].mxu0
      %2596 = vmatprep.mubr.f32.mxu0 0.0
      %2597 = vmatmul.mubr.f32.gmra.mrb[0].mxu0 %v2519
      %v2598 = vpop.f32.mrb[0].mxu0
      %v2599 = vadd.f32 0.0, %v2598
      %v2600 = vpop.f32.mrb[0].mxu0
      %2601 = vmatprep.mubr.f32.mxu0 0.0
      %2602 = vmatmul.mubr.f32.gmra.mrb[0].mxu0 %v2522
      %v2603 = vpop.f32.mrb[0].mxu0
      %v2604 = vadd.f32 0.0, %v2603
      %v2605 = vpop.f32.mrb[0].mxu0
      %2606 = vmatprep.mubr.f32.mxu0 0.0
      %2607 = vmatmul.mubr.f32.gmra.mrb[0].mxu0 %v2525
      %v2608 = vpop.f32.mrb[0].mxu0
      %v2609 = vadd.f32 0.0, %v2608
      %v2610 = vpop.f32.mrb[0].mxu0
      %2611 = vdwg.mxu0
      %v2612 = vadd.f32 %v1836, %v2594
      %v2613 = vadd.f32 %v1841, %v2599
      %v2614 = vadd.f32 %v1846, %v2604
      %v2615 = vadd.f32 %v1851, %v2609
      %2616 = vrot.lane.b32.xlu0 %v323, 104
      %v2617 = vpop.permute.xlu0 %2616
      %2618 = vrot.lane.b32.xlu0 %v323, 72
      %v2619 = vpop.permute.xlu0 %2618
      %v2620 = vsel %vm344, %v2617, 0
      %v2622 = vsel %vm344, %v2619, 0
      %2624 = vmatprep.subr.mxu0 0.0
      %2625 = vmatpush1.xpose.msra.mxu0 %v2622
      %2626 = vmatprep.subr.mxu0 0.0
      %2627 = vmatpush1.xpose.msra.mxu0 0.0
      %2628 = vmatprep.subr.mxu0 0.0
      %2629 = vmatpush1.xpose.msra.mxu0 0.0
      %2630 = vmatprep.subr.mxu0 0.0
      %2631 = vmatpush1.xpose.msra.mxu0 0.0
      %2632 = vmatprep.subr.mxu0 0.0
      %2633 = vmatpush1.xpose.msra.mxu0 0.0
      %2634 = vmatprep.subr.mxu0 0.0
      %2635 = vmatpush1.xpose.msra.mxu0 0.0
      %2636 = vmatprep.subr.mxu0 0.0
      %2637 = vmatpush1.xpose.msra.mxu0 0.0
      %2638 = vmatprep.subr.mxu0 0.0
      %2639 = vmatpush1.xpose.msra.mxu0 0.0
      %2640 = vmatprep.subr.mxu0 0.0
      %2641 = vmatpush1.xpose.msra.mxu0 0.0
      %2642 = vmatprep.subr.mxu0 0.0
      %2643 = vmatpush1.xpose.msra.mxu0 0.0
      %2644 = vmatprep.subr.mxu0 0.0
      %2645 = vmatpush1.xpose.msra.mxu0 0.0
      %2646 = vmatprep.subr.mxu0 0.0
      %2647 = vmatpush1.xpose.msra.mxu0 0.0
      %2648 = vmatprep.subr.mxu0 0.0
      %2649 = vmatpush1.xpose.msra.mxu0 0.0
      %2650 = vmatprep.subr.mxu0 0.0
      %2651 = vmatpush1.xpose.msra.mxu0 0.0
      %2652 = vmatprep.subr.mxu0 0.0
      %2653 = vmatpush1.xpose.msra.mxu0 0.0
      %2654 = vmatprep.subr.mxu0 0.0
      %2655 = vmatpush1.xpose.msra.mxu0 0.0
      %2656 = vmatprep.subr.mxu0 0.0
      %2657 = vmatpush1.xpose.msra.mxu0 0.0
      %2658 = vmatprep.subr.mxu0 0.0
      %2659 = vmatpush1.xpose.msra.mxu0 0.0
      %2660 = vmatprep.subr.mxu0 0.0
      %2661 = vmatpush1.xpose.msra.mxu0 0.0
      %2662 = vmatprep.subr.mxu0 0.0
      %2663 = vmatpush1.xpose.msra.mxu0 0.0
      %2664 = vmatprep.subr.mxu0 0.0
      %2665 = vmatpush1.xpose.msra.mxu0 0.0
      %2666 = vmatprep.subr.mxu0 0.0
      %2667 = vmatpush1.xpose.msra.mxu0 0.0
      %2668 = vmatprep.subr.mxu0 0.0
      %2669 = vmatpush1.xpose.msra.mxu0 0.0
      %2670 = vmatprep.subr.mxu0 0.0
      %2671 = vmatpush1.xpose.msra.mxu0 0.0
      %2672 = vmatprep.subr.mxu0 0.0
      %2673 = vmatpush1.xpose.msra.mxu0 0.0
      %2674 = vmatprep.subr.mxu0 0.0
      %2675 = vmatpush1.xpose.msra.mxu0 0.0
      %2676 = vmatprep.subr.mxu0 0.0
      %2677 = vmatpush1.xpose.msra.mxu0 0.0
      %2678 = vmatprep.subr.mxu0 0.0
      %2679 = vmatpush1.xpose.msra.mxu0 0.0
      %2680 = vmatprep.subr.mxu0 0.0
      %2681 = vmatpush1.xpose.msra.mxu0 0.0
      %2682 = vmatprep.subr.mxu0 0.0
      %2683 = vmatpush1.xpose.msra.mxu0 0.0
      %2684 = vmatprep.subr.mxu0 0.0
      %2685 = vmatpush1.xpose.msra.mxu0 0.0
      %2686 = vmatprep.subr.mxu0 0.0
      %2687 = vmatpush1.xpose.msra.mxu0 0.0
      %2688 = vmatprep.mubr.f32.mxu0 0.0
      %2689 = vmatmul.mubr.f32.gmra.mrb[0].mxu0 %v2620
      %v2690 = vpop.f32.mrb[0].mxu0
      %v2691 = vadd.f32 0.0, %v2690
      %v2692 = vpop.f32.mrb[0].mxu0
      %2693 = vdwg.mxu0
      %2694 = vrot.lane.b32.xlu0 %v328, 104
      %v2695 = vpop.permute.xlu0 %2694
      %2696 = vrot.lane.b32.xlu0 %v328, 72
      %v2697 = vpop.permute.xlu0 %2696
      %v2698 = vsel %vm344, %v2695, 0
      %v2700 = vsel %vm344, %v2697, 0
      %2702 = vmatprep.subr.mxu0 0.0
      %2703 = vmatpush1.xpose.msra.mxu0 %v2700
      %2704 = vmatprep.subr.mxu0 0.0
      %2705 = vmatpush1.xpose.msra.mxu0 0.0
      %2706 = vmatprep.subr.mxu0 0.0
      %2707 = vmatpush1.xpose.msra.mxu0 0.0
      %2708 = vmatprep.subr.mxu0 0.0
      %2709 = vmatpush1.xpose.msra.mxu0 0.0
      %2710 = vmatprep.subr.mxu0 0.0
      %2711 = vmatpush1.xpose.msra.mxu0 0.0
      %2712 = vmatprep.subr.mxu0 0.0
      %2713 = vmatpush1.xpose.msra.mxu0 0.0
      %2714 = vmatprep.subr.mxu0 0.0
      %2715 = vmatpush1.xpose.msra.mxu0 0.0
      %2716 = vmatprep.subr.mxu0 0.0
      %2717 = vmatpush1.xpose.msra.mxu0 0.0
      %2718 = vmatprep.subr.mxu0 0.0
      %2719 = vmatpush1.xpose.msra.mxu0 0.0
      %2720 = vmatprep.subr.mxu0 0.0
      %2721 = vmatpush1.xpose.msra.mxu0 0.0
      %2722 = vmatprep.subr.mxu0 0.0
      %2723 = vmatpush1.xpose.msra.mxu0 0.0
      %2724 = vmatprep.subr.mxu0 0.0
      %2725 = vmatpush1.xpose.msra.mxu0 0.0
      %2726 = vmatprep.subr.mxu0 0.0
      %2727 = vmatpush1.xpose.msra.mxu0 0.0
      %2728 = vmatprep.subr.mxu0 0.0
      %2729 = vmatpush1.xpose.msra.mxu0 0.0
      %2730 = vmatprep.subr.mxu0 0.0
      %2731 = vmatpush1.xpose.msra.mxu0 0.0
      %2732 = vmatprep.subr.mxu0 0.0
      %2733 = vmatpush1.xpose.msra.mxu0 0.0
      %2734 = vmatprep.subr.mxu0 0.0
      %2735 = vmatpush1.xpose.msra.mxu0 0.0
      %2736 = vmatprep.subr.mxu0 0.0
      %2737 = vmatpush1.xpose.msra.mxu0 0.0
      %2738 = vmatprep.subr.mxu0 0.0
      %2739 = vmatpush1.xpose.msra.mxu0 0.0
      %2740 = vmatprep.subr.mxu0 0.0
      %2741 = vmatpush1.xpose.msra.mxu0 0.0
      %2742 = vmatprep.subr.mxu0 0.0
      %2743 = vmatpush1.xpose.msra.mxu0 0.0
      %2744 = vmatprep.subr.mxu0 0.0
      %2745 = vmatpush1.xpose.msra.mxu0 0.0
      %2746 = vmatprep.subr.mxu0 0.0
      %2747 = vmatpush1.xpose.msra.mxu0 0.0
      %2748 = vmatprep.subr.mxu0 0.0
      %2749 = vmatpush1.xpose.msra.mxu0 0.0
      %2750 = vmatprep.subr.mxu0 0.0
      %2751 = vmatpush1.xpose.msra.mxu0 0.0
      %2752 = vmatprep.subr.mxu0 0.0
      %2753 = vmatpush1.xpose.msra.mxu0 0.0
      %2754 = vmatprep.subr.mxu0 0.0
      %2755 = vmatpush1.xpose.msra.mxu0 0.0
      %2756 = vmatprep.subr.mxu0 0.0
      %2757 = vmatpush1.xpose.msra.mxu0 0.0
      %2758 = vmatprep.subr.mxu0 0.0
      %2759 = vmatpush1.xpose.msra.mxu0 0.0
      %2760 = vmatprep.subr.mxu0 0.0
      %2761 = vmatpush1.xpose.msra.mxu0 0.0
      %2762 = vmatprep.subr.mxu0 0.0
      %2763 = vmatpush1.xpose.msra.mxu0 0.0
      %2764 = vmatprep.subr.mxu0 0.0
      %2765 = vmatpush1.xpose.msra.mxu0 0.0
      %2766 = vmatprep.mubr.f32.mxu0 0.0
      %2767 = vmatmul.mubr.f32.gmra.mrb[0].mxu0 %v2698
      %v2768 = vpop.f32.mrb[0].mxu0
      %v2769 = vadd.f32 0.0, %v2768
      %v2770 = vpop.f32.mrb[0].mxu0
      %2771 = vdwg.mxu0
      %2772 = vrot.lane.b32.xlu0 %v333, 104
      %v2773 = vpop.permute.xlu0 %2772
      %2774 = vrot.lane.b32.xlu0 %v333, 72
      %v2775 = vpop.permute.xlu0 %2774
      %v2776 = vsel %vm344, %v2773, 0
      %v2778 = vsel %vm344, %v2775, 0
      %2780 = vmatprep.subr.mxu0 0.0
      %2781 = vmatpush1.xpose.msra.mxu0 %v2778
      %2782 = vmatprep.subr.mxu0 0.0
      %2783 = vmatpush1.xpose.msra.mxu0 0.0
      %2784 = vmatprep.subr.mxu0 0.0
      %2785 = vmatpush1.xpose.msra.mxu0 0.0
      %2786 = vmatprep.subr.mxu0 0.0
      %2787 = vmatpush1.xpose.msra.mxu0 0.0
      %2788 = vmatprep.subr.mxu0 0.0
      %2789 = vmatpush1.xpose.msra.mxu0 0.0
      %2790 = vmatprep.subr.mxu0 0.0
      %2791 = vmatpush1.xpose.msra.mxu0 0.0
      %2792 = vmatprep.subr.mxu0 0.0
      %2793 = vmatpush1.xpose.msra.mxu0 0.0
      %2794 = vmatprep.subr.mxu0 0.0
      %2795 = vmatpush1.xpose.msra.mxu0 0.0
      %2796 = vmatprep.subr.mxu0 0.0
      %2797 = vmatpush1.xpose.msra.mxu0 0.0
      %2798 = vmatprep.subr.mxu0 0.0
      %2799 = vmatpush1.xpose.msra.mxu0 0.0
      %2800 = vmatprep.subr.mxu0 0.0
      %2801 = vmatpush1.xpose.msra.mxu0 0.0
      %2802 = vmatprep.subr.mxu0 0.0
      %2803 = vmatpush1.xpose.msra.mxu0 0.0
      %2804 = vmatprep.subr.mxu0 0.0
      %2805 = vmatpush1.xpose.msra.mxu0 0.0
      %2806 = vmatprep.subr.mxu0 0.0
      %2807 = vmatpush1.xpose.msra.mxu0 0.0
      %2808 = vmatprep.subr.mxu0 0.0
      %2809 = vmatpush1.xpose.msra.mxu0 0.0
      %2810 = vmatprep.subr.mxu0 0.0
      %2811 = vmatpush1.xpose.msra.mxu0 0.0
      %2812 = vmatprep.subr.mxu0 0.0
      %2813 = vmatpush1.xpose.msra.mxu0 0.0
      %2814 = vmatprep.subr.mxu0 0.0
      %2815 = vmatpush1.xpose.msra.mxu0 0.0
      %2816 = vmatprep.subr.mxu0 0.0
      %2817 = vmatpush1.xpose.msra.mxu0 0.0
      %2818 = vmatprep.subr.mxu0 0.0
      %2819 = vmatpush1.xpose.msra.mxu0 0.0
      %2820 = vmatprep.subr.mxu0 0.0
      %2821 = vmatpush1.xpose.msra.mxu0 0.0
      %2822 = vmatprep.subr.mxu0 0.0
      %2823 = vmatpush1.xpose.msra.mxu0 0.0
      %2824 = vmatprep.subr.mxu0 0.0
      %2825 = vmatpush1.xpose.msra.mxu0 0.0
      %2826 = vmatprep.subr.mxu0 0.0
      %2827 = vmatpush1.xpose.msra.mxu0 0.0
      %2828 = vmatprep.subr.mxu0 0.0
      %2829 = vmatpush1.xpose.msra.mxu0 0.0
      %2830 = vmatprep.subr.mxu0 0.0
      %2831 = vmatpush1.xpose.msra.mxu0 0.0
      %2832 = vmatprep.subr.mxu0 0.0
      %2833 = vmatpush1.xpose.msra.mxu0 0.0
      %2834 = vmatprep.subr.mxu0 0.0
      %2835 = vmatpush1.xpose.msra.mxu0 0.0
      %2836 = vmatprep.subr.mxu0 0.0
      %2837 = vmatpush1.xpose.msra.mxu0 0.0
      %2838 = vmatprep.subr.mxu0 0.0
      %2839 = vmatpush1.xpose.msra.mxu0 0.0
      %2840 = vmatprep.subr.mxu0 0.0
      %2841 = vmatpush1.xpose.msra.mxu0 0.0
      %2842 = vmatprep.subr.mxu0 0.0
      %2843 = vmatpush1.xpose.msra.mxu0 0.0
      %2844 = vmatprep.mubr.f32.mxu0 0.0
      %2845 = vmatmul.mubr.f32.gmra.mrb[0].mxu0 %v2776
      %v2846 = vpop.f32.mrb[0].mxu0
      %v2847 = vadd.f32 0.0, %v2846
      %v2848 = vpop.f32.mrb[0].mxu0
      %2849 = vdwg.mxu0
      %2850 = vrot.lane.b32.xlu0 %v338, 104
      %v2851 = vpop.permute.xlu0 %2850
      %2852 = vrot.lane.b32.xlu0 %v338, 72
      %v2853 = vpop.permute.xlu0 %2852
      %v2854 = vsel %vm344, %v2851, 0
      %v2856 = vsel %vm344, %v2853, 0
      %2858 = vmatprep.subr.mxu0 0.0
      %2859 = vmatpush1.xpose.msra.mxu0 %v2856
      %2860 = vmatprep.subr.mxu0 0.0
      %2861 = vmatpush1.xpose.msra.mxu0 0.0
      %2862 = vmatprep.subr.mxu0 0.0
      %2863 = vmatpush1.xpose.msra.mxu0 0.0
      %2864 = vmatprep.subr.mxu0 0.0
      %2865 = vmatpush1.xpose.msra.mxu0 0.0
      %2866 = vmatprep.subr.mxu0 0.0
      %2867 = vmatpush1.xpose.msra.mxu0 0.0
      %2868 = vmatprep.subr.mxu0 0.0
      %2869 = vmatpush1.xpose.msra.mxu0 0.0
      %2870 = vmatprep.subr.mxu0 0.0
      %2871 = vmatpush1.xpose.msra.mxu0 0.0
      %2872 = vmatprep.subr.mxu0 0.0
      %2873 = vmatpush1.xpose.msra.mxu0 0.0
      %2874 = vmatprep.subr.mxu0 0.0
      %2875 = vmatpush1.xpose.msra.mxu0 0.0
      %2876 = vmatprep.subr.mxu0 0.0
      %2877 = vmatpush1.xpose.msra.mxu0 0.0
      %2878 = vmatprep.subr.mxu0 0.0
      %2879 = vmatpush1.xpose.msra.mxu0 0.0
      %2880 = vmatprep.subr.mxu0 0.0
      %2881 = vmatpush1.xpose.msra.mxu0 0.0
      %2882 = vmatprep.subr.mxu0 0.0
      %2883 = vmatpush1.xpose.msra.mxu0 0.0
      %2884 = vmatprep.subr.mxu0 0.0
      %2885 = vmatpush1.xpose.msra.mxu0 0.0
      %2886 = vmatprep.subr.mxu0 0.0
      %2887 = vmatpush1.xpose.msra.mxu0 0.0
      %2888 = vmatprep.subr.mxu0 0.0
      %2889 = vmatpush1.xpose.msra.mxu0 0.0
      %2890 = vmatprep.subr.mxu0 0.0
      %2891 = vmatpush1.xpose.msra.mxu0 0.0
      %2892 = vmatprep.subr.mxu0 0.0
      %2893 = vmatpush1.xpose.msra.mxu0 0.0
      %2894 = vmatprep.subr.mxu0 0.0
      %2895 = vmatpush1.xpose.msra.mxu0 0.0
      %2896 = vmatprep.subr.mxu0 0.0
      %2897 = vmatpush1.xpose.msra.mxu0 0.0
      %2898 = vmatprep.subr.mxu0 0.0
      %2899 = vmatpush1.xpose.msra.mxu0 0.0
      %2900 = vmatprep.subr.mxu0 0.0
      %2901 = vmatpush1.xpose.msra.mxu0 0.0
      %2902 = vmatprep.subr.mxu0 0.0
      %2903 = vmatpush1.xpose.msra.mxu0 0.0
      %2904 = vmatprep.subr.mxu0 0.0
      %2905 = vmatpush1.xpose.msra.mxu0 0.0
      %2906 = vmatprep.subr.mxu0 0.0
      %2907 = vmatpush1.xpose.msra.mxu0 0.0
      %2908 = vmatprep.subr.mxu0 0.0
      %2909 = vmatpush1.xpose.msra.mxu0 0.0
      %2910 = vmatprep.subr.mxu0 0.0
      %2911 = vmatpush1.xpose.msra.mxu0 0.0
      %2912 = vmatprep.subr.mxu0 0.0
      %2913 = vmatpush1.xpose.msra.mxu0 0.0
      %2914 = vmatprep.subr.mxu0 0.0
      %2915 = vmatpush1.xpose.msra.mxu0 0.0
      %2916 = vmatprep.subr.mxu0 0.0
      %2917 = vmatpush1.xpose.msra.mxu0 0.0
      %2918 = vmatprep.subr.mxu0 0.0
      %2919 = vmatpush1.xpose.msra.mxu0 0.0
      %2920 = vmatprep.subr.mxu0 0.0
      %2921 = vmatpush1.xpose.msra.mxu0 0.0
      %2922 = vmatprep.mubr.f32.mxu0 0.0
      %2923 = vmatmul.mubr.f32.gmra.mrb[0].mxu0 %v2854
      %v2924 = vpop.f32.mrb[0].mxu0
      %v2925 = vadd.f32 0.0, %v2924
      %v2926 = vpop.f32.mrb[0].mxu0
      %2927 = vdwg.mxu0
      %v2928 = vsel %vm344, %v2691, -inf
      %2929 = vmax.xlane.f32.xlu0 %v2928
      %v2930 = vpop.xlane.xlu0 %2929
      %v2931 = vsel %vm344, %v2769, -inf
      %2932 = vmax.xlane.f32.xlu0 %v2931
      %v2933 = vpop.xlane.xlu0 %2932
      %v2934 = vsel %vm344, %v2847, -inf
      %2935 = vmax.xlane.f32.xlu0 %v2934
      %v2936 = vpop.xlane.xlu0 %2935
      %v2937 = vsel %vm344, %v2925, -inf
      %2938 = vmax.xlane.f32.xlu0 %v2937
      %v2939 = vpop.xlane.xlu0 %2938
      %v2940 = vsub.f32 %v2691, %v2930
      %v2941 = vsub.f32 %v2769, %v2933
      %v2942 = vsub.f32 %v2847, %v2936
      %v2943 = vsub.f32 %v2925, %v2939
      %v2944 = vmul.f32 %v2940, 1.442695
      %v2945 = vpow.pop %v2944
      %v2946 = vmul.f32 %v2941, 1.442695
      %v2947 = vpow.pop %v2946
      %v2948 = vmul.f32 %v2942, 1.442695
      %v2949 = vpow.pop %v2948
      %v2950 = vmul.f32 %v2943, 1.442695
      %v2951 = vpow.pop %v2950
      %v2952 = vsel %vm344, %v2945, 0.0
      %2953 = vadd.xlane.f32.xlu0 %v2952
      %v2954 = vpop.xlane.xlu0 %2953
      %v2955 = vsel %vm344, %v2947, 0.0
      %2956 = vadd.xlane.f32.xlu0 %v2955
      %v2957 = vpop.xlane.xlu0 %2956
      %v2958 = vsel %vm344, %v2949, 0.0
      %2959 = vadd.xlane.f32.xlu0 %v2958
      %v2960 = vpop.xlane.xlu0 %2959
      %v2961 = vsel %vm344, %v2951, 0.0
      %2962 = vadd.xlane.f32.xlu0 %v2961
      %v2963 = vpop.xlane.xlu0 %2962
      %v2964 = vrcp.pop %v2954
      %v2965 = vrcp.pop %v2957
      %v2966 = vrcp.pop %v2960
      %v2967 = vrcp.pop %v2963
      %v2968 = vmul.f32 %v2945, %v2964
      %v2969 = vmul.f32 %v2947, %v2965
      %v2970 = vmul.f32 %v2949, %v2966
      %v2971 = vmul.f32 %v2951, %v2967
      %2972 = vrot.lane.b32.xlu0 %v323, 40
      %v2973 = vpop.permute.xlu0 %2972
      %v2976 = vsel %vm344, %v2968, 0
      %2978 = vmatprep.subr.mxu0 0.0
      %2979 = vmatpush1.msra.mxu0 %v2973
      %2980 = vmatprep.subr.mxu0 0.0
      %2981 = vmatpush1.msra.mxu0 0.0
      %2982 = vmatprep.subr.mxu0 0.0
      %2983 = vmatpush1.msra.mxu0 0.0
      %2984 = vmatprep.subr.mxu0 0.0
      %2985 = vmatpush1.msra.mxu0 0.0
      %2986 = vmatprep.subr.mxu0 0.0
      %2987 = vmatpush1.msra.mxu0 0.0
      %2988 = vmatprep.subr.mxu0 0.0
      %2989 = vmatpush1.msra.mxu0 0.0
      %2990 = vmatprep.subr.mxu0 0.0
      %2991 = vmatpush1.msra.mxu0 0.0
      %2992 = vmatprep.subr.mxu0 0.0
      %2993 = vmatpush1.msra.mxu0 0.0
      %2994 = vmatprep.subr.mxu0 0.0
      %2995 = vmatpush1.msra.mxu0 0.0
      %2996 = vmatprep.subr.mxu0 0.0
      %2997 = vmatpush1.msra.mxu0 0.0
      %2998 = vmatprep.subr.mxu0 0.0
      %2999 = vmatpush1.msra.mxu0 0.0
      %3000 = vmatprep.subr.mxu0 0.0
      %3001 = vmatpush1.msra.mxu0 0.0
      %3002 = vmatprep.subr.mxu0 0.0
      %3003 = vmatpush1.msra.mxu0 0.0
      %3004 = vmatprep.subr.mxu0 0.0
      %3005 = vmatpush1.msra.mxu0 0.0
      %3006 = vmatprep.subr.mxu0 0.0
      %3007 = vmatpush1.msra.mxu0 0.0
      %3008 = vmatprep.subr.mxu0 0.0
      %3009 = vmatpush1.msra.mxu0 0.0
      %3010 = vmatprep.subr.mxu0 0.0
      %3011 = vmatpush1.msra.mxu0 0.0
      %3012 = vmatprep.subr.mxu0 0.0
      %3013 = vmatpush1.msra.mxu0 0.0
      %3014 = vmatprep.subr.mxu0 0.0
      %3015 = vmatpush1.msra.mxu0 0.0
      %3016 = vmatprep.subr.mxu0 0.0
      %3017 = vmatpush1.msra.mxu0 0.0
      %3018 = vmatprep.subr.mxu0 0.0
      %3019 = vmatpush1.msra.mxu0 0.0
      %3020 = vmatprep.subr.mxu0 0.0
      %3021 = vmatpush1.msra.mxu0 0.0
      %3022 = vmatprep.subr.mxu0 0.0
      %3023 = vmatpush1.msra.mxu0 0.0
      %3024 = vmatprep.subr.mxu0 0.0
      %3025 = vmatpush1.msra.mxu0 0.0
      %3026 = vmatprep.subr.mxu0 0.0
      %3027 = vmatpush1.msra.mxu0 0.0
      %3028 = vmatprep.subr.mxu0 0.0
      %3029 = vmatpush1.msra.mxu0 0.0
      %3030 = vmatprep.subr.mxu0 0.0
      %3031 = vmatpush1.msra.mxu0 0.0
      %3032 = vmatprep.subr.mxu0 0.0
      %3033 = vmatpush1.msra.mxu0 0.0
      %3034 = vmatprep.subr.mxu0 0.0
      %3035 = vmatpush1.msra.mxu0 0.0
      %3036 = vmatprep.subr.mxu0 0.0
      %3037 = vmatpush1.msra.mxu0 0.0
      %3038 = vmatprep.subr.mxu0 0.0
      %3039 = vmatpush1.msra.mxu0 0.0
      %3040 = vmatprep.subr.mxu0 0.0
      %3041 = vmatpush1.msra.mxu0 0.0
      %3042 = vmatprep.mubr.f32.mxu0 0.0
      %3043 = vmatmul.mubr.f32.gmra.mrb[0].mxu0 %v2976
      %v3044 = vpop.f32.mrb[0].mxu0
      %v3045 = vadd.f32 0.0, %v3044
      %v3046 = vpop.f32.mrb[0].mxu0
      %3047 = vdwg.mxu0
      %3048 = vrot.lane.b32.xlu0 %v328, 40
      %v3049 = vpop.permute.xlu0 %3048
      %v3052 = vsel %vm344, %v2969, 0
      %3054 = vmatprep.subr.mxu0 0.0
      %3055 = vmatpush1.msra.mxu0 %v3049
      %3056 = vmatprep.subr.mxu0 0.0
      %3057 = vmatpush1.msra.mxu0 0.0
      %3058 = vmatprep.subr.mxu0 0.0
      %3059 = vmatpush1.msra.mxu0 0.0
      %3060 = vmatprep.subr.mxu0 0.0
      %3061 = vmatpush1.msra.mxu0 0.0
      %3062 = vmatprep.subr.mxu0 0.0
      %3063 = vmatpush1.msra.mxu0 0.0
      %3064 = vmatprep.subr.mxu0 0.0
      %3065 = vmatpush1.msra.mxu0 0.0
      %3066 = vmatprep.subr.mxu0 0.0
      %3067 = vmatpush1.msra.mxu0 0.0
      %3068 = vmatprep.subr.mxu0 0.0
      %3069 = vmatpush1.msra.mxu0 0.0
      %3070 = vmatprep.subr.mxu0 0.0
      %3071 = vmatpush1.msra.mxu0 0.0
      %3072 = vmatprep.subr.mxu0 0.0
      %3073 = vmatpush1.msra.mxu0 0.0
      %3074 = vmatprep.subr.mxu0 0.0
      %3075 = vmatpush1.msra.mxu0 0.0
      %3076 = vmatprep.subr.mxu0 0.0
      %3077 = vmatpush1.msra.mxu0 0.0
      %3078 = vmatprep.subr.mxu0 0.0
      %3079 = vmatpush1.msra.mxu0 0.0
      %3080 = vmatprep.subr.mxu0 0.0
      %3081 = vmatpush1.msra.mxu0 0.0
      %3082 = vmatprep.subr.mxu0 0.0
      %3083 = vmatpush1.msra.mxu0 0.0
      %3084 = vmatprep.subr.mxu0 0.0
      %3085 = vmatpush1.msra.mxu0 0.0
      %3086 = vmatprep.subr.mxu0 0.0
      %3087 = vmatpush1.msra.mxu0 0.0
      %3088 = vmatprep.subr.mxu0 0.0
      %3089 = vmatpush1.msra.mxu0 0.0
      %3090 = vmatprep.subr.mxu0 0.0
      %3091 = vmatpush1.msra.mxu0 0.0
      %3092 = vmatprep.subr.mxu0 0.0
      %3093 = vmatpush1.msra.mxu0 0.0
      %3094 = vmatprep.subr.mxu0 0.0
      %3095 = vmatpush1.msra.mxu0 0.0
      %3096 = vmatprep.subr.mxu0 0.0
      %3097 = vmatpush1.msra.mxu0 0.0
      %3098 = vmatprep.subr.mxu0 0.0
      %3099 = vmatpush1.msra.mxu0 0.0
      %3100 = vmatprep.subr.mxu0 0.0
      %3101 = vmatpush1.msra.mxu0 0.0
      %3102 = vmatprep.subr.mxu0 0.0
      %3103 = vmatpush1.msra.mxu0 0.0
      %3104 = vmatprep.subr.mxu0 0.0
      %3105 = vmatpush1.msra.mxu0 0.0
      %3106 = vmatprep.subr.mxu0 0.0
      %3107 = vmatpush1.msra.mxu0 0.0
      %3108 = vmatprep.subr.mxu0 0.0
      %3109 = vmatpush1.msra.mxu0 0.0
      %3110 = vmatprep.subr.mxu0 0.0
      %3111 = vmatpush1.msra.mxu0 0.0
      %3112 = vmatprep.subr.mxu0 0.0
      %3113 = vmatpush1.msra.mxu0 0.0
      %3114 = vmatprep.subr.mxu0 0.0
      %3115 = vmatpush1.msra.mxu0 0.0
      %3116 = vmatprep.subr.mxu0 0.0
      %3117 = vmatpush1.msra.mxu0 0.0
      %3118 = vmatprep.mubr.f32.mxu0 0.0
      %3119 = vmatmul.mubr.f32.gmra.mrb[0].mxu0 %v3052
      %v3120 = vpop.f32.mrb[0].mxu0
      %v3121 = vadd.f32 0.0, %v3120
      %v3122 = vpop.f32.mrb[0].mxu0
      %3123 = vdwg.mxu0
      %3124 = vrot.lane.b32.xlu0 %v333, 40
      %v3125 = vpop.permute.xlu0 %3124
      %v3128 = vsel %vm344, %v2970, 0
      %3130 = vmatprep.subr.mxu0 0.0
      %3131 = vmatpush1.msra.mxu0 %v3125
      %3132 = vmatprep.subr.mxu0 0.0
      %3133 = vmatpush1.msra.mxu0 0.0
      %3134 = vmatprep.subr.mxu0 0.0
      %3135 = vmatpush1.msra.mxu0 0.0
      %3136 = vmatprep.subr.mxu0 0.0
      %3137 = vmatpush1.msra.mxu0 0.0
      %3138 = vmatprep.subr.mxu0 0.0
      %3139 = vmatpush1.msra.mxu0 0.0
      %3140 = vmatprep.subr.mxu0 0.0
      %3141 = vmatpush1.msra.mxu0 0.0
      %3142 = vmatprep.subr.mxu0 0.0
      %3143 = vmatpush1.msra.mxu0 0.0
      %3144 = vmatprep.subr.mxu0 0.0
      %3145 = vmatpush1.msra.mxu0 0.0
      %3146 = vmatprep.subr.mxu0 0.0
      %3147 = vmatpush1.msra.mxu0 0.0
      %3148 = vmatprep.subr.mxu0 0.0
      %3149 = vmatpush1.msra.mxu0 0.0
      %3150 = vmatprep.subr.mxu0 0.0
      %3151 = vmatpush1.msra.mxu0 0.0
      %3152 = vmatprep.subr.mxu0 0.0
      %3153 = vmatpush1.msra.mxu0 0.0
      %3154 = vmatprep.subr.mxu0 0.0
      %3155 = vmatpush1.msra.mxu0 0.0
      %3156 = vmatprep.subr.mxu0 0.0
      %3157 = vmatpush1.msra.mxu0 0.0
      %3158 = vmatprep.subr.mxu0 0.0
      %3159 = vmatpush1.msra.mxu0 0.0
      %3160 = vmatprep.subr.mxu0 0.0
      %3161 = vmatpush1.msra.mxu0 0.0
      %3162 = vmatprep.subr.mxu0 0.0
      %3163 = vmatpush1.msra.mxu0 0.0
      %3164 = vmatprep.subr.mxu0 0.0
      %3165 = vmatpush1.msra.mxu0 0.0
      %3166 = vmatprep.subr.mxu0 0.0
      %3167 = vmatpush1.msra.mxu0 0.0
      %3168 = vmatprep.subr.mxu0 0.0
      %3169 = vmatpush1.msra.mxu0 0.0
      %3170 = vmatprep.subr.mxu0 0.0
      %3171 = vmatpush1.msra.mxu0 0.0
      %3172 = vmatprep.subr.mxu0 0.0
      %3173 = vmatpush1.msra.mxu0 0.0
      %3174 = vmatprep.subr.mxu0 0.0
      %3175 = vmatpush1.msra.mxu0 0.0
      %3176 = vmatprep.subr.mxu0 0.0
      %3177 = vmatpush1.msra.mxu0 0.0
      %3178 = vmatprep.subr.mxu0 0.0
      %3179 = vmatpush1.msra.mxu0 0.0
      %3180 = vmatprep.subr.mxu0 0.0
      %3181 = vmatpush1.msra.mxu0 0.0
      %3182 = vmatprep.subr.mxu0 0.0
      %3183 = vmatpush1.msra.mxu0 0.0
      %3184 = vmatprep.subr.mxu0 0.0
      %3185 = vmatpush1.msra.mxu0 0.0
      %3186 = vmatprep.subr.mxu0 0.0
      %3187 = vmatpush1.msra.mxu0 0.0
      %3188 = vmatprep.subr.mxu0 0.0
      %3189 = vmatpush1.msra.mxu0 0.0
      %3190 = vmatprep.subr.mxu0 0.0
      %3191 = vmatpush1.msra.mxu0 0.0
      %3192 = vmatprep.subr.mxu0 0.0
      %3193 = vmatpush1.msra.mxu0 0.0
      %3194 = vmatprep.mubr.f32.mxu0 0.0
      %3195 = vmatmul.mubr.f32.gmra.mrb[0].mxu0 %v3128
      %v3196 = vpop.f32.mrb[0].mxu0
      %v3197 = vadd.f32 0.0, %v3196
      %v3198 = vpop.f32.mrb[0].mxu0
      %3199 = vdwg.mxu0
      %3200 = vrot.lane.b32.xlu0 %v338, 40
      %v3201 = vpop.permute.xlu0 %3200
      %v3204 = vsel %vm344, %v2971, 0
      %3206 = vmatprep.subr.mxu0 0.0
      %3207 = vmatpush1.msra.mxu0 %v3201
      %3208 = vmatprep.subr.mxu0 0.0
      %3209 = vmatpush1.msra.mxu0 0.0
      %3210 = vmatprep.subr.mxu0 0.0
      %3211 = vmatpush1.msra.mxu0 0.0
      %3212 = vmatprep.subr.mxu0 0.0
      %3213 = vmatpush1.msra.mxu0 0.0
      %3214 = vmatprep.subr.mxu0 0.0
      %3215 = vmatpush1.msra.mxu0 0.0
      %3216 = vmatprep.subr.mxu0 0.0
      %3217 = vmatpush1.msra.mxu0 0.0
      %3218 = vmatprep.subr.mxu0 0.0
      %3219 = vmatpush1.msra.mxu0 0.0
      %3220 = vmatprep.subr.mxu0 0.0
      %3221 = vmatpush1.msra.mxu0 0.0
      %3222 = vmatprep.subr.mxu0 0.0
      %3223 = vmatpush1.msra.mxu0 0.0
      %3224 = vmatprep.subr.mxu0 0.0
      %3225 = vmatpush1.msra.mxu0 0.0
      %3226 = vmatprep.subr.mxu0 0.0
      %3227 = vmatpush1.msra.mxu0 0.0
      %3228 = vmatprep.subr.mxu0 0.0
      %3229 = vmatpush1.msra.mxu0 0.0
      %3230 = vmatprep.subr.mxu0 0.0
      %3231 = vmatpush1.msra.mxu0 0.0
      %3232 = vmatprep.subr.mxu0 0.0
      %3233 = vmatpush1.msra.mxu0 0.0
      %3234 = vmatprep.subr.mxu0 0.0
      %3235 = vmatpush1.msra.mxu0 0.0
      %3236 = vmatprep.subr.mxu0 0.0
      %3237 = vmatpush1.msra.mxu0 0.0
      %3238 = vmatprep.subr.mxu0 0.0
      %3239 = vmatpush1.msra.mxu0 0.0
      %3240 = vmatprep.subr.mxu0 0.0
      %3241 = vmatpush1.msra.mxu0 0.0
      %3242 = vmatprep.subr.mxu0 0.0
      %3243 = vmatpush1.msra.mxu0 0.0
      %3244 = vmatprep.subr.mxu0 0.0
      %3245 = vmatpush1.msra.mxu0 0.0
      %3246 = vmatprep.subr.mxu0 0.0
      %3247 = vmatpush1.msra.mxu0 0.0
      %3248 = vmatprep.subr.mxu0 0.0
      %3249 = vmatpush1.msra.mxu0 0.0
      %3250 = vmatprep.subr.mxu0 0.0
      %3251 = vmatpush1.msra.mxu0 0.0
      %3252 = vmatprep.subr.mxu0 0.0
      %3253 = vmatpush1.msra.mxu0 0.0
      %3254 = vmatprep.subr.mxu0 0.0
      %3255 = vmatpush1.msra.mxu0 0.0
      %3256 = vmatprep.subr.mxu0 0.0
      %3257 = vmatpush1.msra.mxu0 0.0
      %3258 = vmatprep.subr.mxu0 0.0
      %3259 = vmatpush1.msra.mxu0 0.0
      %3260 = vmatprep.subr.mxu0 0.0
      %3261 = vmatpush1.msra.mxu0 0.0
      %3262 = vmatprep.subr.mxu0 0.0
      %3263 = vmatpush1.msra.mxu0 0.0
      %3264 = vmatprep.subr.mxu0 0.0
      %3265 = vmatpush1.msra.mxu0 0.0
      %3266 = vmatprep.subr.mxu0 0.0
      %3267 = vmatpush1.msra.mxu0 0.0
      %3268 = vmatprep.subr.mxu0 0.0
      %3269 = vmatpush1.msra.mxu0 0.0
      %3270 = vmatprep.mubr.f32.mxu0 0.0
      %3271 = vmatmul.mubr.f32.gmra.mrb[0].mxu0 %v3204
      %v3272 = vpop.f32.mrb[0].mxu0
      %v3273 = vadd.f32 0.0, %v3272
      %v3274 = vpop.f32.mrb[0].mxu0
      %3275 = vdwg.mxu0
      %v3276 = vld [vmem:[%s3 + $0x18] sm:$0xff]
      %v3278 = vsel %vm344, %v3045, 0
      %v3281 = vsel %vm344, %v3121, 0
      %v3284 = vsel %vm344, %v3197, 0
      %v3287 = vsel %vm344, %v3273, 0
      %3289 = vmatprep.subr.mxu0 0.0
      %3290 = vmatpush1.msra.mxu0 %v3276
      %3291 = vmatprep.subr.mxu0 0.0
      %3292 = vmatpush1.msra.mxu0 0.0
      %3293 = vmatprep.subr.mxu0 0.0
      %3294 = vmatpush1.msra.mxu0 0.0
      %3295 = vmatprep.subr.mxu0 0.0
      %3296 = vmatpush1.msra.mxu0 0.0
      %3297 = vmatprep.subr.mxu0 0.0
      %3298 = vmatpush1.msra.mxu0 0.0
      %3299 = vmatprep.subr.mxu0 0.0
      %3300 = vmatpush1.msra.mxu0 0.0
      %3301 = vmatprep.subr.mxu0 0.0
      %3302 = vmatpush1.msra.mxu0 0.0
      %3303 = vmatprep.subr.mxu0 0.0
      %3304 = vmatpush1.msra.mxu0 0.0
      %3305 = vmatprep.subr.mxu0 0.0
      %3306 = vmatpush1.msra.mxu0 0.0
      %3307 = vmatprep.subr.mxu0 0.0
      %3308 = vmatpush1.msra.mxu0 0.0
      %3309 = vmatprep.subr.mxu0 0.0
      %3310 = vmatpush1.msra.mxu0 0.0
      %3311 = vmatprep.subr.mxu0 0.0
      %3312 = vmatpush1.msra.mxu0 0.0
      %3313 = vmatprep.subr.mxu0 0.0
      %3314 = vmatpush1.msra.mxu0 0.0
      %3315 = vmatprep.subr.mxu0 0.0
      %3316 = vmatpush1.msra.mxu0 0.0
      %3317 = vmatprep.subr.mxu0 0.0
      %3318 = vmatpush1.msra.mxu0 0.0
      %3319 = vmatprep.subr.mxu0 0.0
      %3320 = vmatpush1.msra.mxu0 0.0
      %3321 = vmatprep.subr.mxu0 0.0
      %3322 = vmatpush1.msra.mxu0 0.0
      %3323 = vmatprep.subr.mxu0 0.0
      %3324 = vmatpush1.msra.mxu0 0.0
      %3325 = vmatprep.subr.mxu0 0.0
      %3326 = vmatpush1.msra.mxu0 0.0
      %3327 = vmatprep.subr.mxu0 0.0
      %3328 = vmatpush1.msra.mxu0 0.0
      %3329 = vmatprep.subr.mxu0 0.0
      %3330 = vmatpush1.msra.mxu0 0.0
      %3331 = vmatprep.subr.mxu0 0.0
      %3332 = vmatpush1.msra.mxu0 0.0
      %3333 = vmatprep.subr.mxu0 0.0
      %3334 = vmatpush1.msra.mxu0 0.0
      %3335 = vmatprep.subr.mxu0 0.0
      %3336 = vmatpush1.msra.mxu0 0.0
      %3337 = vmatprep.subr.mxu0 0.0
      %3338 = vmatpush1.msra.mxu0 0.0
      %3339 = vmatprep.subr.mxu0 0.0
      %3340 = vmatpush1.msra.mxu0 0.0
      %3341 = vmatprep.subr.mxu0 0.0
      %3342 = vmatpush1.msra.mxu0 0.0
      %3343 = vmatprep.subr.mxu0 0.0
      %3344 = vmatpush1.msra.mxu0 0.0
      %3345 = vmatprep.subr.mxu0 0.0
      %3346 = vmatpush1.msra.mxu0 0.0
      %3347 = vmatprep.subr.mxu0 0.0
      %3348 = vmatpush1.msra.mxu0 0.0
      %3349 = vmatprep.subr.mxu0 0.0
      %3350 = vmatpush1.msra.mxu0 0.0
      %3351 = vmatprep.subr.mxu0 0.0
      %3352 = vmatpush1.msra.mxu0 0.0
      %3353 = vmatprep.mubr.f32.mxu0 0.0
      %3354 = vmatmul.mubr.f32.gmra.mrb[0].mxu0 %v3278
      %v3355 = vpop.f32.mrb[0].mxu0
      %v3356 = vadd.f32 0.0, %v3355
      %v3357 = vpop.f32.mrb[0].mxu0
      %3358 = vmatprep.mubr.f32.mxu0 0.0
      %3359 = vmatmul.mubr.f32.gmra.mrb[0].mxu0 %v3281
      %v3360 = vpop.f32.mrb[0].mxu0
      %v3361 = vadd.f32 0.0, %v3360
      %v3362 = vpop.f32.mrb[0].mxu0
      %3363 = vmatprep.mubr.f32.mxu0 0.0
      %3364 = vmatmul.mubr.f32.gmra.mrb[0].mxu0 %v3284
      %v3365 = vpop.f32.mrb[0].mxu0
      %v3366 = vadd.f32 0.0, %v3365
      %v3367 = vpop.f32.mrb[0].mxu0
      %3368 = vmatprep.mubr.f32.mxu0 0.0
      %3369 = vmatmul.mubr.f32.gmra.mrb[0].mxu0 %v3287
      %v3370 = vpop.f32.mrb[0].mxu0
      %v3371 = vadd.f32 0.0, %v3370
      %v3372 = vpop.f32.mrb[0].mxu0
      %3373 = vdwg.mxu0
      %v3374 = vadd.f32 %v2612, %v3356
      %v3375 = vadd.f32 %v2613, %v3361
      %v3376 = vadd.f32 %v2614, %v3366
      %v3377 = vadd.f32 %v2615, %v3371
      %v3378 = vld [vmem:[%s4] sm:$0x1]
      %v3380 = vlaneseq
      %v3381 = vshrl.u32 %v3380, 7
      %v3382 = vsub.s32 0, %v3381
      %v3383 = vrot.slane %v3378, %v3382
      %v3385 = vadd.f32 %v3374, %v3383
      %v3386 = vadd.f32 %v3375, %v3383
      %v3387 = vadd.f32 %v3376, %v3383
      %v3388 = vadd.f32 %v3377, %v3383
      %3389 = vst.msk [vmem:[%s226] sm:$0xff] %vm243, %v3385
      %3390 = vst.msk [vmem:[%s226 + $0x8] sm:$0xff] %vm243, %v3386
      %3391 = vst.msk [vmem:[%s226 + $0x10] sm:$0xff] %vm243, %v3387
      %3392 = vst.msk [vmem:[%s226 + $0x18] sm:$0xff] %vm243, %v3388
      %s3393 = smul.u32 4, %s16
      %p3394 = scmp.lt.s32.totalorder %s3393, 7
      %s3395 = scalar_select %p3394, %s3393, 7
      %s3396 = smul.addr %s3395, 8
      %s3397 = scalar_lea.vmem %s5, %s3396
      // Predicated region
      $region41: #{tpu_custom_call.1} parent=39 // pred_check
        %p3398 = pneg %p144
      $region42: #{tpu_custom_call.1} parent=39 // pred_check_branch
        %3400 = sbr.rel (%p3398) target = $region44
      $region43: #{tpu_custom_call.1} parent=39 // pred_region
        %s3401 = smul.u32 4, %s16
      $region44: #{tpu_custom_call.1} parent=39 // pred_fallthru
        _
    $region40: #{tpu_custom_call.1} parent=5 // pred_fallthru
      _
    %p3402 = scmp.le.s32.totalorder 2, %s11
    // Predicated region
    $region45: #{tpu_custom_call.1} parent=5 // pred_check
      %p3403 = pneg %p3402
    $region46: #{tpu_custom_call.1} parent=5 // pred_check_branch
      %3405 = sbr.rel (%p3403) target = $region48
    $region47: #{tpu_custom_call.1} parent=5 // pred_region
      %s3406 = ssub.s32 %s11, 2
      // Predicated region
      $region49: #{tpu_custom_call.1} parent=47 // pred_check
        %p3407 = pneg %p150
      $region50: #{tpu_custom_call.1} parent=47 // pred_check_branch
        %3409 = sbr.rel (%p3407) target = $region52
      $region51: #{tpu_custom_call.1} parent=47 // pred_region
        %s3410 = smul.u32 4, %s17
        %p3411 = scmp.lt.s32.totalorder %s3410, 7
        %s3412 = scalar_select %p3411, %s3410, 7
        %s3413 = smul.addr %s3412, 8
        %s3414 = scalar_lea.vmem %s5, %s3413
      $region52: #{tpu_custom_call.1} parent=47 // pred_fallthru
        _
    $region48: #{tpu_custom_call.1} parent=5 // pred_fallthru
      _
  $region6: #{tpu_custom_call.1} parent=0 // loop_footer
    %s15 = sadd.s32 1, %s11
  $region7: #{tpu_custom_call.1} parent=0 // loop_footer_branch
    %10 = sbr.rel target = $region3
  $region8: #{tpu_custom_call.1} parent=0 // loop_exit
    _

</llo_original>
